<compile_context>
chip_gen: v7x
topology: tpu7x:2x2x1
jax: 0.10.0
libtpu: 0.0.40
codegen_flags: <defaults>
</compile_context>

<pallas_src>
import jax
import jax.numpy as jnp
from jax.experimental import pallas as pl
from jax.experimental.pallas import tpu as pltpu

IN_DIM, H1, H2, H3, OUT_DIM = 28 * 28, 1024, 512, 256, 1
_DIMS = [(IN_DIM, H1), (H1, H2), (H2, H3), (H3, OUT_DIM)]


def _leaky_relu(x, slope=0.2):
    return jnp.where(x > 0, x, slope * x)


def discriminator_kernel(x_ref,
                         w1_ref, b1_ref,
                         w2_ref, b2_ref,
                         w3_ref, b3_ref,
                         w4_ref, b4_ref,
                         o_ref):
    # Matmul operands use the weights' storage dtype (bf16 by default, f32
    # optional); accumulation, bias add, activations and sigmoid are always f32.
    # Dropout(0.3) is identity at inference time.
    # TODO(synk): training-mode dropout would need pltpu.prng_seed / prng_random_bits.
    cdt = w1_ref.dtype
    x = x_ref[...]

    h = jnp.dot(x.astype(cdt), w1_ref[...],
                preferred_element_type=jnp.float32) + b1_ref[...]
    h = _leaky_relu(h)

    h = jnp.dot(h.astype(cdt), w2_ref[...],
                preferred_element_type=jnp.float32) + b2_ref[...]
    h = _leaky_relu(h)

    h = jnp.dot(h.astype(cdt), w3_ref[...],
                preferred_element_type=jnp.float32) + b3_ref[...]
    h = _leaky_relu(h)

    logits = jnp.dot(h.astype(cdt), w4_ref[...],
                     preferred_element_type=jnp.float32) + b4_ref[...]
    # sigmoid: exp + reciprocal both route to the EUP slot (free under MXU slack).
    o_ref[...] = pl.reciprocal(1.0 + jnp.exp(-logits), approx=True)


def _round_up(n, m):
    return ((n + m - 1) // m) * m


def _choose_tile_b(B):
    """MXU-friendly batch tile: big tiles, and >=2 grid steps on larger batches
    so v7x's two TensorCores both get work via dimension_semantics=("parallel",)."""
    if B >= 2048:
        return 1024
    if B >= 512:
        return max(256, _round_up((B + 1) // 2, 8))
    return _round_up(B, 8)   # small batch: single (possibly padded) step


def prepare_params(params, use_bf16=True):
    """One-time cast of matmul weights to the MXU operand dtype (default bf16).
    Call this once outside the per-step forward so the cast is not re-run
    (and weights are not re-read from HBM) on every call."""
    cdt = jnp.bfloat16 if use_bf16 else jnp.float32
    out = {}
    for i in range(1, 5):
        out[f"w{i}"] = params[f"w{i}"].astype(cdt)
        out[f"b{i}"] = params[f"b{i}"].astype(jnp.float32)
    return out


def discriminator_forward(x, params, *, tile_b=None):
    """x: (B, 784) float32 (or bf16). params: output of prepare_params
    (w1..w4 stored as (in, out), b1..b4 as (1, out))."""
    B = x.shape[0]
    if tile_b is None:
        tile_b = _choose_tile_b(B)
    grid_b = pl.cdiv(B, tile_b)
    B_pad = grid_b * tile_b
    if B_pad != B:
        # masked tail via zero padding; padded rows are sliced off below.
        x = jnp.pad(x, ((0, B_pad - B), (0, 0)))

    def const_spec(shape):
        # whole array, resident across all grid steps; single-buffered since the
        # block index never changes (no point paying double-buffer VMEM).
        return pl.BlockSpec(shape, lambda i: (0, 0),
                            pipeline_mode=pl.Buffered(1))

    in_specs = [pl.BlockSpec((tile_b, IN_DIM), lambda i: (i, 0))]
    args = [x]
    for idx, (fan_in, fan_out) in enumerate(_DIMS, start=1):
        in_specs.append(const_spec((fan_in, fan_out)))
        in_specs.append(const_spec((1, fan_out)))
        args += [params[f"w{idx}"], params[f"b{idx}"]]

    out = pl.pallas_call(
        discriminator_kernel,
        out_shape=jax.ShapeDtypeStruct((B_pad, OUT_DIM), jnp.float32),
        grid_spec=pltpu.PrefetchScalarGridSpec(
            num_scalar_prefetch=0,
            grid=(grid_b,),
            in_specs=in_specs,
            out_specs=pl.BlockSpec((tile_b, OUT_DIM), lambda i: (i, 0)),
        ),
        compiler_params=pltpu.CompilerParams(
            dimension_semantics=("parallel",),
            vmem_limit_bytes=32 << 20,
        ),
    )(*args)
    return out[:B]


def init_params(key):
    """Deterministic init mimicking PyTorch Linear default (U[-1/sqrt(fan_in), +])."""
    params = {}
    for idx, (fan_in, fan_out) in enumerate(_DIMS, start=1):
        key, kw, kb = jax.random.split(key, 3)
        bound = 1.0 / jnp.sqrt(fan_in)
        params[f"w{idx}"] = jax.random.uniform(
            kw, (fan_in, fan_out), jnp.float32, -bound, bound)
        params[f"b{idx}"] = jax.random.uniform(
            kb, (1, fan_out), jnp.float32, -bound, bound)
    return params


def discriminator_ref(x, params):
    h = x
    for idx in range(1, 4):
        h = h @ params[f"w{idx}"] + params[f"b{idx}"]
        h = jnp.where(h > 0, h, 0.2 * h)
    logits = h @ params["w4"] + params["b4"]
    return 1.0 / (1.0 + jnp.exp(-logits))


if __name__ == "__main__":
    key = jax.random.PRNGKey(0)
    key, kx = jax.random.split(key)

    B = 8  # small test batch (sublane-friendly); whole batch -> single grid step
    x = jax.random.normal(kx, (B, IN_DIM), dtype=jnp.float32)
    raw_params = init_params(key)
    ref = discriminator_ref(x, raw_params)

    # Default path: bf16 matmul operands (v5e/v6e/v7x MXU-native), f32 accumulation.
    params_bf16 = prepare_params(raw_params, use_bf16=True)
    out = jax.block_until_ready(discriminator_forward(x, params_bf16))
    assert out.shape == (B, OUT_DIM)
    assert jnp.allclose(out, ref, atol=3e-2)

    # f32-operand path: near-exact parity (approx reciprocal in the sigmoid only).
    params_f32 = prepare_params(raw_params, use_bf16=False)
    out_f32 = jax.block_until_ready(discriminator_forward(x, params_f32))
    assert out_f32.shape == (B, OUT_DIM)
    assert jnp.allclose(out_f32, ref, atol=1e-2)

    # Ragged batch exercises the cdiv grid + zero-padded tail path.
    key, kx2 = jax.random.split(key)
    B2 = 300
    x2 = jax.random.normal(kx2, (B2, IN_DIM), dtype=jnp.float32)
    out2 = jax.block_until_ready(discriminator_forward(x2, params_bf16))
    assert out2.shape == (B2, OUT_DIM)
    assert jnp.allclose(out2, discriminator_ref(x2, raw_params), atol=3e-2)

    print("KERNEL_OK")
</pallas_src>

<mosaic_0001>
module attributes {stable_mosaic.version = 11 : i64} {
  func.func @discriminator_kernel(%arg0: i32, %arg1: memref<8x784xf32, #tpu.memory_space<vmem>>, %arg2: memref<784x1024xbf16, #tpu.memory_space<vmem>>, %arg3: memref<1x1024xf32, #tpu.memory_space<vmem>>, %arg4: memref<1024x512xbf16, #tpu.memory_space<vmem>>, %arg5: memref<1x512xf32, #tpu.memory_space<vmem>>, %arg6: memref<512x256xbf16, #tpu.memory_space<vmem>>, %arg7: memref<1x256xf32, #tpu.memory_space<vmem>>, %arg8: memref<256x1xbf16, #tpu.memory_space<vmem>>, %arg9: memref<1x1xf32, #tpu.memory_space<vmem>>, %arg10: memref<8x1xf32, #tpu.memory_space<vmem>>) attributes {dimension_semantics = [#tpu.dimension_semantics<parallel>], iteration_bounds = array<i64: 1>, scalar_prefetch = 0 : i64, scratch_operands = 0 : i64, tpu.core_type = #tpu.core_type<tc>, window_params = [{transform_indices = @transform_0, window_bounds = array<i64: 8, 784>}, {pipeline_mode = #tpu.pipeline_mode<synchronous>, transform_indices = @transform_1, window_bounds = array<i64: 784, 1024>}, {pipeline_mode = #tpu.pipeline_mode<synchronous>, transform_indices = @transform_2, window_bounds = array<i64: 1, 1024>}, {pipeline_mode = #tpu.pipeline_mode<synchronous>, transform_indices = @transform_3, window_bounds = array<i64: 1024, 512>}, {pipeline_mode = #tpu.pipeline_mode<synchronous>, transform_indices = @transform_4, window_bounds = array<i64: 1, 512>}, {pipeline_mode = #tpu.pipeline_mode<synchronous>, transform_indices = @transform_5, window_bounds = array<i64: 512, 256>}, {pipeline_mode = #tpu.pipeline_mode<synchronous>, transform_indices = @transform_6, window_bounds = array<i64: 1, 256>}, {pipeline_mode = #tpu.pipeline_mode<synchronous>, transform_indices = @transform_7, window_bounds = array<i64: 256, 1>}, {pipeline_mode = #tpu.pipeline_mode<synchronous>, transform_indices = @transform_8, window_bounds = array<i64: 1, 1>}, {transform_indices = @transform_9, window_bounds = array<i64: 8, 1>}]} {
    %c0 = arith.constant 0 : index
    %c0_0 = arith.constant 0 : index
    %0 = vector.load %arg1[%c0, %c0_0] : memref<8x784xf32, #tpu.memory_space<vmem>>, vector<8x784xf32>
    %1 = arith.truncf %0 : vector<8x784xf32> to vector<8x784xbf16>
    %c0_1 = arith.constant 0 : index
    %c0_2 = arith.constant 0 : index
    %2 = vector.load %arg2[%c0_1, %c0_2] : memref<784x1024xbf16, #tpu.memory_space<vmem>>, vector<784x1024xbf16>
    %cst = arith.constant dense<0.000000e+00> : vector<8x1024xf32>
    %3 = tpu.matmul %1, %2, %cst {dimension_numbers = #tpu.dot_dimension_numbers<[1], [0], [0], [1], [0, 0, 1, 1], [], []>} : vector<8x784xbf16>, vector<784x1024xbf16>, vector<8x1024xf32> -> vector<8x1024xf32>
    %c0_3 = arith.constant 0 : index
    %c0_4 = arith.constant 0 : index
    %4 = vector.load %arg3[%c0_3, %c0_4] : memref<1x1024xf32, #tpu.memory_space<vmem>>, vector<1x1024xf32>
    %5 = vector.broadcast %4 : vector<1x1024xf32> to vector<8x1024xf32>
    %6 = arith.addf %3, %5 : vector<8x1024xf32>
    %cst_5 = arith.constant 0.000000e+00 : f32
    %7 = vector.broadcast %cst_5 : f32 to vector<8x1024xf32>
    %8 = arith.cmpf ogt, %6, %7 : vector<8x1024xf32>
    %cst_6 = arith.constant 2.000000e-01 : f32
    %9 = vector.broadcast %cst_6 : f32 to vector<8x1024xf32>
    %10 = arith.mulf %9, %6 : vector<8x1024xf32>
    %11 = arith.select %8, %6, %10 : vector<8x1024xi1>, vector<8x1024xf32>
    %12 = arith.truncf %11 : vector<8x1024xf32> to vector<8x1024xbf16>
    %c0_7 = arith.constant 0 : index
    %c0_8 = arith.constant 0 : index
    %13 = vector.load %arg4[%c0_7, %c0_8] : memref<1024x512xbf16, #tpu.memory_space<vmem>>, vector<1024x512xbf16>
    %cst_9 = arith.constant dense<0.000000e+00> : vector<8x512xf32>
    %14 = tpu.matmul %12, %13, %cst_9 {dimension_numbers = #tpu.dot_dimension_numbers<[1], [0], [0], [1], [0, 0, 1, 1], [], []>} : vector<8x1024xbf16>, vector<1024x512xbf16>, vector<8x512xf32> -> vector<8x512xf32>
    %c0_10 = arith.constant 0 : index
    %c0_11 = arith.constant 0 : index
    %15 = vector.load %arg5[%c0_10, %c0_11] : memref<1x512xf32, #tpu.memory_space<vmem>>, vector<1x512xf32>
    %16 = vector.broadcast %15 : vector<1x512xf32> to vector<8x512xf32>
    %17 = arith.addf %14, %16 : vector<8x512xf32>
    %cst_12 = arith.constant 0.000000e+00 : f32
    %18 = vector.broadcast %cst_12 : f32 to vector<8x512xf32>
    %19 = arith.cmpf ogt, %17, %18 : vector<8x512xf32>
    %cst_13 = arith.constant 2.000000e-01 : f32
    %20 = vector.broadcast %cst_13 : f32 to vector<8x512xf32>
    %21 = arith.mulf %20, %17 : vector<8x512xf32>
    %22 = arith.select %19, %17, %21 : vector<8x512xi1>, vector<8x512xf32>
    %23 = arith.truncf %22 : vector<8x512xf32> to vector<8x512xbf16>
    %c0_14 = arith.constant 0 : index
    %c0_15 = arith.constant 0 : index
    %24 = vector.load %arg6[%c0_14, %c0_15] : memref<512x256xbf16, #tpu.memory_space<vmem>>, vector<512x256xbf16>
    %cst_16 = arith.constant dense<0.000000e+00> : vector<8x256xf32>
    %25 = tpu.matmul %23, %24, %cst_16 {dimension_numbers = #tpu.dot_dimension_numbers<[1], [0], [0], [1], [0, 0, 1, 1], [], []>} : vector<8x512xbf16>, vector<512x256xbf16>, vector<8x256xf32> -> vector<8x256xf32>
    %c0_17 = arith.constant 0 : index
    %c0_18 = arith.constant 0 : index
    %26 = vector.load %arg7[%c0_17, %c0_18] : memref<1x256xf32, #tpu.memory_space<vmem>>, vector<1x256xf32>
    %27 = vector.broadcast %26 : vector<1x256xf32> to vector<8x256xf32>
    %28 = arith.addf %25, %27 : vector<8x256xf32>
    %cst_19 = arith.constant 0.000000e+00 : f32
    %29 = vector.broadcast %cst_19 : f32 to vector<8x256xf32>
    %30 = arith.cmpf ogt, %28, %29 : vector<8x256xf32>
    %cst_20 = arith.constant 2.000000e-01 : f32
    %31 = vector.broadcast %cst_20 : f32 to vector<8x256xf32>
    %32 = arith.mulf %31, %28 : vector<8x256xf32>
    %33 = arith.select %30, %28, %32 : vector<8x256xi1>, vector<8x256xf32>
    %34 = arith.truncf %33 : vector<8x256xf32> to vector<8x256xbf16>
    %c0_21 = arith.constant 0 : index
    %c0_22 = arith.constant 0 : index
    %35 = vector.load %arg8[%c0_21, %c0_22] : memref<256x1xbf16, #tpu.memory_space<vmem>>, vector<256x1xbf16>
    %cst_23 = arith.constant dense<0.000000e+00> : vector<8x1xf32>
    %36 = tpu.matmul %34, %35, %cst_23 {dimension_numbers = #tpu.dot_dimension_numbers<[1], [0], [0], [1], [0, 0, 1, 1], [], []>} : vector<8x256xbf16>, vector<256x1xbf16>, vector<8x1xf32> -> vector<8x1xf32>
    %c0_24 = arith.constant 0 : index
    %c0_25 = arith.constant 0 : index
    %37 = vector.load %arg9[%c0_24, %c0_25] : memref<1x1xf32, #tpu.memory_space<vmem>>, vector<1x1xf32>
    %38 = vector.broadcast %37 : vector<1x1xf32> to vector<8x1xf32>
    %39 = arith.addf %36, %38 : vector<8x1xf32>
    %cst_26 = arith.constant 0.000000e+00 : f32
    %40 = vector.broadcast %cst_26 : f32 to vector<8x1xf32>
    %41 = arith.subf %40, %39 : vector<8x1xf32>
    %42 = math.exp %41 : vector<8x1xf32>
    %cst_27 = arith.constant 1.000000e+00 : f32
    %43 = vector.broadcast %cst_27 : f32 to vector<8x1xf32>
    %44 = arith.addf %43, %42 : vector<8x1xf32>
    %45 = tpu.reciprocal %44 {approx = true} : vector<8x1xf32> -> vector<8x1xf32>
    %c0_28 = arith.constant 0 : index
    %c0_29 = arith.constant 0 : index
    %46 = vector.load %arg10[%c0_28, %c0_29] : memref<8x1xf32, #tpu.memory_space<vmem>>, vector<8x1xf32>
    tpu.vector_store %arg10[%c0_28, %c0_29], %45 {strides = array<i32>} : memref<8x1xf32, #tpu.memory_space<vmem>>, vector<8x1xf32>,
    return
  }
  func.func @transform_0(%arg0: i32) -> (i32, i32) {
    %c0_i32 = arith.constant 0 : i32
    %c0_i32_0 = arith.constant 0 : i32
    return %arg0, %c0_i32 : i32, i32
  }
  func.func @transform_1(%arg0: i32) -> (i32, i32) {
    %c0_i32 = arith.constant 0 : i32
    %c0_i32_0 = arith.constant 0 : i32
    %c0_i32_1 = arith.constant 0 : i32
    return %c0_i32, %c0_i32_0 : i32, i32
  }
  func.func @transform_2(%arg0: i32) -> (i32, i32) {
    %c0_i32 = arith.constant 0 : i32
    %c0_i32_0 = arith.constant 0 : i32
    %c0_i32_1 = arith.constant 0 : i32
    return %c0_i32, %c0_i32_0 : i32, i32
  }
  func.func @transform_3(%arg0: i32) -> (i32, i32) {
    %c0_i32 = arith.constant 0 : i32
    %c0_i32_0 = arith.constant 0 : i32
    %c0_i32_1 = arith.constant 0 : i32
    return %c0_i32, %c0_i32_0 : i32, i32
  }
  func.func @transform_4(%arg0: i32) -> (i32, i32) {
    %c0_i32 = arith.constant 0 : i32
    %c0_i32_0 = arith.constant 0 : i32
    %c0_i32_1 = arith.constant 0 : i32
    return %c0_i32, %c0_i32_0 : i32, i32
  }
  func.func @transform_5(%arg0: i32) -> (i32, i32) {
    %c0_i32 = arith.constant 0 : i32
    %c0_i32_0 = arith.constant 0 : i32
    %c0_i32_1 = arith.constant 0 : i32
    return %c0_i32, %c0_i32_0 : i32, i32
  }
  func.func @transform_6(%arg0: i32) -> (i32, i32) {
    %c0_i32 = arith.constant 0 : i32
    %c0_i32_0 = arith.constant 0 : i32
    %c0_i32_1 = arith.constant 0 : i32
    return %c0_i32, %c0_i32_0 : i32, i32
  }
  func.func @transform_7(%arg0: i32) -> (i32, i32) {
    %c0_i32 = arith.constant 0 : i32
    %c0_i32_0 = arith.constant 0 : i32
    %c0_i32_1 = arith.constant 0 : i32
    return %c0_i32, %c0_i32_0 : i32, i32
  }
  func.func @transform_8(%arg0: i32) -> (i32, i32) {
    %c0_i32 = arith.constant 0 : i32
    %c0_i32_0 = arith.constant 0 : i32
    %c0_i32_1 = arith.constant 0 : i32
    return %c0_i32, %c0_i32_0 : i32, i32
  }
  func.func @transform_9(%arg0: i32) -> (i32, i32) {
    %c0_i32 = arith.constant 0 : i32
    %c0_i32_0 = arith.constant 0 : i32
    return %arg0, %c0_i32 : i32, i32
  }
}

</mosaic_0001>

<llo_original>
// kernel: tpu_custom_call.1
$region0: #{tpu_custom_call.1}
  #allocation0 [shape = 'u32[]', space=smem, size = 0x4, offset = 0x4, fixed_abs, tag = 'smem constant byte address 0x4 - core index']
  #allocation1 [shape = 'u32[144,128]{1,0:T(1,128)}', space=vmem, size = 0x12000, scoped, tag = 'internal scratch']
  #allocation2 [shape = 'f32[1,1]{1,0:T(1,128)S(1)}', space=vmem, size = 0x200, scoped, tag = 'scoped memory for tpu_custom_call.1']
  %s0 = inlined_call_operand.hbm [shape: f32[8,784], index: 0, kind: input, shape index: {}]
  %s1 = inlined_call_operand.hbm [shape: bf16[784,1024], index: 1, kind: input, shape index: {}]
  %s2 = inlined_call_operand.hbm [shape: f32[1,1024], index: 2, kind: input, shape index: {}]
  %s3 = inlined_call_operand.hbm [shape: bf16[1024,512], index: 3, kind: input, shape index: {}]
  %s4 = inlined_call_operand.hbm [shape: f32[1,512], index: 4, kind: input, shape index: {}]
  %s5 = inlined_call_operand.hbm [shape: bf16[512,256], index: 5, kind: input, shape index: {}]
  %s6 = inlined_call_operand.hbm [shape: f32[1,256], index: 6, kind: input, shape index: {}]
  %s7 = inlined_call_operand.vmem [shape: bf16[256,1], index: 7, kind: input, shape index: {}]
  %s8 = inlined_call_operand.<no memory space> [shape: f32[1,1], index: 8, kind: input, shape index: {}]
  %s9 = inlined_call_operand.vmem [shape: f32[8,1], index: 9, kind: output, shape index: {}]
  %s10 = sld [smem:[#allocation0]]
  $region74: #{tpu_custom_call.1} parent=0
    _
  %s12 = ssub.s32 1, %s10
  %s13 = scalar_select 0, %s12, %s10
  %v14 = vstv %s8
  %15 = vst [vmem:[#allocation2] sm:$0x1] %v14
  $region1: #{tpu_custom_call.1} parent=0
    #allocation3 [shape = 'u8[28672]{0}', space=vmem, size = 0x7000, scoped, tag = 'input window, operand 0, single buffered']
    #allocation4 [shape = 's32[1]{0}', space=sflag, size = 0x4, scoped, tag = 'scoped memory for tpu_custom_call.1']
    #allocation5 [shape = 'u8[1605632]{0}', space=vmem, size = 0x188000, scoped, tag = 'input window, operand 1, single buffered']
    #allocation6 [shape = 's32[1]{0}', space=sflag, size = 0x4, scoped, tag = 'scoped memory for tpu_custom_call.1']
    #allocation7 [shape = 'u8[4096]{0}', space=vmem, size = 0x1000, scoped, tag = 'input window, operand 2, single buffered']
    #allocation8 [shape = 'u8[1048576]{0}', space=vmem, size = 0x100000, scoped, tag = 'input window, operand 3, single buffered']
    #allocation9 [shape = 's32[1]{0}', space=sflag, size = 0x4, scoped, tag = 'scoped memory for tpu_custom_call.1']
    #allocation10 [shape = 'u8[2048]{0}', space=vmem, size = 0x800, scoped, tag = 'input window, operand 4, single buffered']
    #allocation11 [shape = 'u8[262144]{0}', space=vmem, size = 0x40000, scoped, tag = 'input window, operand 5, single buffered']
    #allocation12 [shape = 's32[1]{0}', space=sflag, size = 0x4, scoped, tag = 'scoped memory for tpu_custom_call.1']
    #allocation13 [shape = 'u8[1024]{0}', space=vmem, size = 0x400, scoped, tag = 'input window, operand 6, single buffered']
    %16 = vsyncpa [#allocation4], 0
    %17 = vsyncpa [#allocation6], 0
    %18 = vsyncpa [#allocation9], 0
    %19 = vsyncpa [#allocation12], 0
    // Predicated region
    $region2: #{tpu_custom_call.1} parent=1 // pred_check
      _
    $region3: #{tpu_custom_call.1} parent=1 // pred_check_branch
      %21 = sbr.rel (0) target = $region5
    $region4: #{tpu_custom_call.1} parent=1 // pred_region
      %s23 = ssub.s32 896, 896
      %24 = vsyncadd [#allocation4], %s23
      %s26 = sshll.u32 [#allocation3], 4
      %s27 = int_to_ptr.vmem [resolvable:$true] %s26
      %29 = dma.hbm_to_vmem [thread:$0]  %s0, 896, %s27, [#allocation4]
    $region5: #{tpu_custom_call.1} parent=1 // pred_fallthru
      _
    // Predicated region
    $region6: #{tpu_custom_call.1} parent=1 // pred_check
      _
    $region7: #{tpu_custom_call.1} parent=1 // pred_check_branch
      %31 = sbr.rel (0) target = $region9
    $region8: #{tpu_custom_call.1} parent=1 // pred_region
      %s33 = ssub.s32 50176, 50176
      %34 = vsyncadd [#allocation6], %s33
      %s35 = sshll.u32 [#allocation5], 4
      %s36 = int_to_ptr.vmem [resolvable:$true] %s35
      %41 = dma.hbm_to_vmem [thread:$0]  %s1, 50176, %s36, [#allocation6], 512, 512, 32
    $region9: #{tpu_custom_call.1} parent=1 // pred_fallthru
      _
    // Predicated region
    $region10: #{tpu_custom_call.1} parent=1 // pred_check
      _
    $region11: #{tpu_custom_call.1} parent=1 // pred_check_branch
      %43 = sbr.rel (0) target = $region13
    $region12: #{tpu_custom_call.1} parent=1 // pred_region
      %s45 = ssub.s32 128, 128
      %46 = vsyncadd [#allocation6], %s45
      %s48 = sshll.u32 [#allocation7], 4
      %s49 = int_to_ptr.vmem [resolvable:$true] %s48
      %51 = dma.hbm_to_vmem [thread:$0]  %s2, 128, %s49, [#allocation6]
    $region13: #{tpu_custom_call.1} parent=1 // pred_fallthru
      _
    // Predicated region
    $region14: #{tpu_custom_call.1} parent=1 // pred_check
      _
    $region15: #{tpu_custom_call.1} parent=1 // pred_check_branch
      %53 = sbr.rel (0) target = $region17
    $region16: #{tpu_custom_call.1} parent=1 // pred_region
      %s55 = ssub.s32 32768, 32768
      %56 = vsyncadd [#allocation9], %s55
      %s57 = sshll.u32 [#allocation8], 4
      %s58 = int_to_ptr.vmem [resolvable:$true] %s57
      %63 = dma.hbm_to_vmem [thread:$0]  %s3, 32768, %s58, [#allocation9], 256, 256, 16
    $region17: #{tpu_custom_call.1} parent=1 // pred_fallthru
      _
    // Predicated region
    $region18: #{tpu_custom_call.1} parent=1 // pred_check
      _
    $region19: #{tpu_custom_call.1} parent=1 // pred_check_branch
      %65 = sbr.rel (0) target = $region21
    $region20: #{tpu_custom_call.1} parent=1 // pred_region
      %s67 = ssub.s32 64, 64
      %68 = vsyncadd [#allocation9], %s67
      %s70 = sshll.u32 [#allocation10], 4
      %s71 = int_to_ptr.vmem [resolvable:$true] %s70
      %73 = dma.hbm_to_vmem [thread:$0]  %s4, 64, %s71, [#allocation9]
    $region21: #{tpu_custom_call.1} parent=1 // pred_fallthru
      _
    // Predicated region
    $region22: #{tpu_custom_call.1} parent=1 // pred_check
      _
    $region23: #{tpu_custom_call.1} parent=1 // pred_check_branch
      %75 = sbr.rel (0) target = $region25
    $region24: #{tpu_custom_call.1} parent=1 // pred_region
      %s77 = ssub.s32 8192, 8192
      %78 = vsyncadd [#allocation12], %s77
      %s79 = sshll.u32 [#allocation11], 4
      %s80 = int_to_ptr.vmem [resolvable:$true] %s79
      %85 = dma.hbm_to_vmem [thread:$0]  %s5, 8192, %s80, [#allocation12], 128, 128, 8
    $region25: #{tpu_custom_call.1} parent=1 // pred_fallthru
      _
    // Predicated region
    $region26: #{tpu_custom_call.1} parent=1 // pred_check
      _
    $region27: #{tpu_custom_call.1} parent=1 // pred_check_branch
      %87 = sbr.rel (0) target = $region29
    $region28: #{tpu_custom_call.1} parent=1 // pred_region
      %s89 = ssub.s32 32, 32
      %90 = vsyncadd [#allocation12], %s89
      %s92 = sshll.u32 [#allocation13], 4
      %s93 = int_to_ptr.vmem [resolvable:$true] %s92
      %95 = dma.hbm_to_vmem [thread:$0]  %s6, 32, %s93, [#allocation12]
    $region29: #{tpu_custom_call.1} parent=1 // pred_fallthru
      _
    // Predicated region
    $region30: #{tpu_custom_call.1} parent=1 // pred_check
      _
    $region31: #{tpu_custom_call.1} parent=1 // pred_check_branch
      %97 = sbr.rel (0) target = $region33
    $region32: #{tpu_custom_call.1} parent=1 // pred_region
      _
    $region33: #{tpu_custom_call.1} parent=1 // pred_fallthru
      _
    // Predicated region
    $region34: #{tpu_custom_call.1} parent=1 // pred_check
      _
    $region35: #{tpu_custom_call.1} parent=1 // pred_check_branch
      %99 = sbr.rel (0) target = $region37
    $region36: #{tpu_custom_call.1} parent=1 // pred_region
      _
    $region37: #{tpu_custom_call.1} parent=1 // pred_fallthru
      _
    // Predicated region
    $region38: #{tpu_custom_call.1} parent=1 // pred_check
      _
    $region39: #{tpu_custom_call.1} parent=1 // pred_check_branch
      %101 = sbr.rel (0) target = $region41
    $region40: #{tpu_custom_call.1} parent=1 // pred_region
      %102 = dma.done [#allocation4], 896
    $region41: #{tpu_custom_call.1} parent=1 // pred_fallthru
      _
    // Predicated region
    $region42: #{tpu_custom_call.1} parent=1 // pred_check
      _
    $region43: #{tpu_custom_call.1} parent=1 // pred_check_branch
      %104 = sbr.rel (0) target = $region45
    $region44: #{tpu_custom_call.1} parent=1 // pred_region
      %105 = dma.done [#allocation6], 50176
    $region45: #{tpu_custom_call.1} parent=1 // pred_fallthru
      _
    // Predicated region
    $region46: #{tpu_custom_call.1} parent=1 // pred_check
      _
    $region47: #{tpu_custom_call.1} parent=1 // pred_check_branch
      %107 = sbr.rel (0) target = $region49
    $region48: #{tpu_custom_call.1} parent=1 // pred_region
      %108 = dma.done [#allocation6], 128
    $region49: #{tpu_custom_call.1} parent=1 // pred_fallthru
      _
    // Predicated region
    $region50: #{tpu_custom_call.1} parent=1 // pred_check
      _
    $region51: #{tpu_custom_call.1} parent=1 // pred_check_branch
      %110 = sbr.rel (0) target = $region53
    $region52: #{tpu_custom_call.1} parent=1 // pred_region
      %111 = dma.done [#allocation9], 32768
    $region53: #{tpu_custom_call.1} parent=1 // pred_fallthru
      _
    // Predicated region
    $region54: #{tpu_custom_call.1} parent=1 // pred_check
      _
    $region55: #{tpu_custom_call.1} parent=1 // pred_check_branch
      %113 = sbr.rel (0) target = $region57
    $region56: #{tpu_custom_call.1} parent=1 // pred_region
      %114 = dma.done [#allocation9], 64
    $region57: #{tpu_custom_call.1} parent=1 // pred_fallthru
      _
    // Predicated region
    $region58: #{tpu_custom_call.1} parent=1 // pred_check
      _
    $region59: #{tpu_custom_call.1} parent=1 // pred_check_branch
      %116 = sbr.rel (0) target = $region61
    $region60: #{tpu_custom_call.1} parent=1 // pred_region
      %117 = dma.done [#allocation12], 8192
    $region61: #{tpu_custom_call.1} parent=1 // pred_fallthru
      _
    // Predicated region
    $region62: #{tpu_custom_call.1} parent=1 // pred_check
      _
    $region63: #{tpu_custom_call.1} parent=1 // pred_check_branch
      %119 = sbr.rel (0) target = $region65
    $region64: #{tpu_custom_call.1} parent=1 // pred_region
      %120 = dma.done [#allocation12], 32
    $region65: #{tpu_custom_call.1} parent=1 // pred_fallthru
      _
    %v122 = vld [vmem:[#allocation3] sm:$0xff]
    %v123 = vld [vmem:[#allocation3 + $0x8] sm:$0xff]
    %v124 = vld [vmem:[#allocation3 + $0x10] sm:$0xff]
    %v125 = vld [vmem:[#allocation3 + $0x18] sm:$0xff]
    %v126 = vld [vmem:[#allocation3 + $0x20] sm:$0xff]
    %v127 = vld [vmem:[#allocation3 + $0x28] sm:$0xff]
    %v128 = vld [vmem:[#allocation3 + $0x30] sm:$0xff]
    %v129 = vpack.c.bf16 %v122, %v122
    %v130 = vpack.c.bf16 %v123, %v123
    %v131 = vpack.c.bf16 %v124, %v124
    %v132 = vpack.c.bf16 %v125, %v125
    %v133 = vpack.c.bf16 %v126, %v126
    %v134 = vpack.c.bf16 %v127, %v127
    %v135 = vpack.c.bf16 %v128, %v128
    %v136 = vld [vmem:[#allocation5] sm:$0xff]
    %v137 = vld [vmem:[#allocation5 + $0x8] sm:$0xff]
    %v138 = vld [vmem:[#allocation5 + $0x10] sm:$0xff]
    %v139 = vld [vmem:[#allocation5 + $0x18] sm:$0xff]
    %v140 = vld [vmem:[#allocation5 + $0x20] sm:$0xff]
    %v141 = vld [vmem:[#allocation5 + $0x28] sm:$0xff]
    %v142 = vld [vmem:[#allocation5 + $0x30] sm:$0xff]
    %v143 = vld [vmem:[#allocation5 + $0x38] sm:$0xff]
    %v144 = vld [vmem:[#allocation5 + $0x40] sm:$0xff]
    %v145 = vld [vmem:[#allocation5 + $0x48] sm:$0xff]
    %v146 = vld [vmem:[#allocation5 + $0x50] sm:$0xff]
    %v147 = vld [vmem:[#allocation5 + $0x58] sm:$0xff]
    %v148 = vld [vmem:[#allocation5 + $0x60] sm:$0xff]
    %v149 = vld [vmem:[#allocation5 + $0x68] sm:$0xff]
    %v150 = vld [vmem:[#allocation5 + $0x70] sm:$0xff]
    %v151 = vld [vmem:[#allocation5 + $0x78] sm:$0xff]
    %v152 = vld [vmem:[#allocation5 + $0x80] sm:$0xff]
    %v153 = vld [vmem:[#allocation5 + $0x88] sm:$0xff]
    %v154 = vld [vmem:[#allocation5 + $0x90] sm:$0xff]
    %v155 = vld [vmem:[#allocation5 + $0x98] sm:$0xff]
    %v156 = vld [vmem:[#allocation5 + $0xa0] sm:$0xff]
    %v157 = vld [vmem:[#allocation5 + $0xa8] sm:$0xff]
    %v158 = vld [vmem:[#allocation5 + $0xb0] sm:$0xff]
    %v159 = vld [vmem:[#allocation5 + $0xb8] sm:$0xff]
    %v160 = vld [vmem:[#allocation5 + $0xc0] sm:$0xff]
    %v161 = vld [vmem:[#allocation5 + $0xc8] sm:$0xff]
    %v162 = vld [vmem:[#allocation5 + $0xd0] sm:$0xff]
    %v163 = vld [vmem:[#allocation5 + $0xd8] sm:$0xff]
    %v164 = vld [vmem:[#allocation5 + $0xe0] sm:$0xff]
    %v165 = vld [vmem:[#allocation5 + $0xe8] sm:$0xff]
    %v166 = vld [vmem:[#allocation5 + $0xf0] sm:$0xff]
    %v167 = vld [vmem:[#allocation5 + $0xf8] sm:$0xff]
    %v168 = vld [vmem:[#allocation5 + $0x100] sm:$0xff]
    %v169 = vld [vmem:[#allocation5 + $0x108] sm:$0xff]
    %v170 = vld [vmem:[#allocation5 + $0x110] sm:$0xff]
    %v171 = vld [vmem:[#allocation5 + $0x118] sm:$0xff]
    %v172 = vld [vmem:[#allocation5 + $0x120] sm:$0xff]
    %v173 = vld [vmem:[#allocation5 + $0x128] sm:$0xff]
    %v174 = vld [vmem:[#allocation5 + $0x130] sm:$0xff]
    %v175 = vld [vmem:[#allocation5 + $0x138] sm:$0xff]
    %v176 = vld [vmem:[#allocation5 + $0x140] sm:$0xff]
    %v177 = vld [vmem:[#allocation5 + $0x148] sm:$0xff]
    %v178 = vld [vmem:[#allocation5 + $0x150] sm:$0xff]
    %v179 = vld [vmem:[#allocation5 + $0x158] sm:$0xff]
    %v180 = vld [vmem:[#allocation5 + $0x160] sm:$0xff]
    %v181 = vld [vmem:[#allocation5 + $0x168] sm:$0xff]
    %v182 = vld [vmem:[#allocation5 + $0x170] sm:$0xff]
    %v183 = vld [vmem:[#allocation5 + $0x178] sm:$0xff]
    %v184 = vld [vmem:[#allocation5 + $0x180] sm:$0xff]
    %v185 = vld [vmem:[#allocation5 + $0x188] sm:$0xff]
    %v186 = vld [vmem:[#allocation5 + $0x190] sm:$0xff]
    %v187 = vld [vmem:[#allocation5 + $0x198] sm:$0xff]
    %v188 = vld [vmem:[#allocation5 + $0x1a0] sm:$0xff]
    %v189 = vld [vmem:[#allocation5 + $0x1a8] sm:$0xff]
    %v190 = vld [vmem:[#allocation5 + $0x1b0] sm:$0xff]
    %v191 = vld [vmem:[#allocation5 + $0x1b8] sm:$0xff]
    %v192 = vld [vmem:[#allocation5 + $0x1c0] sm:$0xff]
    %v193 = vld [vmem:[#allocation5 + $0x1c8] sm:$0xff]
    %v194 = vld [vmem:[#allocation5 + $0x1d0] sm:$0xff]
    %v195 = vld [vmem:[#allocation5 + $0x1d8] sm:$0xff]
    %v196 = vld [vmem:[#allocation5 + $0x1e0] sm:$0xff]
    %v197 = vld [vmem:[#allocation5 + $0x1e8] sm:$0xff]
    %v198 = vld [vmem:[#allocation5 + $0x1f0] sm:$0xff]
    %v199 = vld [vmem:[#allocation5 + $0x1f8] sm:$0xff]
    %v200 = vld [vmem:[#allocation5 + $0x200] sm:$0xff]
    %v201 = vld [vmem:[#allocation5 + $0x208] sm:$0xff]
    %v202 = vld [vmem:[#allocation5 + $0x210] sm:$0xff]
    %v203 = vld [vmem:[#allocation5 + $0x218] sm:$0xff]
    %v204 = vld [vmem:[#allocation5 + $0x220] sm:$0xff]
    %v205 = vld [vmem:[#allocation5 + $0x228] sm:$0xff]
    %v206 = vld [vmem:[#allocation5 + $0x230] sm:$0xff]
    %v207 = vld [vmem:[#allocation5 + $0x238] sm:$0xff]
    %v208 = vld [vmem:[#allocation5 + $0x240] sm:$0xff]
    %v209 = vld [vmem:[#allocation5 + $0x248] sm:$0xff]
    %v210 = vld [vmem:[#allocation5 + $0x250] sm:$0xff]
    %v211 = vld [vmem:[#allocation5 + $0x258] sm:$0xff]
    %v212 = vld [vmem:[#allocation5 + $0x260] sm:$0xff]
    %v213 = vld [vmem:[#allocation5 + $0x268] sm:$0xff]
    %v214 = vld [vmem:[#allocation5 + $0x270] sm:$0xff]
    %v215 = vld [vmem:[#allocation5 + $0x278] sm:$0xff]
    %v216 = vld [vmem:[#allocation5 + $0x280] sm:$0xff]
    %v217 = vld [vmem:[#allocation5 + $0x288] sm:$0xff]
    %v218 = vld [vmem:[#allocation5 + $0x290] sm:$0xff]
    %v219 = vld [vmem:[#allocation5 + $0x298] sm:$0xff]
    %v220 = vld [vmem:[#allocation5 + $0x2a0] sm:$0xff]
    %v221 = vld [vmem:[#allocation5 + $0x2a8] sm:$0xff]
    %v222 = vld [vmem:[#allocation5 + $0x2b0] sm:$0xff]
    %v223 = vld [vmem:[#allocation5 + $0x2b8] sm:$0xff]
    %v224 = vld [vmem:[#allocation5 + $0x2c0] sm:$0xff]
    %v225 = vld [vmem:[#allocation5 + $0x2c8] sm:$0xff]
    %v226 = vld [vmem:[#allocation5 + $0x2d0] sm:$0xff]
    %v227 = vld [vmem:[#allocation5 + $0x2d8] sm:$0xff]
    %v228 = vld [vmem:[#allocation5 + $0x2e0] sm:$0xff]
    %v229 = vld [vmem:[#allocation5 + $0x2e8] sm:$0xff]
    %v230 = vld [vmem:[#allocation5 + $0x2f0] sm:$0xff]
    %v231 = vld [vmem:[#allocation5 + $0x2f8] sm:$0xff]
    %v232 = vld [vmem:[#allocation5 + $0x300] sm:$0xff]
    %v233 = vld [vmem:[#allocation5 + $0x308] sm:$0xff]
    %v234 = vld [vmem:[#allocation5 + $0x310] sm:$0xff]
    %v235 = vld [vmem:[#allocation5 + $0x318] sm:$0xff]
    %v236 = vld [vmem:[#allocation5 + $0x320] sm:$0xff]
    %v237 = vld [vmem:[#allocation5 + $0x328] sm:$0xff]
    %v238 = vld [vmem:[#allocation5 + $0x330] sm:$0xff]
    %v239 = vld [vmem:[#allocation5 + $0x338] sm:$0xff]
    %v240 = vld [vmem:[#allocation5 + $0x340] sm:$0xff]
    %v241 = vld [vmem:[#allocation5 + $0x348] sm:$0xff]
    %v242 = vld [vmem:[#allocation5 + $0x350] sm:$0xff]
    %v243 = vld [vmem:[#allocation5 + $0x358] sm:$0xff]
    %v244 = vld [vmem:[#allocation5 + $0x360] sm:$0xff]
    %v245 = vld [vmem:[#allocation5 + $0x368] sm:$0xff]
    %v246 = vld [vmem:[#allocation5 + $0x370] sm:$0xff]
    %v247 = vld [vmem:[#allocation5 + $0x378] sm:$0xff]
    %v248 = vld [vmem:[#allocation5 + $0x380] sm:$0xff]
    %v249 = vld [vmem:[#allocation5 + $0x388] sm:$0xff]
    %v250 = vld [vmem:[#allocation5 + $0x390] sm:$0xff]
    %v251 = vld [vmem:[#allocation5 + $0x398] sm:$0xff]
    %v252 = vld [vmem:[#allocation5 + $0x3a0] sm:$0xff]
    %v253 = vld [vmem:[#allocation5 + $0x3a8] sm:$0xff]
    %v254 = vld [vmem:[#allocation5 + $0x3b0] sm:$0xff]
    %v255 = vld [vmem:[#allocation5 + $0x3b8] sm:$0xff]
    %v256 = vld [vmem:[#allocation5 + $0x3c0] sm:$0xff]
    %v257 = vld [vmem:[#allocation5 + $0x3c8] sm:$0xff]
    %v258 = vld [vmem:[#allocation5 + $0x3d0] sm:$0xff]
    %v259 = vld [vmem:[#allocation5 + $0x3d8] sm:$0xff]
    %v260 = vld [vmem:[#allocation5 + $0x3e0] sm:$0xff]
    %v261 = vld [vmem:[#allocation5 + $0x3e8] sm:$0xff]
    %v262 = vld [vmem:[#allocation5 + $0x3f0] sm:$0xff]
    %v263 = vld [vmem:[#allocation5 + $0x3f8] sm:$0xff]
    %v264 = vld [vmem:[#allocation5 + $0x400] sm:$0xff]
    %v265 = vld [vmem:[#allocation5 + $0x408] sm:$0xff]
    %v266 = vld [vmem:[#allocation5 + $0x410] sm:$0xff]
    %v267 = vld [vmem:[#allocation5 + $0x418] sm:$0xff]
    %v268 = vld [vmem:[#allocation5 + $0x420] sm:$0xff]
    %v269 = vld [vmem:[#allocation5 + $0x428] sm:$0xff]
    %v270 = vld [vmem:[#allocation5 + $0x430] sm:$0xff]
    %v271 = vld [vmem:[#allocation5 + $0x438] sm:$0xff]
    %v272 = vld [vmem:[#allocation5 + $0x440] sm:$0xff]
    %v273 = vld [vmem:[#allocation5 + $0x448] sm:$0xff]
    %v274 = vld [vmem:[#allocation5 + $0x450] sm:$0xff]
    %v275 = vld [vmem:[#allocation5 + $0x458] sm:$0xff]
    %v276 = vld [vmem:[#allocation5 + $0x460] sm:$0xff]
    %v277 = vld [vmem:[#allocation5 + $0x468] sm:$0xff]
    %v278 = vld [vmem:[#allocation5 + $0x470] sm:$0xff]
    %v279 = vld [vmem:[#allocation5 + $0x478] sm:$0xff]
    %v280 = vld [vmem:[#allocation5 + $0x480] sm:$0xff]
    %v281 = vld [vmem:[#allocation5 + $0x488] sm:$0xff]
    %v282 = vld [vmem:[#allocation5 + $0x490] sm:$0xff]
    %v283 = vld [vmem:[#allocation5 + $0x498] sm:$0xff]
    %v284 = vld [vmem:[#allocation5 + $0x4a0] sm:$0xff]
    %v285 = vld [vmem:[#allocation5 + $0x4a8] sm:$0xff]
    %v286 = vld [vmem:[#allocation5 + $0x4b0] sm:$0xff]
    %v287 = vld [vmem:[#allocation5 + $0x4b8] sm:$0xff]
    %v288 = vld [vmem:[#allocation5 + $0x4c0] sm:$0xff]
    %v289 = vld [vmem:[#allocation5 + $0x4c8] sm:$0xff]
    %v290 = vld [vmem:[#allocation5 + $0x4d0] sm:$0xff]
    %v291 = vld [vmem:[#allocation5 + $0x4d8] sm:$0xff]
    %v292 = vld [vmem:[#allocation5 + $0x4e0] sm:$0xff]
    %v293 = vld [vmem:[#allocation5 + $0x4e8] sm:$0xff]
    %v294 = vld [vmem:[#allocation5 + $0x4f0] sm:$0xff]
    %v295 = vld [vmem:[#allocation5 + $0x4f8] sm:$0xff]
    %v296 = vld [vmem:[#allocation5 + $0x500] sm:$0xff]
    %v297 = vld [vmem:[#allocation5 + $0x508] sm:$0xff]
    %v298 = vld [vmem:[#allocation5 + $0x510] sm:$0xff]
    %v299 = vld [vmem:[#allocation5 + $0x518] sm:$0xff]
    %v300 = vld [vmem:[#allocation5 + $0x520] sm:$0xff]
    %v301 = vld [vmem:[#allocation5 + $0x528] sm:$0xff]
    %v302 = vld [vmem:[#allocation5 + $0x530] sm:$0xff]
    %v303 = vld [vmem:[#allocation5 + $0x538] sm:$0xff]
    %v304 = vld [vmem:[#allocation5 + $0x540] sm:$0xff]
    %v305 = vld [vmem:[#allocation5 + $0x548] sm:$0xff]
    %v306 = vld [vmem:[#allocation5 + $0x550] sm:$0xff]
    %v307 = vld [vmem:[#allocation5 + $0x558] sm:$0xff]
    %v308 = vld [vmem:[#allocation5 + $0x560] sm:$0xff]
    %v309 = vld [vmem:[#allocation5 + $0x568] sm:$0xff]
    %v310 = vld [vmem:[#allocation5 + $0x570] sm:$0xff]
    %v311 = vld [vmem:[#allocation5 + $0x578] sm:$0xff]
    %v312 = vld [vmem:[#allocation5 + $0x580] sm:$0xff]
    %v313 = vld [vmem:[#allocation5 + $0x588] sm:$0xff]
    %v314 = vld [vmem:[#allocation5 + $0x590] sm:$0xff]
    %v315 = vld [vmem:[#allocation5 + $0x598] sm:$0xff]
    %v316 = vld [vmem:[#allocation5 + $0x5a0] sm:$0xff]
    %v317 = vld [vmem:[#allocation5 + $0x5a8] sm:$0xff]
    %v318 = vld [vmem:[#allocation5 + $0x5b0] sm:$0xff]
    %v319 = vld [vmem:[#allocation5 + $0x5b8] sm:$0xff]
    %v320 = vld [vmem:[#allocation5 + $0x5c0] sm:$0xff]
    %v321 = vld [vmem:[#allocation5 + $0x5c8] sm:$0xff]
    %v322 = vld [vmem:[#allocation5 + $0x5d0] sm:$0xff]
    %v323 = vld [vmem:[#allocation5 + $0x5d8] sm:$0xff]
    %v324 = vld [vmem:[#allocation5 + $0x5e0] sm:$0xff]
    %v325 = vld [vmem:[#allocation5 + $0x5e8] sm:$0xff]
    %v326 = vld [vmem:[#allocation5 + $0x5f0] sm:$0xff]
    %v327 = vld [vmem:[#allocation5 + $0x5f8] sm:$0xff]
    %v328 = vld [vmem:[#allocation5 + $0x600] sm:$0xff]
    %v329 = vld [vmem:[#allocation5 + $0x608] sm:$0xff]
    %v330 = vld [vmem:[#allocation5 + $0x610] sm:$0xff]
    %v331 = vld [vmem:[#allocation5 + $0x618] sm:$0xff]
    %v332 = vld [vmem:[#allocation5 + $0x620] sm:$0xff]
    %v333 = vld [vmem:[#allocation5 + $0x628] sm:$0xff]
    %v334 = vld [vmem:[#allocation5 + $0x630] sm:$0xff]
    %v335 = vld [vmem:[#allocation5 + $0x638] sm:$0xff]
    %v336 = vld [vmem:[#allocation5 + $0x640] sm:$0xff]
    %v337 = vld [vmem:[#allocation5 + $0x648] sm:$0xff]
    %v338 = vld [vmem:[#allocation5 + $0x650] sm:$0xff]
    %v339 = vld [vmem:[#allocation5 + $0x658] sm:$0xff]
    %v340 = vld [vmem:[#allocation5 + $0x660] sm:$0xff]
    %v341 = vld [vmem:[#allocation5 + $0x668] sm:$0xff]
    %v342 = vld [vmem:[#allocation5 + $0x670] sm:$0xff]
    %v343 = vld [vmem:[#allocation5 + $0x678] sm:$0xff]
    %v344 = vld [vmem:[#allocation5 + $0x680] sm:$0xff]
    %v345 = vld [vmem:[#allocation5 + $0x688] sm:$0xff]
    %v346 = vld [vmem:[#allocation5 + $0x690] sm:$0xff]
    %v347 = vld [vmem:[#allocation5 + $0x698] sm:$0xff]
    %v348 = vld [vmem:[#allocation5 + $0x6a0] sm:$0xff]
    %v349 = vld [vmem:[#allocation5 + $0x6a8] sm:$0xff]
    %v350 = vld [vmem:[#allocation5 + $0x6b0] sm:$0xff]
    %v351 = vld [vmem:[#allocation5 + $0x6b8] sm:$0xff]
    %v352 = vld [vmem:[#allocation5 + $0x6c0] sm:$0xff]
    %v353 = vld [vmem:[#allocation5 + $0x6c8] sm:$0xff]
    %v354 = vld [vmem:[#allocation5 + $0x6d0] sm:$0xff]
    %v355 = vld [vmem:[#allocation5 + $0x6d8] sm:$0xff]
    %v356 = vld [vmem:[#allocation5 + $0x6e0] sm:$0xff]
    %v357 = vld [vmem:[#allocation5 + $0x6e8] sm:$0xff]
    %v358 = vld [vmem:[#allocation5 + $0x6f0] sm:$0xff]
    %v359 = vld [vmem:[#allocation5 + $0x6f8] sm:$0xff]
    %v360 = vld [vmem:[#allocation5 + $0x700] sm:$0xff]
    %v361 = vld [vmem:[#allocation5 + $0x708] sm:$0xff]
    %v362 = vld [vmem:[#allocation5 + $0x710] sm:$0xff]
    %v363 = vld [vmem:[#allocation5 + $0x718] sm:$0xff]
    %v364 = vld [vmem:[#allocation5 + $0x720] sm:$0xff]
    %v365 = vld [vmem:[#allocation5 + $0x728] sm:$0xff]
    %v366 = vld [vmem:[#allocation5 + $0x730] sm:$0xff]
    %v367 = vld [vmem:[#allocation5 + $0x738] sm:$0xff]
    %v368 = vld [vmem:[#allocation5 + $0x740] sm:$0xff]
    %v369 = vld [vmem:[#allocation5 + $0x748] sm:$0xff]
    %v370 = vld [vmem:[#allocation5 + $0x750] sm:$0xff]
    %v371 = vld [vmem:[#allocation5 + $0x758] sm:$0xff]
    %v372 = vld [vmem:[#allocation5 + $0x760] sm:$0xff]
    %v373 = vld [vmem:[#allocation5 + $0x768] sm:$0xff]
    %v374 = vld [vmem:[#allocation5 + $0x770] sm:$0xff]
    %v375 = vld [vmem:[#allocation5 + $0x778] sm:$0xff]
    %v376 = vld [vmem:[#allocation5 + $0x780] sm:$0xff]
    %v377 = vld [vmem:[#allocation5 + $0x788] sm:$0xff]
    %v378 = vld [vmem:[#allocation5 + $0x790] sm:$0xff]
    %v379 = vld [vmem:[#allocation5 + $0x798] sm:$0xff]
    %v380 = vld [vmem:[#allocation5 + $0x7a0] sm:$0xff]
    %v381 = vld [vmem:[#allocation5 + $0x7a8] sm:$0xff]
    %v382 = vld [vmem:[#allocation5 + $0x7b0] sm:$0xff]
    %v383 = vld [vmem:[#allocation5 + $0x7b8] sm:$0xff]
    %v384 = vld [vmem:[#allocation5 + $0x7c0] sm:$0xff]
    %v385 = vld [vmem:[#allocation5 + $0x7c8] sm:$0xff]
    %v386 = vld [vmem:[#allocation5 + $0x7d0] sm:$0xff]
    %v387 = vld [vmem:[#allocation5 + $0x7d8] sm:$0xff]
    %v388 = vld [vmem:[#allocation5 + $0x7e0] sm:$0xff]
    %v389 = vld [vmem:[#allocation5 + $0x7e8] sm:$0xff]
    %v390 = vld [vmem:[#allocation5 + $0x7f0] sm:$0xff]
    %v391 = vld [vmem:[#allocation5 + $0x7f8] sm:$0xff]
    %v392 = vld [vmem:[#allocation5 + $0x800] sm:$0xff]
    %v393 = vld [vmem:[#allocation5 + $0x808] sm:$0xff]
    %v394 = vld [vmem:[#allocation5 + $0x810] sm:$0xff]
    %v395 = vld [vmem:[#allocation5 + $0x818] sm:$0xff]
    %v396 = vld [vmem:[#allocation5 + $0x820] sm:$0xff]
    %v397 = vld [vmem:[#allocation5 + $0x828] sm:$0xff]
    %v398 = vld [vmem:[#allocation5 + $0x830] sm:$0xff]
    %v399 = vld [vmem:[#allocation5 + $0x838] sm:$0xff]
    %v400 = vld [vmem:[#allocation5 + $0x840] sm:$0xff]
    %v401 = vld [vmem:[#allocation5 + $0x848] sm:$0xff]
    %v402 = vld [vmem:[#allocation5 + $0x850] sm:$0xff]
    %v403 = vld [vmem:[#allocation5 + $0x858] sm:$0xff]
    %v404 = vld [vmem:[#allocation5 + $0x860] sm:$0xff]
    %v405 = vld [vmem:[#allocation5 + $0x868] sm:$0xff]
    %v406 = vld [vmem:[#allocation5 + $0x870] sm:$0xff]
    %v407 = vld [vmem:[#allocation5 + $0x878] sm:$0xff]
    %v408 = vld [vmem:[#allocation5 + $0x880] sm:$0xff]
    %v409 = vld [vmem:[#allocation5 + $0x888] sm:$0xff]
    %v410 = vld [vmem:[#allocation5 + $0x890] sm:$0xff]
    %v411 = vld [vmem:[#allocation5 + $0x898] sm:$0xff]
    %v412 = vld [vmem:[#allocation5 + $0x8a0] sm:$0xff]
    %v413 = vld [vmem:[#allocation5 + $0x8a8] sm:$0xff]
    %v414 = vld [vmem:[#allocation5 + $0x8b0] sm:$0xff]
    %v415 = vld [vmem:[#allocation5 + $0x8b8] sm:$0xff]
    %v416 = vld [vmem:[#allocation5 + $0x8c0] sm:$0xff]
    %v417 = vld [vmem:[#allocation5 + $0x8c8] sm:$0xff]
    %v418 = vld [vmem:[#allocation5 + $0x8d0] sm:$0xff]
    %v419 = vld [vmem:[#allocation5 + $0x8d8] sm:$0xff]
    %v420 = vld [vmem:[#allocation5 + $0x8e0] sm:$0xff]
    %v421 = vld [vmem:[#allocation5 + $0x8e8] sm:$0xff]
    %v422 = vld [vmem:[#allocation5 + $0x8f0] sm:$0xff]
    %v423 = vld [vmem:[#allocation5 + $0x8f8] sm:$0xff]
    %v424 = vld [vmem:[#allocation5 + $0x900] sm:$0xff]
    %v425 = vld [vmem:[#allocation5 + $0x908] sm:$0xff]
    %v426 = vld [vmem:[#allocation5 + $0x910] sm:$0xff]
    %v427 = vld [vmem:[#allocation5 + $0x918] sm:$0xff]
    %v428 = vld [vmem:[#allocation5 + $0x920] sm:$0xff]
    %v429 = vld [vmem:[#allocation5 + $0x928] sm:$0xff]
    %v430 = vld [vmem:[#allocation5 + $0x930] sm:$0xff]
    %v431 = vld [vmem:[#allocation5 + $0x938] sm:$0xff]
    %v432 = vld [vmem:[#allocation5 + $0x940] sm:$0xff]
    %v433 = vld [vmem:[#allocation5 + $0x948] sm:$0xff]
    %v434 = vld [vmem:[#allocation5 + $0x950] sm:$0xff]
    %v435 = vld [vmem:[#allocation5 + $0x958] sm:$0xff]
    %v436 = vld [vmem:[#allocation5 + $0x960] sm:$0xff]
    %v437 = vld [vmem:[#allocation5 + $0x968] sm:$0xff]
    %v438 = vld [vmem:[#allocation5 + $0x970] sm:$0xff]
    %v439 = vld [vmem:[#allocation5 + $0x978] sm:$0xff]
    %v440 = vld [vmem:[#allocation5 + $0x980] sm:$0xff]
    %v441 = vld [vmem:[#allocation5 + $0x988] sm:$0xff]
    %v442 = vld [vmem:[#allocation5 + $0x990] sm:$0xff]
    %v443 = vld [vmem:[#allocation5 + $0x998] sm:$0xff]
    %v444 = vld [vmem:[#allocation5 + $0x9a0] sm:$0xff]
    %v445 = vld [vmem:[#allocation5 + $0x9a8] sm:$0xff]
    %v446 = vld [vmem:[#allocation5 + $0x9b0] sm:$0xff]
    %v447 = vld [vmem:[#allocation5 + $0x9b8] sm:$0xff]
    %v448 = vld [vmem:[#allocation5 + $0x9c0] sm:$0xff]
    %v449 = vld [vmem:[#allocation5 + $0x9c8] sm:$0xff]
    %v450 = vld [vmem:[#allocation5 + $0x9d0] sm:$0xff]
    %v451 = vld [vmem:[#allocation5 + $0x9d8] sm:$0xff]
    %v452 = vld [vmem:[#allocation5 + $0x9e0] sm:$0xff]
    %v453 = vld [vmem:[#allocation5 + $0x9e8] sm:$0xff]
    %v454 = vld [vmem:[#allocation5 + $0x9f0] sm:$0xff]
    %v455 = vld [vmem:[#allocation5 + $0x9f8] sm:$0xff]
    %v456 = vld [vmem:[#allocation5 + $0xa00] sm:$0xff]
    %v457 = vld [vmem:[#allocation5 + $0xa08] sm:$0xff]
    %v458 = vld [vmem:[#allocation5 + $0xa10] sm:$0xff]
    %v459 = vld [vmem:[#allocation5 + $0xa18] sm:$0xff]
    %v460 = vld [vmem:[#allocation5 + $0xa20] sm:$0xff]
    %v461 = vld [vmem:[#allocation5 + $0xa28] sm:$0xff]
    %v462 = vld [vmem:[#allocation5 + $0xa30] sm:$0xff]
    %v463 = vld [vmem:[#allocation5 + $0xa38] sm:$0xff]
    %v464 = vld [vmem:[#allocation5 + $0xa40] sm:$0xff]
    %v465 = vld [vmem:[#allocation5 + $0xa48] sm:$0xff]
    %v466 = vld [vmem:[#allocation5 + $0xa50] sm:$0xff]
    %v467 = vld [vmem:[#allocation5 + $0xa58] sm:$0xff]
    %v468 = vld [vmem:[#allocation5 + $0xa60] sm:$0xff]
    %v469 = vld [vmem:[#allocation5 + $0xa68] sm:$0xff]
    %v470 = vld [vmem:[#allocation5 + $0xa70] sm:$0xff]
    %v471 = vld [vmem:[#allocation5 + $0xa78] sm:$0xff]
    %v472 = vld [vmem:[#allocation5 + $0xa80] sm:$0xff]
    %v473 = vld [vmem:[#allocation5 + $0xa88] sm:$0xff]
    %v474 = vld [vmem:[#allocation5 + $0xa90] sm:$0xff]
    %v475 = vld [vmem:[#allocation5 + $0xa98] sm:$0xff]
    %v476 = vld [vmem:[#allocation5 + $0xaa0] sm:$0xff]
    %v477 = vld [vmem:[#allocation5 + $0xaa8] sm:$0xff]
    %v478 = vld [vmem:[#allocation5 + $0xab0] sm:$0xff]
    %v479 = vld [vmem:[#allocation5 + $0xab8] sm:$0xff]
    %v480 = vld [vmem:[#allocation5 + $0xac0] sm:$0xff]
    %v481 = vld [vmem:[#allocation5 + $0xac8] sm:$0xff]
    %v482 = vld [vmem:[#allocation5 + $0xad0] sm:$0xff]
    %v483 = vld [vmem:[#allocation5 + $0xad8] sm:$0xff]
    %v484 = vld [vmem:[#allocation5 + $0xae0] sm:$0xff]
    %v485 = vld [vmem:[#allocation5 + $0xae8] sm:$0xff]
    %v486 = vld [vmem:[#allocation5 + $0xaf0] sm:$0xff]
    %v487 = vld [vmem:[#allocation5 + $0xaf8] sm:$0xff]
    %v488 = vld [vmem:[#allocation5 + $0xb00] sm:$0xff]
    %v489 = vld [vmem:[#allocation5 + $0xb08] sm:$0xff]
    %v490 = vld [vmem:[#allocation5 + $0xb10] sm:$0xff]
    %v491 = vld [vmem:[#allocation5 + $0xb18] sm:$0xff]
    %v492 = vld [vmem:[#allocation5 + $0xb20] sm:$0xff]
    %v493 = vld [vmem:[#allocation5 + $0xb28] sm:$0xff]
    %v494 = vld [vmem:[#allocation5 + $0xb30] sm:$0xff]
    %v495 = vld [vmem:[#allocation5 + $0xb38] sm:$0xff]
    %v496 = vld [vmem:[#allocation5 + $0xb40] sm:$0xff]
    %v497 = vld [vmem:[#allocation5 + $0xb48] sm:$0xff]
    %v498 = vld [vmem:[#allocation5 + $0xb50] sm:$0xff]
    %v499 = vld [vmem:[#allocation5 + $0xb58] sm:$0xff]
    %v500 = vld [vmem:[#allocation5 + $0xb60] sm:$0xff]
    %v501 = vld [vmem:[#allocation5 + $0xb68] sm:$0xff]
    %v502 = vld [vmem:[#allocation5 + $0xb70] sm:$0xff]
    %v503 = vld [vmem:[#allocation5 + $0xb78] sm:$0xff]
    %v504 = vld [vmem:[#allocation5 + $0xb80] sm:$0xff]
    %v505 = vld [vmem:[#allocation5 + $0xb88] sm:$0xff]
    %v506 = vld [vmem:[#allocation5 + $0xb90] sm:$0xff]
    %v507 = vld [vmem:[#allocation5 + $0xb98] sm:$0xff]
    %v508 = vld [vmem:[#allocation5 + $0xba0] sm:$0xff]
    %v509 = vld [vmem:[#allocation5 + $0xba8] sm:$0xff]
    %v510 = vld [vmem:[#allocation5 + $0xbb0] sm:$0xff]
    %v511 = vld [vmem:[#allocation5 + $0xbb8] sm:$0xff]
    %v512 = vld [vmem:[#allocation5 + $0xbc0] sm:$0xff]
    %v513 = vld [vmem:[#allocation5 + $0xbc8] sm:$0xff]
    %v514 = vld [vmem:[#allocation5 + $0xbd0] sm:$0xff]
    %v515 = vld [vmem:[#allocation5 + $0xbd8] sm:$0xff]
    %v516 = vld [vmem:[#allocation5 + $0xbe0] sm:$0xff]
    %v517 = vld [vmem:[#allocation5 + $0xbe8] sm:$0xff]
    %v518 = vld [vmem:[#allocation5 + $0xbf0] sm:$0xff]
    %v519 = vld [vmem:[#allocation5 + $0xbf8] sm:$0xff]
    %v520 = vld [vmem:[#allocation5 + $0xc00] sm:$0xff]
    %v521 = vld [vmem:[#allocation5 + $0xc08] sm:$0xff]
    %v522 = vld [vmem:[#allocation5 + $0xc10] sm:$0xff]
    %v523 = vld [vmem:[#allocation5 + $0xc18] sm:$0xff]
    %v524 = vld [vmem:[#allocation5 + $0xc20] sm:$0xff]
    %v525 = vld [vmem:[#allocation5 + $0xc28] sm:$0xff]
    %v526 = vld [vmem:[#allocation5 + $0xc30] sm:$0xff]
    %v527 = vld [vmem:[#allocation5 + $0xc38] sm:$0xff]
    %v528 = vld [vmem:[#allocation7] sm:$0xff]
    %v530 = vlaneseq
    %v531 = vshrl.u32 %v530, 7
    %v532 = vsub.s32 0, %v531
    %v533 = vrot.slane %v528, %v532
    %v534 = vlaneseq
    %v535 = vshrl.u32 %v534, 7
    %v536 = vsub.s32 1, %v535
    %v537 = vrot.slane %v528, %v536
    %v538 = vlaneseq
    %v539 = vshrl.u32 %v538, 7
    %v540 = vsub.s32 2, %v539
    %v541 = vrot.slane %v528, %v540
    %v542 = vlaneseq
    %v543 = vshrl.u32 %v542, 7
    %v544 = vsub.s32 3, %v543
    %v545 = vrot.slane %v528, %v544
    %v546 = vlaneseq
    %v547 = vshrl.u32 %v546, 7
    %v548 = vsub.s32 4, %v547
    %v549 = vrot.slane %v528, %v548
    %v550 = vlaneseq
    %v551 = vshrl.u32 %v550, 7
    %v552 = vsub.s32 5, %v551
    %v553 = vrot.slane %v528, %v552
    %v554 = vlaneseq
    %v555 = vshrl.u32 %v554, 7
    %v556 = vsub.s32 6, %v555
    %v557 = vrot.slane %v528, %v556
    %v558 = vlaneseq
    %v559 = vshrl.u32 %v558, 7
    %v560 = vsub.s32 7, %v559
    %v561 = vrot.slane %v528, %v560
    %v962 = vunpack.c.l.b16 %v136
    %v963 = vunpack.c.h.b16 %v136
    %v964 = vunpack.c.l.b16 %v137
    %v965 = vunpack.c.h.b16 %v137
    %v966 = vunpack.c.l.b16 %v138
    %v967 = vunpack.c.h.b16 %v138
    %v968 = vunpack.c.l.b16 %v139
    %v969 = vunpack.c.h.b16 %v139
    %v970 = vunpack.c.l.b16 %v140
    %v971 = vunpack.c.h.b16 %v140
    %v972 = vunpack.c.l.b16 %v141
    %v973 = vunpack.c.h.b16 %v141
    %v974 = vunpack.c.l.b16 %v142
    %v975 = vunpack.c.h.b16 %v142
    %v976 = vunpack.c.l.b16 %v143
    %v977 = vunpack.c.h.b16 %v143
    %v978 = vunpack.c.l.b16 %v144
    %v979 = vunpack.c.h.b16 %v144
    %v980 = vunpack.c.l.b16 %v145
    %v981 = vunpack.c.h.b16 %v145
    %v982 = vunpack.c.l.b16 %v146
    %v983 = vunpack.c.h.b16 %v146
    %v984 = vunpack.c.l.b16 %v147
    %v985 = vunpack.c.h.b16 %v147
    %v986 = vunpack.c.l.b16 %v148
    %v987 = vunpack.c.h.b16 %v148
    %v988 = vunpack.c.l.b16 %v149
    %v989 = vunpack.c.h.b16 %v149
    %v990 = vunpack.c.l.b16 %v150
    %v991 = vunpack.c.h.b16 %v150
    %v992 = vunpack.c.l.b16 %v151
    %v993 = vunpack.c.h.b16 %v151
    %v994 = vunpack.c.l.b16 %v152
    %v995 = vunpack.c.h.b16 %v152
    %v996 = vunpack.c.l.b16 %v153
    %v997 = vunpack.c.h.b16 %v153
    %v998 = vunpack.c.l.b16 %v154
    %v999 = vunpack.c.h.b16 %v154
    %v1000 = vunpack.c.l.b16 %v155
    %v1001 = vunpack.c.h.b16 %v155
    %v1002 = vunpack.c.l.b16 %v156
    %v1003 = vunpack.c.h.b16 %v156
    %v1004 = vunpack.c.l.b16 %v157
    %v1005 = vunpack.c.h.b16 %v157
    %v1006 = vunpack.c.l.b16 %v158
    %v1007 = vunpack.c.h.b16 %v158
    %v1008 = vunpack.c.l.b16 %v159
    %v1009 = vunpack.c.h.b16 %v159
    %v1010 = vunpack.c.l.b16 %v160
    %v1011 = vunpack.c.h.b16 %v160
    %v1012 = vunpack.c.l.b16 %v161
    %v1013 = vunpack.c.h.b16 %v161
    %v1014 = vunpack.c.l.b16 %v162
    %v1015 = vunpack.c.h.b16 %v162
    %v1016 = vunpack.c.l.b16 %v163
    %v1017 = vunpack.c.h.b16 %v163
    %v1018 = vunpack.c.l.b16 %v164
    %v1019 = vunpack.c.h.b16 %v164
    %v1020 = vunpack.c.l.b16 %v165
    %v1021 = vunpack.c.h.b16 %v165
    %v1022 = vunpack.c.l.b16 %v166
    %v1023 = vunpack.c.h.b16 %v166
    %v1024 = vunpack.c.l.b16 %v167
    %v1025 = vunpack.c.h.b16 %v167
    %v1026 = vunpack.c.l.b16 %v168
    %v1027 = vunpack.c.h.b16 %v168
    %v1028 = vunpack.c.l.b16 %v169
    %v1029 = vunpack.c.h.b16 %v169
    %v1030 = vunpack.c.l.b16 %v170
    %v1031 = vunpack.c.h.b16 %v170
    %v1032 = vunpack.c.l.b16 %v171
    %v1033 = vunpack.c.h.b16 %v171
    %v1034 = vunpack.c.l.b16 %v172
    %v1035 = vunpack.c.h.b16 %v172
    %v1036 = vunpack.c.l.b16 %v173
    %v1037 = vunpack.c.h.b16 %v173
    %v1038 = vunpack.c.l.b16 %v174
    %v1039 = vunpack.c.h.b16 %v174
    %v1040 = vunpack.c.l.b16 %v175
    %v1041 = vunpack.c.h.b16 %v175
    %v1042 = vunpack.c.l.b16 %v176
    %v1043 = vunpack.c.h.b16 %v176
    %v1044 = vunpack.c.l.b16 %v177
    %v1045 = vunpack.c.h.b16 %v177
    %v1046 = vunpack.c.l.b16 %v178
    %v1047 = vunpack.c.h.b16 %v178
    %v1048 = vunpack.c.l.b16 %v179
    %v1049 = vunpack.c.h.b16 %v179
    %v1050 = vunpack.c.l.b16 %v180
    %v1051 = vunpack.c.h.b16 %v180
    %v1052 = vunpack.c.l.b16 %v181
    %v1053 = vunpack.c.h.b16 %v181
    %v1054 = vunpack.c.l.b16 %v182
    %v1055 = vunpack.c.h.b16 %v182
    %v1056 = vunpack.c.l.b16 %v183
    %v1057 = vunpack.c.h.b16 %v183
    %v1058 = vunpack.c.l.b16 %v184
    %v1059 = vunpack.c.h.b16 %v184
    %v1060 = vunpack.c.l.b16 %v185
    %v1061 = vunpack.c.h.b16 %v185
    %v1062 = vunpack.c.l.b16 %v186
    %v1063 = vunpack.c.h.b16 %v186
    %v1064 = vunpack.c.l.b16 %v187
    %v1065 = vunpack.c.h.b16 %v187
    %v1066 = vunpack.c.l.b16 %v188
    %v1067 = vunpack.c.h.b16 %v188
    %v1068 = vunpack.c.l.b16 %v189
    %v1069 = vunpack.c.h.b16 %v189
    %v1070 = vunpack.c.l.b16 %v190
    %v1071 = vunpack.c.h.b16 %v190
    %v1072 = vunpack.c.l.b16 %v191
    %v1073 = vunpack.c.h.b16 %v191
    %v1074 = vunpack.c.l.b16 %v192
    %v1075 = vunpack.c.h.b16 %v192
    %v1076 = vunpack.c.l.b16 %v193
    %v1077 = vunpack.c.h.b16 %v193
    %v1078 = vunpack.c.l.b16 %v194
    %v1079 = vunpack.c.h.b16 %v194
    %v1080 = vunpack.c.l.b16 %v195
    %v1081 = vunpack.c.h.b16 %v195
    %v1082 = vunpack.c.l.b16 %v196
    %v1083 = vunpack.c.h.b16 %v196
    %v1084 = vunpack.c.l.b16 %v197
    %v1085 = vunpack.c.h.b16 %v197
    %v1086 = vunpack.c.l.b16 %v198
    %v1087 = vunpack.c.h.b16 %v198
    %v1088 = vunpack.c.l.b16 %v199
    %v1089 = vunpack.c.h.b16 %v199
    %v1090 = vunpack.c.l.b16 %v200
    %v1091 = vunpack.c.h.b16 %v200
    %v1092 = vunpack.c.l.b16 %v201
    %v1093 = vunpack.c.h.b16 %v201
    %v1094 = vunpack.c.l.b16 %v202
    %v1095 = vunpack.c.h.b16 %v202
    %v1096 = vunpack.c.l.b16 %v203
    %v1097 = vunpack.c.h.b16 %v203
    %v1098 = vunpack.c.l.b16 %v204
    %v1099 = vunpack.c.h.b16 %v204
    %v1100 = vunpack.c.l.b16 %v205
    %v1101 = vunpack.c.h.b16 %v205
    %v1102 = vunpack.c.l.b16 %v206
    %v1103 = vunpack.c.h.b16 %v206
    %v1104 = vunpack.c.l.b16 %v207
    %v1105 = vunpack.c.h.b16 %v207
    %v1106 = vunpack.c.l.b16 %v208
    %v1107 = vunpack.c.h.b16 %v208
    %v1108 = vunpack.c.l.b16 %v209
    %v1109 = vunpack.c.h.b16 %v209
    %v1110 = vunpack.c.l.b16 %v210
    %v1111 = vunpack.c.h.b16 %v210
    %v1112 = vunpack.c.l.b16 %v211
    %v1113 = vunpack.c.h.b16 %v211
    %v1114 = vunpack.c.l.b16 %v212
    %v1115 = vunpack.c.h.b16 %v212
    %v1116 = vunpack.c.l.b16 %v213
    %v1117 = vunpack.c.h.b16 %v213
    %v1118 = vunpack.c.l.b16 %v214
    %v1119 = vunpack.c.h.b16 %v214
    %v1120 = vunpack.c.l.b16 %v215
    %v1121 = vunpack.c.h.b16 %v215
    %v1122 = vunpack.c.l.b16 %v216
    %v1123 = vunpack.c.h.b16 %v216
    %v1124 = vunpack.c.l.b16 %v217
    %v1125 = vunpack.c.h.b16 %v217
    %v1126 = vunpack.c.l.b16 %v218
    %v1127 = vunpack.c.h.b16 %v218
    %v1128 = vunpack.c.l.b16 %v219
    %v1129 = vunpack.c.h.b16 %v219
    %v1130 = vunpack.c.l.b16 %v220
    %v1131 = vunpack.c.h.b16 %v220
    %v1132 = vunpack.c.l.b16 %v221
    %v1133 = vunpack.c.h.b16 %v221
    %v1134 = vunpack.c.l.b16 %v222
    %v1135 = vunpack.c.h.b16 %v222
    %v1136 = vunpack.c.l.b16 %v223
    %v1137 = vunpack.c.h.b16 %v223
    %v1138 = vunpack.c.l.b16 %v224
    %v1139 = vunpack.c.h.b16 %v224
    %v1140 = vunpack.c.l.b16 %v225
    %v1141 = vunpack.c.h.b16 %v225
    %v1142 = vunpack.c.l.b16 %v226
    %v1143 = vunpack.c.h.b16 %v226
    %v1144 = vunpack.c.l.b16 %v227
    %v1145 = vunpack.c.h.b16 %v227
    %v1146 = vunpack.c.l.b16 %v228
    %v1147 = vunpack.c.h.b16 %v228
    %v1148 = vunpack.c.l.b16 %v229
    %v1149 = vunpack.c.h.b16 %v229
    %v1150 = vunpack.c.l.b16 %v230
    %v1151 = vunpack.c.h.b16 %v230
    %v1152 = vunpack.c.l.b16 %v231
    %v1153 = vunpack.c.h.b16 %v231
    %v1154 = vunpack.c.l.b16 %v232
    %v1155 = vunpack.c.h.b16 %v232
    %v1156 = vunpack.c.l.b16 %v233
    %v1157 = vunpack.c.h.b16 %v233
    %v1158 = vunpack.c.l.b16 %v234
    %v1159 = vunpack.c.h.b16 %v234
    %v1160 = vunpack.c.l.b16 %v235
    %v1161 = vunpack.c.h.b16 %v235
    %v1162 = vunpack.c.l.b16 %v236
    %v1163 = vunpack.c.h.b16 %v236
    %v1164 = vunpack.c.l.b16 %v237
    %v1165 = vunpack.c.h.b16 %v237
    %v1166 = vunpack.c.l.b16 %v238
    %v1167 = vunpack.c.h.b16 %v238
    %v1168 = vunpack.c.l.b16 %v239
    %v1169 = vunpack.c.h.b16 %v239
    %v1170 = vunpack.c.l.b16 %v240
    %v1171 = vunpack.c.h.b16 %v240
    %v1172 = vunpack.c.l.b16 %v241
    %v1173 = vunpack.c.h.b16 %v241
    %v1174 = vunpack.c.l.b16 %v242
    %v1175 = vunpack.c.h.b16 %v242
    %v1176 = vunpack.c.l.b16 %v243
    %v1177 = vunpack.c.h.b16 %v243
    %v1178 = vunpack.c.l.b16 %v244
    %v1179 = vunpack.c.h.b16 %v244
    %v1180 = vunpack.c.l.b16 %v245
    %v1181 = vunpack.c.h.b16 %v245
    %v1182 = vunpack.c.l.b16 %v246
    %v1183 = vunpack.c.h.b16 %v246
    %v1184 = vunpack.c.l.b16 %v247
    %v1185 = vunpack.c.h.b16 %v247
    %v1186 = vunpack.c.l.b16 %v248
    %v1187 = vunpack.c.h.b16 %v248
    %v1188 = vunpack.c.l.b16 %v249
    %v1189 = vunpack.c.h.b16 %v249
    %v1190 = vunpack.c.l.b16 %v250
    %v1191 = vunpack.c.h.b16 %v250
    %v1192 = vunpack.c.l.b16 %v251
    %v1193 = vunpack.c.h.b16 %v251
    %v1194 = vunpack.c.l.b16 %v252
    %v1195 = vunpack.c.h.b16 %v252
    %v1196 = vunpack.c.l.b16 %v253
    %v1197 = vunpack.c.h.b16 %v253
    %v1198 = vunpack.c.l.b16 %v254
    %v1199 = vunpack.c.h.b16 %v254
    %v1200 = vunpack.c.l.b16 %v255
    %v1201 = vunpack.c.h.b16 %v255
    %v1202 = vunpack.c.l.b16 %v256
    %v1203 = vunpack.c.h.b16 %v256
    %v1204 = vunpack.c.l.b16 %v257
    %v1205 = vunpack.c.h.b16 %v257
    %v1206 = vunpack.c.l.b16 %v258
    %v1207 = vunpack.c.h.b16 %v258
    %v1208 = vunpack.c.l.b16 %v259
    %v1209 = vunpack.c.h.b16 %v259
    %v1210 = vunpack.c.l.b16 %v260
    %v1211 = vunpack.c.h.b16 %v260
    %v1212 = vunpack.c.l.b16 %v261
    %v1213 = vunpack.c.h.b16 %v261
    %v1214 = vunpack.c.l.b16 %v262
    %v1215 = vunpack.c.h.b16 %v262
    %v1216 = vunpack.c.l.b16 %v263
    %v1217 = vunpack.c.h.b16 %v263
    %v1218 = vunpack.c.l.b16 %v264
    %v1219 = vunpack.c.h.b16 %v264
    %v1220 = vunpack.c.l.b16 %v265
    %v1221 = vunpack.c.h.b16 %v265
    %v1222 = vunpack.c.l.b16 %v266
    %v1223 = vunpack.c.h.b16 %v266
    %v1224 = vunpack.c.l.b16 %v267
    %v1225 = vunpack.c.h.b16 %v267
    %v1226 = vunpack.c.l.b16 %v268
    %v1227 = vunpack.c.h.b16 %v268
    %v1228 = vunpack.c.l.b16 %v269
    %v1229 = vunpack.c.h.b16 %v269
    %v1230 = vunpack.c.l.b16 %v270
    %v1231 = vunpack.c.h.b16 %v270
    %v1232 = vunpack.c.l.b16 %v271
    %v1233 = vunpack.c.h.b16 %v271
    %v1234 = vunpack.c.l.b16 %v272
    %v1235 = vunpack.c.h.b16 %v272
    %v1236 = vunpack.c.l.b16 %v273
    %v1237 = vunpack.c.h.b16 %v273
    %v1238 = vunpack.c.l.b16 %v274
    %v1239 = vunpack.c.h.b16 %v274
    %v1240 = vunpack.c.l.b16 %v275
    %v1241 = vunpack.c.h.b16 %v275
    %v1242 = vunpack.c.l.b16 %v276
    %v1243 = vunpack.c.h.b16 %v276
    %v1244 = vunpack.c.l.b16 %v277
    %v1245 = vunpack.c.h.b16 %v277
    %v1246 = vunpack.c.l.b16 %v278
    %v1247 = vunpack.c.h.b16 %v278
    %v1248 = vunpack.c.l.b16 %v279
    %v1249 = vunpack.c.h.b16 %v279
    %v1250 = vunpack.c.l.b16 %v280
    %v1251 = vunpack.c.h.b16 %v280
    %v1252 = vunpack.c.l.b16 %v281
    %v1253 = vunpack.c.h.b16 %v281
    %v1254 = vunpack.c.l.b16 %v282
    %v1255 = vunpack.c.h.b16 %v282
    %v1256 = vunpack.c.l.b16 %v283
    %v1257 = vunpack.c.h.b16 %v283
    %v1258 = vunpack.c.l.b16 %v284
    %v1259 = vunpack.c.h.b16 %v284
    %v1260 = vunpack.c.l.b16 %v285
    %v1261 = vunpack.c.h.b16 %v285
    %v1262 = vunpack.c.l.b16 %v286
    %v1263 = vunpack.c.h.b16 %v286
    %v1264 = vunpack.c.l.b16 %v287
    %v1265 = vunpack.c.h.b16 %v287
    %v1266 = vunpack.c.l.b16 %v288
    %v1267 = vunpack.c.h.b16 %v288
    %v1268 = vunpack.c.l.b16 %v289
    %v1269 = vunpack.c.h.b16 %v289
    %v1270 = vunpack.c.l.b16 %v290
    %v1271 = vunpack.c.h.b16 %v290
    %v1272 = vunpack.c.l.b16 %v291
    %v1273 = vunpack.c.h.b16 %v291
    %v1274 = vunpack.c.l.b16 %v292
    %v1275 = vunpack.c.h.b16 %v292
    %v1276 = vunpack.c.l.b16 %v293
    %v1277 = vunpack.c.h.b16 %v293
    %v1278 = vunpack.c.l.b16 %v294
    %v1279 = vunpack.c.h.b16 %v294
    %v1280 = vunpack.c.l.b16 %v295
    %v1281 = vunpack.c.h.b16 %v295
    %v1282 = vunpack.c.l.b16 %v296
    %v1283 = vunpack.c.h.b16 %v296
    %v1284 = vunpack.c.l.b16 %v297
    %v1285 = vunpack.c.h.b16 %v297
    %v1286 = vunpack.c.l.b16 %v298
    %v1287 = vunpack.c.h.b16 %v298
    %v1288 = vunpack.c.l.b16 %v299
    %v1289 = vunpack.c.h.b16 %v299
    %v1290 = vunpack.c.l.b16 %v300
    %v1291 = vunpack.c.h.b16 %v300
    %v1292 = vunpack.c.l.b16 %v301
    %v1293 = vunpack.c.h.b16 %v301
    %v1294 = vunpack.c.l.b16 %v302
    %v1295 = vunpack.c.h.b16 %v302
    %v1296 = vunpack.c.l.b16 %v303
    %v1297 = vunpack.c.h.b16 %v303
    %v1298 = vunpack.c.l.b16 %v304
    %v1299 = vunpack.c.h.b16 %v304
    %v1300 = vunpack.c.l.b16 %v305
    %v1301 = vunpack.c.h.b16 %v305
    %v1302 = vunpack.c.l.b16 %v306
    %v1303 = vunpack.c.h.b16 %v306
    %v1304 = vunpack.c.l.b16 %v307
    %v1305 = vunpack.c.h.b16 %v307
    %v1306 = vunpack.c.l.b16 %v308
    %v1307 = vunpack.c.h.b16 %v308
    %v1308 = vunpack.c.l.b16 %v309
    %v1309 = vunpack.c.h.b16 %v309
    %v1310 = vunpack.c.l.b16 %v310
    %v1311 = vunpack.c.h.b16 %v310
    %v1312 = vunpack.c.l.b16 %v311
    %v1313 = vunpack.c.h.b16 %v311
    %v1314 = vunpack.c.l.b16 %v312
    %v1315 = vunpack.c.h.b16 %v312
    %v1316 = vunpack.c.l.b16 %v313
    %v1317 = vunpack.c.h.b16 %v313
    %v1318 = vunpack.c.l.b16 %v314
    %v1319 = vunpack.c.h.b16 %v314
    %v1320 = vunpack.c.l.b16 %v315
    %v1321 = vunpack.c.h.b16 %v315
    %v1322 = vunpack.c.l.b16 %v316
    %v1323 = vunpack.c.h.b16 %v316
    %v1324 = vunpack.c.l.b16 %v317
    %v1325 = vunpack.c.h.b16 %v317
    %v1326 = vunpack.c.l.b16 %v318
    %v1327 = vunpack.c.h.b16 %v318
    %v1328 = vunpack.c.l.b16 %v319
    %v1329 = vunpack.c.h.b16 %v319
    %v1330 = vunpack.c.l.b16 %v320
    %v1331 = vunpack.c.h.b16 %v320
    %v1332 = vunpack.c.l.b16 %v321
    %v1333 = vunpack.c.h.b16 %v321
    %v1334 = vunpack.c.l.b16 %v322
    %v1335 = vunpack.c.h.b16 %v322
    %v1336 = vunpack.c.l.b16 %v323
    %v1337 = vunpack.c.h.b16 %v323
    %v1338 = vunpack.c.l.b16 %v324
    %v1339 = vunpack.c.h.b16 %v324
    %v1340 = vunpack.c.l.b16 %v325
    %v1341 = vunpack.c.h.b16 %v325
    %v1342 = vunpack.c.l.b16 %v326
    %v1343 = vunpack.c.h.b16 %v326
    %v1344 = vunpack.c.l.b16 %v327
    %v1345 = vunpack.c.h.b16 %v327
    %v1346 = vunpack.c.l.b16 %v328
    %v1347 = vunpack.c.h.b16 %v328
    %v1348 = vunpack.c.l.b16 %v329
    %v1349 = vunpack.c.h.b16 %v329
    %v1350 = vunpack.c.l.b16 %v330
    %v1351 = vunpack.c.h.b16 %v330
    %v1352 = vunpack.c.l.b16 %v331
    %v1353 = vunpack.c.h.b16 %v331
    %v1354 = vunpack.c.l.b16 %v332
    %v1355 = vunpack.c.h.b16 %v332
    %v1356 = vunpack.c.l.b16 %v333
    %v1357 = vunpack.c.h.b16 %v333
    %v1358 = vunpack.c.l.b16 %v334
    %v1359 = vunpack.c.h.b16 %v334
    %v1360 = vunpack.c.l.b16 %v335
    %v1361 = vunpack.c.h.b16 %v335
    %v1362 = vunpack.c.l.b16 %v336
    %v1363 = vunpack.c.h.b16 %v336
    %v1364 = vunpack.c.l.b16 %v337
    %v1365 = vunpack.c.h.b16 %v337
    %v1366 = vunpack.c.l.b16 %v338
    %v1367 = vunpack.c.h.b16 %v338
    %v1368 = vunpack.c.l.b16 %v339
    %v1369 = vunpack.c.h.b16 %v339
    %v1370 = vunpack.c.l.b16 %v340
    %v1371 = vunpack.c.h.b16 %v340
    %v1372 = vunpack.c.l.b16 %v341
    %v1373 = vunpack.c.h.b16 %v341
    %v1374 = vunpack.c.l.b16 %v342
    %v1375 = vunpack.c.h.b16 %v342
    %v1376 = vunpack.c.l.b16 %v343
    %v1377 = vunpack.c.h.b16 %v343
    %v1378 = vunpack.c.l.b16 %v344
    %v1379 = vunpack.c.h.b16 %v344
    %v1380 = vunpack.c.l.b16 %v345
    %v1381 = vunpack.c.h.b16 %v345
    %v1382 = vunpack.c.l.b16 %v346
    %v1383 = vunpack.c.h.b16 %v346
    %v1384 = vunpack.c.l.b16 %v347
    %v1385 = vunpack.c.h.b16 %v347
    %v1386 = vunpack.c.l.b16 %v348
    %v1387 = vunpack.c.h.b16 %v348
    %v1388 = vunpack.c.l.b16 %v349
    %v1389 = vunpack.c.h.b16 %v349
    %v1390 = vunpack.c.l.b16 %v350
    %v1391 = vunpack.c.h.b16 %v350
    %v1392 = vunpack.c.l.b16 %v351
    %v1393 = vunpack.c.h.b16 %v351
    %v1394 = vunpack.c.l.b16 %v352
    %v1395 = vunpack.c.h.b16 %v352
    %v1396 = vunpack.c.l.b16 %v353
    %v1397 = vunpack.c.h.b16 %v353
    %v1398 = vunpack.c.l.b16 %v354
    %v1399 = vunpack.c.h.b16 %v354
    %v1400 = vunpack.c.l.b16 %v355
    %v1401 = vunpack.c.h.b16 %v355
    %v1402 = vunpack.c.l.b16 %v356
    %v1403 = vunpack.c.h.b16 %v356
    %v1404 = vunpack.c.l.b16 %v357
    %v1405 = vunpack.c.h.b16 %v357
    %v1406 = vunpack.c.l.b16 %v358
    %v1407 = vunpack.c.h.b16 %v358
    %v1408 = vunpack.c.l.b16 %v359
    %v1409 = vunpack.c.h.b16 %v359
    %v1410 = vunpack.c.l.b16 %v360
    %v1411 = vunpack.c.h.b16 %v360
    %v1412 = vunpack.c.l.b16 %v361
    %v1413 = vunpack.c.h.b16 %v361
    %v1414 = vunpack.c.l.b16 %v362
    %v1415 = vunpack.c.h.b16 %v362
    %v1416 = vunpack.c.l.b16 %v363
    %v1417 = vunpack.c.h.b16 %v363
    %v1418 = vunpack.c.l.b16 %v364
    %v1419 = vunpack.c.h.b16 %v364
    %v1420 = vunpack.c.l.b16 %v365
    %v1421 = vunpack.c.h.b16 %v365
    %v1422 = vunpack.c.l.b16 %v366
    %v1423 = vunpack.c.h.b16 %v366
    %v1424 = vunpack.c.l.b16 %v367
    %v1425 = vunpack.c.h.b16 %v367
    %v1426 = vunpack.c.l.b16 %v368
    %v1427 = vunpack.c.h.b16 %v368
    %v1428 = vunpack.c.l.b16 %v369
    %v1429 = vunpack.c.h.b16 %v369
    %v1430 = vunpack.c.l.b16 %v370
    %v1431 = vunpack.c.h.b16 %v370
    %v1432 = vunpack.c.l.b16 %v371
    %v1433 = vunpack.c.h.b16 %v371
    %v1434 = vunpack.c.l.b16 %v372
    %v1435 = vunpack.c.h.b16 %v372
    %v1436 = vunpack.c.l.b16 %v373
    %v1437 = vunpack.c.h.b16 %v373
    %v1438 = vunpack.c.l.b16 %v374
    %v1439 = vunpack.c.h.b16 %v374
    %v1440 = vunpack.c.l.b16 %v375
    %v1441 = vunpack.c.h.b16 %v375
    %v1442 = vunpack.c.l.b16 %v376
    %v1443 = vunpack.c.h.b16 %v376
    %v1444 = vunpack.c.l.b16 %v377
    %v1445 = vunpack.c.h.b16 %v377
    %v1446 = vunpack.c.l.b16 %v378
    %v1447 = vunpack.c.h.b16 %v378
    %v1448 = vunpack.c.l.b16 %v379
    %v1449 = vunpack.c.h.b16 %v379
    %v1450 = vunpack.c.l.b16 %v380
    %v1451 = vunpack.c.h.b16 %v380
    %v1452 = vunpack.c.l.b16 %v381
    %v1453 = vunpack.c.h.b16 %v381
    %v1454 = vunpack.c.l.b16 %v382
    %v1455 = vunpack.c.h.b16 %v382
    %v1456 = vunpack.c.l.b16 %v383
    %v1457 = vunpack.c.h.b16 %v383
    %v1458 = vunpack.c.l.b16 %v384
    %v1459 = vunpack.c.h.b16 %v384
    %v1460 = vunpack.c.l.b16 %v385
    %v1461 = vunpack.c.h.b16 %v385
    %v1462 = vunpack.c.l.b16 %v386
    %v1463 = vunpack.c.h.b16 %v386
    %v1464 = vunpack.c.l.b16 %v387
    %v1465 = vunpack.c.h.b16 %v387
    %v1466 = vunpack.c.l.b16 %v388
    %v1467 = vunpack.c.h.b16 %v388
    %v1468 = vunpack.c.l.b16 %v389
    %v1469 = vunpack.c.h.b16 %v389
    %v1470 = vunpack.c.l.b16 %v390
    %v1471 = vunpack.c.h.b16 %v390
    %v1472 = vunpack.c.l.b16 %v391
    %v1473 = vunpack.c.h.b16 %v391
    %v1474 = vunpack.c.l.b16 %v392
    %v1475 = vunpack.c.h.b16 %v392
    %v1476 = vunpack.c.l.b16 %v393
    %v1477 = vunpack.c.h.b16 %v393
    %v1478 = vunpack.c.l.b16 %v394
    %v1479 = vunpack.c.h.b16 %v394
    %v1480 = vunpack.c.l.b16 %v395
    %v1481 = vunpack.c.h.b16 %v395
    %v1482 = vunpack.c.l.b16 %v396
    %v1483 = vunpack.c.h.b16 %v396
    %v1484 = vunpack.c.l.b16 %v397
    %v1485 = vunpack.c.h.b16 %v397
    %v1486 = vunpack.c.l.b16 %v398
    %v1487 = vunpack.c.h.b16 %v398
    %v1488 = vunpack.c.l.b16 %v399
    %v1489 = vunpack.c.h.b16 %v399
    %v1490 = vunpack.c.l.b16 %v400
    %v1491 = vunpack.c.h.b16 %v400
    %v1492 = vunpack.c.l.b16 %v401
    %v1493 = vunpack.c.h.b16 %v401
    %v1494 = vunpack.c.l.b16 %v402
    %v1495 = vunpack.c.h.b16 %v402
    %v1496 = vunpack.c.l.b16 %v403
    %v1497 = vunpack.c.h.b16 %v403
    %v1498 = vunpack.c.l.b16 %v404
    %v1499 = vunpack.c.h.b16 %v404
    %v1500 = vunpack.c.l.b16 %v405
    %v1501 = vunpack.c.h.b16 %v405
    %v1502 = vunpack.c.l.b16 %v406
    %v1503 = vunpack.c.h.b16 %v406
    %v1504 = vunpack.c.l.b16 %v407
    %v1505 = vunpack.c.h.b16 %v407
    %v1506 = vunpack.c.l.b16 %v408
    %v1507 = vunpack.c.h.b16 %v408
    %v1508 = vunpack.c.l.b16 %v409
    %v1509 = vunpack.c.h.b16 %v409
    %v1510 = vunpack.c.l.b16 %v410
    %v1511 = vunpack.c.h.b16 %v410
    %v1512 = vunpack.c.l.b16 %v411
    %v1513 = vunpack.c.h.b16 %v411
    %v1514 = vunpack.c.l.b16 %v412
    %v1515 = vunpack.c.h.b16 %v412
    %v1516 = vunpack.c.l.b16 %v413
    %v1517 = vunpack.c.h.b16 %v413
    %v1518 = vunpack.c.l.b16 %v414
    %v1519 = vunpack.c.h.b16 %v414
    %v1520 = vunpack.c.l.b16 %v415
    %v1521 = vunpack.c.h.b16 %v415
    %v1522 = vunpack.c.l.b16 %v416
    %v1523 = vunpack.c.h.b16 %v416
    %v1524 = vunpack.c.l.b16 %v417
    %v1525 = vunpack.c.h.b16 %v417
    %v1526 = vunpack.c.l.b16 %v418
    %v1527 = vunpack.c.h.b16 %v418
    %v1528 = vunpack.c.l.b16 %v419
    %v1529 = vunpack.c.h.b16 %v419
    %v1530 = vunpack.c.l.b16 %v420
    %v1531 = vunpack.c.h.b16 %v420
    %v1532 = vunpack.c.l.b16 %v421
    %v1533 = vunpack.c.h.b16 %v421
    %v1534 = vunpack.c.l.b16 %v422
    %v1535 = vunpack.c.h.b16 %v422
    %v1536 = vunpack.c.l.b16 %v423
    %v1537 = vunpack.c.h.b16 %v423
    %v1538 = vunpack.c.l.b16 %v424
    %v1539 = vunpack.c.h.b16 %v424
    %v1540 = vunpack.c.l.b16 %v425
    %v1541 = vunpack.c.h.b16 %v425
    %v1542 = vunpack.c.l.b16 %v426
    %v1543 = vunpack.c.h.b16 %v426
    %v1544 = vunpack.c.l.b16 %v427
    %v1545 = vunpack.c.h.b16 %v427
    %v1546 = vunpack.c.l.b16 %v428
    %v1547 = vunpack.c.h.b16 %v428
    %v1548 = vunpack.c.l.b16 %v429
    %v1549 = vunpack.c.h.b16 %v429
    %v1550 = vunpack.c.l.b16 %v430
    %v1551 = vunpack.c.h.b16 %v430
    %v1552 = vunpack.c.l.b16 %v431
    %v1553 = vunpack.c.h.b16 %v431
    %v1554 = vunpack.c.l.b16 %v432
    %v1555 = vunpack.c.h.b16 %v432
    %v1556 = vunpack.c.l.b16 %v433
    %v1557 = vunpack.c.h.b16 %v433
    %v1558 = vunpack.c.l.b16 %v434
    %v1559 = vunpack.c.h.b16 %v434
    %v1560 = vunpack.c.l.b16 %v435
    %v1561 = vunpack.c.h.b16 %v435
    %v1562 = vunpack.c.l.b16 %v436
    %v1563 = vunpack.c.h.b16 %v436
    %v1564 = vunpack.c.l.b16 %v437
    %v1565 = vunpack.c.h.b16 %v437
    %v1566 = vunpack.c.l.b16 %v438
    %v1567 = vunpack.c.h.b16 %v438
    %v1568 = vunpack.c.l.b16 %v439
    %v1569 = vunpack.c.h.b16 %v439
    %v1570 = vunpack.c.l.b16 %v440
    %v1571 = vunpack.c.h.b16 %v440
    %v1572 = vunpack.c.l.b16 %v441
    %v1573 = vunpack.c.h.b16 %v441
    %v1574 = vunpack.c.l.b16 %v442
    %v1575 = vunpack.c.h.b16 %v442
    %v1576 = vunpack.c.l.b16 %v443
    %v1577 = vunpack.c.h.b16 %v443
    %v1578 = vunpack.c.l.b16 %v444
    %v1579 = vunpack.c.h.b16 %v444
    %v1580 = vunpack.c.l.b16 %v445
    %v1581 = vunpack.c.h.b16 %v445
    %v1582 = vunpack.c.l.b16 %v446
    %v1583 = vunpack.c.h.b16 %v446
    %v1584 = vunpack.c.l.b16 %v447
    %v1585 = vunpack.c.h.b16 %v447
    %v1586 = vunpack.c.l.b16 %v448
    %v1587 = vunpack.c.h.b16 %v448
    %v1588 = vunpack.c.l.b16 %v449
    %v1589 = vunpack.c.h.b16 %v449
    %v1590 = vunpack.c.l.b16 %v450
    %v1591 = vunpack.c.h.b16 %v450
    %v1592 = vunpack.c.l.b16 %v451
    %v1593 = vunpack.c.h.b16 %v451
    %v1594 = vunpack.c.l.b16 %v452
    %v1595 = vunpack.c.h.b16 %v452
    %v1596 = vunpack.c.l.b16 %v453
    %v1597 = vunpack.c.h.b16 %v453
    %v1598 = vunpack.c.l.b16 %v454
    %v1599 = vunpack.c.h.b16 %v454
    %v1600 = vunpack.c.l.b16 %v455
    %v1601 = vunpack.c.h.b16 %v455
    %v1602 = vunpack.c.l.b16 %v456
    %v1603 = vunpack.c.h.b16 %v456
    %v1604 = vunpack.c.l.b16 %v457
    %v1605 = vunpack.c.h.b16 %v457
    %v1606 = vunpack.c.l.b16 %v458
    %v1607 = vunpack.c.h.b16 %v458
    %v1608 = vunpack.c.l.b16 %v459
    %v1609 = vunpack.c.h.b16 %v459
    %v1610 = vunpack.c.l.b16 %v460
    %v1611 = vunpack.c.h.b16 %v460
    %v1612 = vunpack.c.l.b16 %v461
    %v1613 = vunpack.c.h.b16 %v461
    %v1614 = vunpack.c.l.b16 %v462
    %v1615 = vunpack.c.h.b16 %v462
    %v1616 = vunpack.c.l.b16 %v463
    %v1617 = vunpack.c.h.b16 %v463
    %v1618 = vunpack.c.l.b16 %v464
    %v1619 = vunpack.c.h.b16 %v464
    %v1620 = vunpack.c.l.b16 %v465
    %v1621 = vunpack.c.h.b16 %v465
    %v1622 = vunpack.c.l.b16 %v466
    %v1623 = vunpack.c.h.b16 %v466
    %v1624 = vunpack.c.l.b16 %v467
    %v1625 = vunpack.c.h.b16 %v467
    %v1626 = vunpack.c.l.b16 %v468
    %v1627 = vunpack.c.h.b16 %v468
    %v1628 = vunpack.c.l.b16 %v469
    %v1629 = vunpack.c.h.b16 %v469
    %v1630 = vunpack.c.l.b16 %v470
    %v1631 = vunpack.c.h.b16 %v470
    %v1632 = vunpack.c.l.b16 %v471
    %v1633 = vunpack.c.h.b16 %v471
    %v1634 = vunpack.c.l.b16 %v472
    %v1635 = vunpack.c.h.b16 %v472
    %v1636 = vunpack.c.l.b16 %v473
    %v1637 = vunpack.c.h.b16 %v473
    %v1638 = vunpack.c.l.b16 %v474
    %v1639 = vunpack.c.h.b16 %v474
    %v1640 = vunpack.c.l.b16 %v475
    %v1641 = vunpack.c.h.b16 %v475
    %v1642 = vunpack.c.l.b16 %v476
    %v1643 = vunpack.c.h.b16 %v476
    %v1644 = vunpack.c.l.b16 %v477
    %v1645 = vunpack.c.h.b16 %v477
    %v1646 = vunpack.c.l.b16 %v478
    %v1647 = vunpack.c.h.b16 %v478
    %v1648 = vunpack.c.l.b16 %v479
    %v1649 = vunpack.c.h.b16 %v479
    %v1650 = vunpack.c.l.b16 %v480
    %v1651 = vunpack.c.h.b16 %v480
    %v1652 = vunpack.c.l.b16 %v481
    %v1653 = vunpack.c.h.b16 %v481
    %v1654 = vunpack.c.l.b16 %v482
    %v1655 = vunpack.c.h.b16 %v482
    %v1656 = vunpack.c.l.b16 %v483
    %v1657 = vunpack.c.h.b16 %v483
    %v1658 = vunpack.c.l.b16 %v484
    %v1659 = vunpack.c.h.b16 %v484
    %v1660 = vunpack.c.l.b16 %v485
    %v1661 = vunpack.c.h.b16 %v485
    %v1662 = vunpack.c.l.b16 %v486
    %v1663 = vunpack.c.h.b16 %v486
    %v1664 = vunpack.c.l.b16 %v487
    %v1665 = vunpack.c.h.b16 %v487
    %v1666 = vunpack.c.l.b16 %v488
    %v1667 = vunpack.c.h.b16 %v488
    %v1668 = vunpack.c.l.b16 %v489
    %v1669 = vunpack.c.h.b16 %v489
    %v1670 = vunpack.c.l.b16 %v490
    %v1671 = vunpack.c.h.b16 %v490
    %v1672 = vunpack.c.l.b16 %v491
    %v1673 = vunpack.c.h.b16 %v491
    %v1674 = vunpack.c.l.b16 %v492
    %v1675 = vunpack.c.h.b16 %v492
    %v1676 = vunpack.c.l.b16 %v493
    %v1677 = vunpack.c.h.b16 %v493
    %v1678 = vunpack.c.l.b16 %v494
    %v1679 = vunpack.c.h.b16 %v494
    %v1680 = vunpack.c.l.b16 %v495
    %v1681 = vunpack.c.h.b16 %v495
    %v1682 = vunpack.c.l.b16 %v496
    %v1683 = vunpack.c.h.b16 %v496
    %v1684 = vunpack.c.l.b16 %v497
    %v1685 = vunpack.c.h.b16 %v497
    %v1686 = vunpack.c.l.b16 %v498
    %v1687 = vunpack.c.h.b16 %v498
    %v1688 = vunpack.c.l.b16 %v499
    %v1689 = vunpack.c.h.b16 %v499
    %v1690 = vunpack.c.l.b16 %v500
    %v1691 = vunpack.c.h.b16 %v500
    %v1692 = vunpack.c.l.b16 %v501
    %v1693 = vunpack.c.h.b16 %v501
    %v1694 = vunpack.c.l.b16 %v502
    %v1695 = vunpack.c.h.b16 %v502
    %v1696 = vunpack.c.l.b16 %v503
    %v1697 = vunpack.c.h.b16 %v503
    %v1698 = vunpack.c.l.b16 %v504
    %v1699 = vunpack.c.h.b16 %v504
    %v1700 = vunpack.c.l.b16 %v505
    %v1701 = vunpack.c.h.b16 %v505
    %v1702 = vunpack.c.l.b16 %v506
    %v1703 = vunpack.c.h.b16 %v506
    %v1704 = vunpack.c.l.b16 %v507
    %v1705 = vunpack.c.h.b16 %v507
    %v1706 = vunpack.c.l.b16 %v508
    %v1707 = vunpack.c.h.b16 %v508
    %v1708 = vunpack.c.l.b16 %v509
    %v1709 = vunpack.c.h.b16 %v509
    %v1710 = vunpack.c.l.b16 %v510
    %v1711 = vunpack.c.h.b16 %v510
    %v1712 = vunpack.c.l.b16 %v511
    %v1713 = vunpack.c.h.b16 %v511
    %v1714 = vunpack.c.l.b16 %v512
    %v1715 = vunpack.c.h.b16 %v512
    %v1716 = vunpack.c.l.b16 %v513
    %v1717 = vunpack.c.h.b16 %v513
    %v1718 = vunpack.c.l.b16 %v514
    %v1719 = vunpack.c.h.b16 %v514
    %v1720 = vunpack.c.l.b16 %v515
    %v1721 = vunpack.c.h.b16 %v515
    %v1722 = vunpack.c.l.b16 %v516
    %v1723 = vunpack.c.h.b16 %v516
    %v1724 = vunpack.c.l.b16 %v517
    %v1725 = vunpack.c.h.b16 %v517
    %v1726 = vunpack.c.l.b16 %v518
    %v1727 = vunpack.c.h.b16 %v518
    %v1728 = vunpack.c.l.b16 %v519
    %v1729 = vunpack.c.h.b16 %v519
    %v1730 = vunpack.c.l.b16 %v520
    %v1731 = vunpack.c.h.b16 %v520
    %v1732 = vunpack.c.l.b16 %v521
    %v1733 = vunpack.c.h.b16 %v521
    %v1734 = vunpack.c.l.b16 %v522
    %v1735 = vunpack.c.h.b16 %v522
    %v1736 = vunpack.c.l.b16 %v523
    %v1737 = vunpack.c.h.b16 %v523
    %v1738 = vunpack.c.l.b16 %v524
    %v1739 = vunpack.c.h.b16 %v524
    %v1740 = vunpack.c.l.b16 %v525
    %v1741 = vunpack.c.h.b16 %v525
    %v1742 = vunpack.c.l.b16 %v526
    %v1743 = vunpack.c.h.b16 %v526
    %v1744 = vunpack.c.l.b16 %v527
    %v1745 = vunpack.c.h.b16 %v527
    %v1746 = vpack.c.b16 %v970, %v962
    %v1747 = vpack.c.b16 %v971, %v963
    %v1748 = vpack.c.b16 %v972, %v964
    %v1749 = vpack.c.b16 %v973, %v965
    %v1750 = vpack.c.b16 %v974, %v966
    %v1751 = vpack.c.b16 %v975, %v967
    %v1752 = vpack.c.b16 %v976, %v968
    %v1753 = vpack.c.b16 %v977, %v969
    %v1754 = vpack.c.b16 %v986, %v978
    %v1755 = vpack.c.b16 %v987, %v979
    %v1756 = vpack.c.b16 %v988, %v980
    %v1757 = vpack.c.b16 %v989, %v981
    %v1758 = vpack.c.b16 %v990, %v982
    %v1759 = vpack.c.b16 %v991, %v983
    %v1760 = vpack.c.b16 %v992, %v984
    %v1761 = vpack.c.b16 %v993, %v985
    %v1762 = vpack.c.b16 %v1002, %v994
    %v1763 = vpack.c.b16 %v1003, %v995
    %v1764 = vpack.c.b16 %v1004, %v996
    %v1765 = vpack.c.b16 %v1005, %v997
    %v1766 = vpack.c.b16 %v1006, %v998
    %v1767 = vpack.c.b16 %v1007, %v999
    %v1768 = vpack.c.b16 %v1008, %v1000
    %v1769 = vpack.c.b16 %v1009, %v1001
    %v1770 = vpack.c.b16 %v1018, %v1010
    %v1771 = vpack.c.b16 %v1019, %v1011
    %v1772 = vpack.c.b16 %v1020, %v1012
    %v1773 = vpack.c.b16 %v1021, %v1013
    %v1774 = vpack.c.b16 %v1022, %v1014
    %v1775 = vpack.c.b16 %v1023, %v1015
    %v1776 = vpack.c.b16 %v1024, %v1016
    %v1777 = vpack.c.b16 %v1025, %v1017
    %v1778 = vpack.c.b16 %v1034, %v1026
    %v1779 = vpack.c.b16 %v1035, %v1027
    %v1780 = vpack.c.b16 %v1036, %v1028
    %v1781 = vpack.c.b16 %v1037, %v1029
    %v1782 = vpack.c.b16 %v1038, %v1030
    %v1783 = vpack.c.b16 %v1039, %v1031
    %v1784 = vpack.c.b16 %v1040, %v1032
    %v1785 = vpack.c.b16 %v1041, %v1033
    %v1786 = vpack.c.b16 %v1050, %v1042
    %v1787 = vpack.c.b16 %v1051, %v1043
    %v1788 = vpack.c.b16 %v1052, %v1044
    %v1789 = vpack.c.b16 %v1053, %v1045
    %v1790 = vpack.c.b16 %v1054, %v1046
    %v1791 = vpack.c.b16 %v1055, %v1047
    %v1792 = vpack.c.b16 %v1056, %v1048
    %v1793 = vpack.c.b16 %v1057, %v1049
    %v1794 = vpack.c.b16 %v1066, %v1058
    %v1795 = vpack.c.b16 %v1067, %v1059
    %v1796 = vpack.c.b16 %v1068, %v1060
    %v1797 = vpack.c.b16 %v1069, %v1061
    %v1798 = vpack.c.b16 %v1070, %v1062
    %v1799 = vpack.c.b16 %v1071, %v1063
    %v1800 = vpack.c.b16 %v1072, %v1064
    %v1801 = vpack.c.b16 %v1073, %v1065
    %v1802 = vpack.c.b16 %v1082, %v1074
    %v1803 = vpack.c.b16 %v1083, %v1075
    %v1804 = vpack.c.b16 %v1084, %v1076
    %v1805 = vpack.c.b16 %v1085, %v1077
    %v1806 = vpack.c.b16 %v1086, %v1078
    %v1807 = vpack.c.b16 %v1087, %v1079
    %v1808 = vpack.c.b16 %v1088, %v1080
    %v1809 = vpack.c.b16 %v1089, %v1081
    %v1810 = vpack.c.b16 %v1098, %v1090
    %v1811 = vpack.c.b16 %v1099, %v1091
    %v1812 = vpack.c.b16 %v1100, %v1092
    %v1813 = vpack.c.b16 %v1101, %v1093
    %v1814 = vpack.c.b16 %v1102, %v1094
    %v1815 = vpack.c.b16 %v1103, %v1095
    %v1816 = vpack.c.b16 %v1104, %v1096
    %v1817 = vpack.c.b16 %v1105, %v1097
    %v1818 = vpack.c.b16 %v1114, %v1106
    %v1819 = vpack.c.b16 %v1115, %v1107
    %v1820 = vpack.c.b16 %v1116, %v1108
    %v1821 = vpack.c.b16 %v1117, %v1109
    %v1822 = vpack.c.b16 %v1118, %v1110
    %v1823 = vpack.c.b16 %v1119, %v1111
    %v1824 = vpack.c.b16 %v1120, %v1112
    %v1825 = vpack.c.b16 %v1121, %v1113
    %v1826 = vpack.c.b16 %v1130, %v1122
    %v1827 = vpack.c.b16 %v1131, %v1123
    %v1828 = vpack.c.b16 %v1132, %v1124
    %v1829 = vpack.c.b16 %v1133, %v1125
    %v1830 = vpack.c.b16 %v1134, %v1126
    %v1831 = vpack.c.b16 %v1135, %v1127
    %v1832 = vpack.c.b16 %v1136, %v1128
    %v1833 = vpack.c.b16 %v1137, %v1129
    %v1834 = vpack.c.b16 %v1146, %v1138
    %v1835 = vpack.c.b16 %v1147, %v1139
    %v1836 = vpack.c.b16 %v1148, %v1140
    %v1837 = vpack.c.b16 %v1149, %v1141
    %v1838 = vpack.c.b16 %v1150, %v1142
    %v1839 = vpack.c.b16 %v1151, %v1143
    %v1840 = vpack.c.b16 %v1152, %v1144
    %v1841 = vpack.c.b16 %v1153, %v1145
    %v1842 = vpack.c.b16 %v1162, %v1154
    %v1843 = vpack.c.b16 %v1163, %v1155
    %v1844 = vpack.c.b16 %v1164, %v1156
    %v1845 = vpack.c.b16 %v1165, %v1157
    %v1846 = vpack.c.b16 %v1166, %v1158
    %v1847 = vpack.c.b16 %v1167, %v1159
    %v1848 = vpack.c.b16 %v1168, %v1160
    %v1849 = vpack.c.b16 %v1169, %v1161
    %v1850 = vpack.c.b16 %v1178, %v1170
    %v1851 = vpack.c.b16 %v1179, %v1171
    %v1852 = vpack.c.b16 %v1180, %v1172
    %v1853 = vpack.c.b16 %v1181, %v1173
    %v1854 = vpack.c.b16 %v1182, %v1174
    %v1855 = vpack.c.b16 %v1183, %v1175
    %v1856 = vpack.c.b16 %v1184, %v1176
    %v1857 = vpack.c.b16 %v1185, %v1177
    %v1858 = vpack.c.b16 %v1194, %v1186
    %v1859 = vpack.c.b16 %v1195, %v1187
    %v1860 = vpack.c.b16 %v1196, %v1188
    %v1861 = vpack.c.b16 %v1197, %v1189
    %v1862 = vpack.c.b16 %v1198, %v1190
    %v1863 = vpack.c.b16 %v1199, %v1191
    %v1864 = vpack.c.b16 %v1200, %v1192
    %v1865 = vpack.c.b16 %v1201, %v1193
    %v1866 = vpack.c.b16 %v1210, %v1202
    %v1867 = vpack.c.b16 %v1211, %v1203
    %v1868 = vpack.c.b16 %v1212, %v1204
    %v1869 = vpack.c.b16 %v1213, %v1205
    %v1870 = vpack.c.b16 %v1214, %v1206
    %v1871 = vpack.c.b16 %v1215, %v1207
    %v1872 = vpack.c.b16 %v1216, %v1208
    %v1873 = vpack.c.b16 %v1217, %v1209
    %v1874 = vpack.c.b16 %v1226, %v1218
    %v1875 = vpack.c.b16 %v1227, %v1219
    %v1876 = vpack.c.b16 %v1228, %v1220
    %v1877 = vpack.c.b16 %v1229, %v1221
    %v1878 = vpack.c.b16 %v1230, %v1222
    %v1879 = vpack.c.b16 %v1231, %v1223
    %v1880 = vpack.c.b16 %v1232, %v1224
    %v1881 = vpack.c.b16 %v1233, %v1225
    %v1882 = vpack.c.b16 %v1242, %v1234
    %v1883 = vpack.c.b16 %v1243, %v1235
    %v1884 = vpack.c.b16 %v1244, %v1236
    %v1885 = vpack.c.b16 %v1245, %v1237
    %v1886 = vpack.c.b16 %v1246, %v1238
    %v1887 = vpack.c.b16 %v1247, %v1239
    %v1888 = vpack.c.b16 %v1248, %v1240
    %v1889 = vpack.c.b16 %v1249, %v1241
    %v1890 = vpack.c.b16 %v1258, %v1250
    %v1891 = vpack.c.b16 %v1259, %v1251
    %v1892 = vpack.c.b16 %v1260, %v1252
    %v1893 = vpack.c.b16 %v1261, %v1253
    %v1894 = vpack.c.b16 %v1262, %v1254
    %v1895 = vpack.c.b16 %v1263, %v1255
    %v1896 = vpack.c.b16 %v1264, %v1256
    %v1897 = vpack.c.b16 %v1265, %v1257
    %v1898 = vpack.c.b16 %v1274, %v1266
    %v1899 = vpack.c.b16 %v1275, %v1267
    %v1900 = vpack.c.b16 %v1276, %v1268
    %v1901 = vpack.c.b16 %v1277, %v1269
    %v1902 = vpack.c.b16 %v1278, %v1270
    %v1903 = vpack.c.b16 %v1279, %v1271
    %v1904 = vpack.c.b16 %v1280, %v1272
    %v1905 = vpack.c.b16 %v1281, %v1273
    %v1906 = vpack.c.b16 %v1290, %v1282
    %v1907 = vpack.c.b16 %v1291, %v1283
    %v1908 = vpack.c.b16 %v1292, %v1284
    %v1909 = vpack.c.b16 %v1293, %v1285
    %v1910 = vpack.c.b16 %v1294, %v1286
    %v1911 = vpack.c.b16 %v1295, %v1287
    %v1912 = vpack.c.b16 %v1296, %v1288
    %v1913 = vpack.c.b16 %v1297, %v1289
    %v1914 = vpack.c.b16 %v1306, %v1298
    %v1915 = vpack.c.b16 %v1307, %v1299
    %v1916 = vpack.c.b16 %v1308, %v1300
    %v1917 = vpack.c.b16 %v1309, %v1301
    %v1918 = vpack.c.b16 %v1310, %v1302
    %v1919 = vpack.c.b16 %v1311, %v1303
    %v1920 = vpack.c.b16 %v1312, %v1304
    %v1921 = vpack.c.b16 %v1313, %v1305
    %v1922 = vpack.c.b16 %v1322, %v1314
    %v1923 = vpack.c.b16 %v1323, %v1315
    %v1924 = vpack.c.b16 %v1324, %v1316
    %v1925 = vpack.c.b16 %v1325, %v1317
    %v1926 = vpack.c.b16 %v1326, %v1318
    %v1927 = vpack.c.b16 %v1327, %v1319
    %v1928 = vpack.c.b16 %v1328, %v1320
    %v1929 = vpack.c.b16 %v1329, %v1321
    %v1930 = vpack.c.b16 %v1338, %v1330
    %v1931 = vpack.c.b16 %v1339, %v1331
    %v1932 = vpack.c.b16 %v1340, %v1332
    %v1933 = vpack.c.b16 %v1341, %v1333
    %v1934 = vpack.c.b16 %v1342, %v1334
    %v1935 = vpack.c.b16 %v1343, %v1335
    %v1936 = vpack.c.b16 %v1344, %v1336
    %v1937 = vpack.c.b16 %v1345, %v1337
    %v1938 = vpack.c.b16 %v1354, %v1346
    %v1939 = vpack.c.b16 %v1355, %v1347
    %v1940 = vpack.c.b16 %v1356, %v1348
    %v1941 = vpack.c.b16 %v1357, %v1349
    %v1942 = vpack.c.b16 %v1358, %v1350
    %v1943 = vpack.c.b16 %v1359, %v1351
    %v1944 = vpack.c.b16 %v1360, %v1352
    %v1945 = vpack.c.b16 %v1361, %v1353
    %v1946 = vpack.c.b16 %v1370, %v1362
    %v1947 = vpack.c.b16 %v1371, %v1363
    %v1948 = vpack.c.b16 %v1372, %v1364
    %v1949 = vpack.c.b16 %v1373, %v1365
    %v1950 = vpack.c.b16 %v1374, %v1366
    %v1951 = vpack.c.b16 %v1375, %v1367
    %v1952 = vpack.c.b16 %v1376, %v1368
    %v1953 = vpack.c.b16 %v1377, %v1369
    %v1954 = vpack.c.b16 %v1386, %v1378
    %v1955 = vpack.c.b16 %v1387, %v1379
    %v1956 = vpack.c.b16 %v1388, %v1380
    %v1957 = vpack.c.b16 %v1389, %v1381
    %v1958 = vpack.c.b16 %v1390, %v1382
    %v1959 = vpack.c.b16 %v1391, %v1383
    %v1960 = vpack.c.b16 %v1392, %v1384
    %v1961 = vpack.c.b16 %v1393, %v1385
    %v1962 = vpack.c.b16 %v1402, %v1394
    %v1963 = vpack.c.b16 %v1403, %v1395
    %v1964 = vpack.c.b16 %v1404, %v1396
    %v1965 = vpack.c.b16 %v1405, %v1397
    %v1966 = vpack.c.b16 %v1406, %v1398
    %v1967 = vpack.c.b16 %v1407, %v1399
    %v1968 = vpack.c.b16 %v1408, %v1400
    %v1969 = vpack.c.b16 %v1409, %v1401
    %v1970 = vpack.c.b16 %v1418, %v1410
    %v1971 = vpack.c.b16 %v1419, %v1411
    %v1972 = vpack.c.b16 %v1420, %v1412
    %v1973 = vpack.c.b16 %v1421, %v1413
    %v1974 = vpack.c.b16 %v1422, %v1414
    %v1975 = vpack.c.b16 %v1423, %v1415
    %v1976 = vpack.c.b16 %v1424, %v1416
    %v1977 = vpack.c.b16 %v1425, %v1417
    %v1978 = vpack.c.b16 %v1434, %v1426
    %v1979 = vpack.c.b16 %v1435, %v1427
    %v1980 = vpack.c.b16 %v1436, %v1428
    %v1981 = vpack.c.b16 %v1437, %v1429
    %v1982 = vpack.c.b16 %v1438, %v1430
    %v1983 = vpack.c.b16 %v1439, %v1431
    %v1984 = vpack.c.b16 %v1440, %v1432
    %v1985 = vpack.c.b16 %v1441, %v1433
    %v1986 = vpack.c.b16 %v1450, %v1442
    %v1987 = vpack.c.b16 %v1451, %v1443
    %v1988 = vpack.c.b16 %v1452, %v1444
    %v1989 = vpack.c.b16 %v1453, %v1445
    %v1990 = vpack.c.b16 %v1454, %v1446
    %v1991 = vpack.c.b16 %v1455, %v1447
    %v1992 = vpack.c.b16 %v1456, %v1448
    %v1993 = vpack.c.b16 %v1457, %v1449
    %v1994 = vpack.c.b16 %v1466, %v1458
    %v1995 = vpack.c.b16 %v1467, %v1459
    %v1996 = vpack.c.b16 %v1468, %v1460
    %v1997 = vpack.c.b16 %v1469, %v1461
    %v1998 = vpack.c.b16 %v1470, %v1462
    %v1999 = vpack.c.b16 %v1471, %v1463
    %v2000 = vpack.c.b16 %v1472, %v1464
    %v2001 = vpack.c.b16 %v1473, %v1465
    %v2002 = vpack.c.b16 %v1482, %v1474
    %v2003 = vpack.c.b16 %v1483, %v1475
    %v2004 = vpack.c.b16 %v1484, %v1476
    %v2005 = vpack.c.b16 %v1485, %v1477
    %v2006 = vpack.c.b16 %v1486, %v1478
    %v2007 = vpack.c.b16 %v1487, %v1479
    %v2008 = vpack.c.b16 %v1488, %v1480
    %v2009 = vpack.c.b16 %v1489, %v1481
    %v2010 = vpack.c.b16 %v1498, %v1490
    %v2011 = vpack.c.b16 %v1499, %v1491
    %v2012 = vpack.c.b16 %v1500, %v1492
    %v2013 = vpack.c.b16 %v1501, %v1493
    %v2014 = vpack.c.b16 %v1502, %v1494
    %v2015 = vpack.c.b16 %v1503, %v1495
    %v2016 = vpack.c.b16 %v1504, %v1496
    %v2017 = vpack.c.b16 %v1505, %v1497
    %v2018 = vpack.c.b16 %v1514, %v1506
    %v2019 = vpack.c.b16 %v1515, %v1507
    %v2020 = vpack.c.b16 %v1516, %v1508
    %v2021 = vpack.c.b16 %v1517, %v1509
    %v2022 = vpack.c.b16 %v1518, %v1510
    %v2023 = vpack.c.b16 %v1519, %v1511
    %v2024 = vpack.c.b16 %v1520, %v1512
    %v2025 = vpack.c.b16 %v1521, %v1513
    %v2026 = vpack.c.b16 %v1530, %v1522
    %v2027 = vpack.c.b16 %v1531, %v1523
    %v2028 = vpack.c.b16 %v1532, %v1524
    %v2029 = vpack.c.b16 %v1533, %v1525
    %v2030 = vpack.c.b16 %v1534, %v1526
    %v2031 = vpack.c.b16 %v1535, %v1527
    %v2032 = vpack.c.b16 %v1536, %v1528
    %v2033 = vpack.c.b16 %v1537, %v1529
    %v2034 = vpack.c.b16 %v1546, %v1538
    %v2035 = vpack.c.b16 %v1547, %v1539
    %v2036 = vpack.c.b16 %v1548, %v1540
    %v2037 = vpack.c.b16 %v1549, %v1541
    %v2038 = vpack.c.b16 %v1550, %v1542
    %v2039 = vpack.c.b16 %v1551, %v1543
    %v2040 = vpack.c.b16 %v1552, %v1544
    %v2041 = vpack.c.b16 %v1553, %v1545
    %v2042 = vpack.c.b16 %v1562, %v1554
    %v2043 = vpack.c.b16 %v1563, %v1555
    %v2044 = vpack.c.b16 %v1564, %v1556
    %v2045 = vpack.c.b16 %v1565, %v1557
    %v2046 = vpack.c.b16 %v1566, %v1558
    %v2047 = vpack.c.b16 %v1567, %v1559
    %v2048 = vpack.c.b16 %v1568, %v1560
    %v2049 = vpack.c.b16 %v1569, %v1561
    %v2050 = vpack.c.b16 %v1578, %v1570
    %v2051 = vpack.c.b16 %v1579, %v1571
    %v2052 = vpack.c.b16 %v1580, %v1572
    %v2053 = vpack.c.b16 %v1581, %v1573
    %v2054 = vpack.c.b16 %v1582, %v1574
    %v2055 = vpack.c.b16 %v1583, %v1575
    %v2056 = vpack.c.b16 %v1584, %v1576
    %v2057 = vpack.c.b16 %v1585, %v1577
    %v2058 = vpack.c.b16 %v1594, %v1586
    %v2059 = vpack.c.b16 %v1595, %v1587
    %v2060 = vpack.c.b16 %v1596, %v1588
    %v2061 = vpack.c.b16 %v1597, %v1589
    %v2062 = vpack.c.b16 %v1598, %v1590
    %v2063 = vpack.c.b16 %v1599, %v1591
    %v2064 = vpack.c.b16 %v1600, %v1592
    %v2065 = vpack.c.b16 %v1601, %v1593
    %v2066 = vpack.c.b16 %v1610, %v1602
    %v2067 = vpack.c.b16 %v1611, %v1603
    %v2068 = vpack.c.b16 %v1612, %v1604
    %v2069 = vpack.c.b16 %v1613, %v1605
    %v2070 = vpack.c.b16 %v1614, %v1606
    %v2071 = vpack.c.b16 %v1615, %v1607
    %v2072 = vpack.c.b16 %v1616, %v1608
    %v2073 = vpack.c.b16 %v1617, %v1609
    %v2074 = vpack.c.b16 %v1626, %v1618
    %v2075 = vpack.c.b16 %v1627, %v1619
    %v2076 = vpack.c.b16 %v1628, %v1620
    %v2077 = vpack.c.b16 %v1629, %v1621
    %v2078 = vpack.c.b16 %v1630, %v1622
    %v2079 = vpack.c.b16 %v1631, %v1623
    %v2080 = vpack.c.b16 %v1632, %v1624
    %v2081 = vpack.c.b16 %v1633, %v1625
    %v2082 = vpack.c.b16 %v1642, %v1634
    %v2083 = vpack.c.b16 %v1643, %v1635
    %v2084 = vpack.c.b16 %v1644, %v1636
    %v2085 = vpack.c.b16 %v1645, %v1637
    %v2086 = vpack.c.b16 %v1646, %v1638
    %v2087 = vpack.c.b16 %v1647, %v1639
    %v2088 = vpack.c.b16 %v1648, %v1640
    %v2089 = vpack.c.b16 %v1649, %v1641
    %v2090 = vpack.c.b16 %v1658, %v1650
    %v2091 = vpack.c.b16 %v1659, %v1651
    %v2092 = vpack.c.b16 %v1660, %v1652
    %v2093 = vpack.c.b16 %v1661, %v1653
    %v2094 = vpack.c.b16 %v1662, %v1654
    %v2095 = vpack.c.b16 %v1663, %v1655
    %v2096 = vpack.c.b16 %v1664, %v1656
    %v2097 = vpack.c.b16 %v1665, %v1657
    %v2098 = vpack.c.b16 %v1674, %v1666
    %v2099 = vpack.c.b16 %v1675, %v1667
    %v2100 = vpack.c.b16 %v1676, %v1668
    %v2101 = vpack.c.b16 %v1677, %v1669
    %v2102 = vpack.c.b16 %v1678, %v1670
    %v2103 = vpack.c.b16 %v1679, %v1671
    %v2104 = vpack.c.b16 %v1680, %v1672
    %v2105 = vpack.c.b16 %v1681, %v1673
    %v2106 = vpack.c.b16 %v1690, %v1682
    %v2107 = vpack.c.b16 %v1691, %v1683
    %v2108 = vpack.c.b16 %v1692, %v1684
    %v2109 = vpack.c.b16 %v1693, %v1685
    %v2110 = vpack.c.b16 %v1694, %v1686
    %v2111 = vpack.c.b16 %v1695, %v1687
    %v2112 = vpack.c.b16 %v1696, %v1688
    %v2113 = vpack.c.b16 %v1697, %v1689
    %v2114 = vpack.c.b16 %v1706, %v1698
    %v2115 = vpack.c.b16 %v1707, %v1699
    %v2116 = vpack.c.b16 %v1708, %v1700
    %v2117 = vpack.c.b16 %v1709, %v1701
    %v2118 = vpack.c.b16 %v1710, %v1702
    %v2119 = vpack.c.b16 %v1711, %v1703
    %v2120 = vpack.c.b16 %v1712, %v1704
    %v2121 = vpack.c.b16 %v1713, %v1705
    %v2122 = vpack.c.b16 %v1722, %v1714
    %v2123 = vpack.c.b16 %v1723, %v1715
    %v2124 = vpack.c.b16 %v1724, %v1716
    %v2125 = vpack.c.b16 %v1725, %v1717
    %v2126 = vpack.c.b16 %v1726, %v1718
    %v2127 = vpack.c.b16 %v1727, %v1719
    %v2128 = vpack.c.b16 %v1728, %v1720
    %v2129 = vpack.c.b16 %v1729, %v1721
    %v2130 = vpack.c.b16 %v1738, %v1730
    %v2131 = vpack.c.b16 %v1739, %v1731
    %v2132 = vpack.c.b16 %v1740, %v1732
    %v2133 = vpack.c.b16 %v1741, %v1733
    %v2134 = vpack.c.b16 %v1742, %v1734
    %v2135 = vpack.c.b16 %v1743, %v1735
    %v2136 = vpack.c.b16 %v1744, %v1736
    %v2137 = vpack.c.b16 %v1745, %v1737
    %vm2530 = vcmask 130048
    %v2532 = vsel %vm2530, %v135, 0
    %2534 = vmatprep.subr.bf16.mxu0 %v1747
    %2535 = vmatpush1.bf16.msra.mxu0 %v1746
    %2536 = vmatprep.subr.bf16.mxu0 %v1755
    %2537 = vmatpush1.bf16.msra.mxu0 %v1754
    %2538 = vmatprep.subr.bf16.mxu0 %v1763
    %2539 = vmatpush1.bf16.msra.mxu0 %v1762
    %2540 = vmatprep.subr.bf16.mxu0 %v1771
    %2541 = vmatpush1.bf16.msra.mxu0 %v1770
    %2542 = vmatprep.subr.bf16.mxu0 %v1779
    %2543 = vmatpush1.bf16.msra.mxu0 %v1778
    %2544 = vmatprep.subr.bf16.mxu0 %v1787
    %2545 = vmatpush1.bf16.msra.mxu0 %v1786
    %2546 = vmatprep.subr.bf16.mxu0 %v1795
    %2547 = vmatpush1.bf16.msra.mxu0 %v1794
    %2548 = vmatprep.subr.bf16.mxu0 %v1803
    %2549 = vmatpush1.bf16.msra.mxu0 %v1802
    %2550 = vmatprep.subr.bf16.mxu0 %v1811
    %2551 = vmatpush1.bf16.msra.mxu0 %v1810
    %2552 = vmatprep.subr.bf16.mxu0 %v1819
    %2553 = vmatpush1.bf16.msra.mxu0 %v1818
    %2554 = vmatprep.subr.bf16.mxu0 %v1827
    %2555 = vmatpush1.bf16.msra.mxu0 %v1826
    %2556 = vmatprep.subr.bf16.mxu0 %v1835
    %2557 = vmatpush1.bf16.msra.mxu0 %v1834
    %2558 = vmatprep.subr.bf16.mxu0 %v1843
    %2559 = vmatpush1.bf16.msra.mxu0 %v1842
    %2560 = vmatprep.subr.bf16.mxu0 %v1851
    %2561 = vmatpush1.bf16.msra.mxu0 %v1850
    %2562 = vmatprep.subr.bf16.mxu0 %v1859
    %2563 = vmatpush1.bf16.msra.mxu0 %v1858
    %2564 = vmatprep.subr.bf16.mxu0 %v1867
    %2565 = vmatpush1.bf16.msra.mxu0 %v1866
    %2566 = vmatprep.mubr.bf16.mxu0 %v130
    %2567 = vmatmul.mubr.bf16.gmra.mrb[0].mxu0 %v129
    %v2568 = vpop.f32.mrb[0].mxu0
    %v2569 = vadd.f32 %v533, %v2568
    %v2570 = vpop.f32.mrb[0].mxu0
    %v2571 = vadd.f32 %v537, %v2570
    %v2572 = vpop.f32.mrb[0].mxu0
    %v2573 = vpop.f32.mrb[0].mxu0
    %2574 = vdwg.mxu0
    %2575 = vmatprep.subr.bf16.mxu0 %v1875
    %2576 = vmatpush1.bf16.msra.mxu0 %v1874
    %2577 = vmatprep.subr.bf16.mxu0 %v1883
    %2578 = vmatpush1.bf16.msra.mxu0 %v1882
    %2579 = vmatprep.subr.bf16.mxu0 %v1891
    %2580 = vmatpush1.bf16.msra.mxu0 %v1890
    %2581 = vmatprep.subr.bf16.mxu0 %v1899
    %2582 = vmatpush1.bf16.msra.mxu0 %v1898
    %2583 = vmatprep.subr.bf16.mxu0 %v1907
    %2584 = vmatpush1.bf16.msra.mxu0 %v1906
    %2585 = vmatprep.subr.bf16.mxu0 %v1915
    %2586 = vmatpush1.bf16.msra.mxu0 %v1914
    %2587 = vmatprep.subr.bf16.mxu0 %v1923
    %2588 = vmatpush1.bf16.msra.mxu0 %v1922
    %2589 = vmatprep.subr.bf16.mxu0 %v1931
    %2590 = vmatpush1.bf16.msra.mxu0 %v1930
    %2591 = vmatprep.subr.bf16.mxu0 %v1939
    %2592 = vmatpush1.bf16.msra.mxu0 %v1938
    %2593 = vmatprep.subr.bf16.mxu0 %v1947
    %2594 = vmatpush1.bf16.msra.mxu0 %v1946
    %2595 = vmatprep.subr.bf16.mxu0 %v1955
    %2596 = vmatpush1.bf16.msra.mxu0 %v1954
    %2597 = vmatprep.subr.bf16.mxu0 %v1963
    %2598 = vmatpush1.bf16.msra.mxu0 %v1962
    %2599 = vmatprep.subr.bf16.mxu0 %v1971
    %2600 = vmatpush1.bf16.msra.mxu0 %v1970
    %2601 = vmatprep.subr.bf16.mxu0 %v1979
    %2602 = vmatpush1.bf16.msra.mxu0 %v1978
    %2603 = vmatprep.subr.bf16.mxu0 %v1987
    %2604 = vmatpush1.bf16.msra.mxu0 %v1986
    %2605 = vmatprep.subr.bf16.mxu0 %v1995
    %2606 = vmatpush1.bf16.msra.mxu0 %v1994
    %2607 = vmatprep.mubr.bf16.mxu0 %v132
    %2608 = vmatmul.mubr.bf16.gmra.mrb[0].mxu0 %v131
    %v2609 = vpop.f32.mrb[0].mxu0
    %v2610 = vadd.f32 %v2569, %v2609
    %v2611 = vpop.f32.mrb[0].mxu0
    %v2612 = vadd.f32 %v2571, %v2611
    %v2613 = vpop.f32.mrb[0].mxu0
    %v2614 = vpop.f32.mrb[0].mxu0
    %2615 = vdwg.mxu0
    %2616 = vmatprep.subr.bf16.mxu0 %v2003
    %2617 = vmatpush1.bf16.msra.mxu0 %v2002
    %2618 = vmatprep.subr.bf16.mxu0 %v2011
    %2619 = vmatpush1.bf16.msra.mxu0 %v2010
    %2620 = vmatprep.subr.bf16.mxu0 %v2019
    %2621 = vmatpush1.bf16.msra.mxu0 %v2018
    %2622 = vmatprep.subr.bf16.mxu0 %v2027
    %2623 = vmatpush1.bf16.msra.mxu0 %v2026
    %2624 = vmatprep.subr.bf16.mxu0 %v2035
    %2625 = vmatpush1.bf16.msra.mxu0 %v2034
    %2626 = vmatprep.subr.bf16.mxu0 %v2043
    %2627 = vmatpush1.bf16.msra.mxu0 %v2042
    %2628 = vmatprep.subr.bf16.mxu0 %v2051
    %2629 = vmatpush1.bf16.msra.mxu0 %v2050
    %2630 = vmatprep.subr.bf16.mxu0 %v2059
    %2631 = vmatpush1.bf16.msra.mxu0 %v2058
    %2632 = vmatprep.subr.bf16.mxu0 %v2067
    %2633 = vmatpush1.bf16.msra.mxu0 %v2066
    %2634 = vmatprep.subr.bf16.mxu0 %v2075
    %2635 = vmatpush1.bf16.msra.mxu0 %v2074
    %2636 = vmatprep.subr.bf16.mxu0 %v2083
    %2637 = vmatpush1.bf16.msra.mxu0 %v2082
    %2638 = vmatprep.subr.bf16.mxu0 %v2091
    %2639 = vmatpush1.bf16.msra.mxu0 %v2090
    %2640 = vmatprep.subr.bf16.mxu0 %v2099
    %2641 = vmatpush1.bf16.msra.mxu0 %v2098
    %2642 = vmatprep.subr.bf16.mxu0 %v2107
    %2643 = vmatpush1.bf16.msra.mxu0 %v2106
    %2644 = vmatprep.subr.bf16.mxu0 %v2115
    %2645 = vmatpush1.bf16.msra.mxu0 %v2114
    %2646 = vmatprep.subr.bf16.mxu0 %v2123
    %2647 = vmatpush1.bf16.msra.mxu0 %v2122
    %2648 = vmatprep.mubr.bf16.mxu0 %v134
    %2649 = vmatmul.mubr.bf16.gmra.mrb[0].mxu0 %v133
    %v2650 = vpop.f32.mrb[0].mxu0
    %v2651 = vadd.f32 %v2610, %v2650
    %v2652 = vpop.f32.mrb[0].mxu0
    %v2653 = vadd.f32 %v2612, %v2652
    %v2654 = vpop.f32.mrb[0].mxu0
    %v2655 = vpop.f32.mrb[0].mxu0
    %2656 = vdwg.mxu0
    %2657 = vmatprep.subr.bf16.mxu0 %v2131
    %2658 = vmatpush1.bf16.msra.mxu0 %v2130
    %2659 = vmatprep.subr.bf16.mxu0 0
    %2660 = vmatpush1.bf16.msra.mxu0 0
    %2661 = vmatprep.subr.bf16.mxu0 0
    %2662 = vmatpush1.bf16.msra.mxu0 0
    %2663 = vmatprep.subr.bf16.mxu0 0
    %2664 = vmatpush1.bf16.msra.mxu0 0
    %2665 = vmatprep.subr.bf16.mxu0 0
    %2666 = vmatpush1.bf16.msra.mxu0 0
    %2667 = vmatprep.subr.bf16.mxu0 0
    %2668 = vmatpush1.bf16.msra.mxu0 0
    %2669 = vmatprep.subr.bf16.mxu0 0
    %2670 = vmatpush1.bf16.msra.mxu0 0
    %2671 = vmatprep.subr.bf16.mxu0 0
    %2672 = vmatpush1.bf16.msra.mxu0 0
    %2673 = vmatprep.subr.bf16.mxu0 0
    %2674 = vmatpush1.bf16.msra.mxu0 0
    %2675 = vmatprep.subr.bf16.mxu0 0
    %2676 = vmatpush1.bf16.msra.mxu0 0
    %2677 = vmatprep.subr.bf16.mxu0 0
    %2678 = vmatpush1.bf16.msra.mxu0 0
    %2679 = vmatprep.subr.bf16.mxu0 0
    %2680 = vmatpush1.bf16.msra.mxu0 0
    %2681 = vmatprep.subr.bf16.mxu0 0
    %2682 = vmatpush1.bf16.msra.mxu0 0
    %2683 = vmatprep.subr.bf16.mxu0 0
    %2684 = vmatpush1.bf16.msra.mxu0 0
    %2685 = vmatprep.subr.bf16.mxu0 0
    %2686 = vmatpush1.bf16.msra.mxu0 0
    %2687 = vmatprep.subr.bf16.mxu0 0
    %2688 = vmatpush1.bf16.msra.mxu0 0
    %2689 = vmatprep.mubr.bf16.mxu0 0
    %2690 = vmatmul.mubr.bf16.gmra.mrb[0].mxu0 %v2532
    %v2691 = vpop.f32.mrb[0].mxu0
    %v2692 = vadd.f32 %v2651, %v2691
    %v2693 = vpop.f32.mrb[0].mxu0
    %v2694 = vadd.f32 %v2653, %v2693
    %v2695 = vpop.f32.mrb[0].mxu0
    %v2696 = vpop.f32.mrb[0].mxu0
    %2697 = vdwg.mxu0
    %2698 = vmatprep.subr.bf16.mxu0 %v1749
    %2699 = vmatpush1.bf16.msra.mxu0 %v1748
    %2700 = vmatprep.subr.bf16.mxu0 %v1757
    %2701 = vmatpush1.bf16.msra.mxu0 %v1756
    %2702 = vmatprep.subr.bf16.mxu0 %v1765
    %2703 = vmatpush1.bf16.msra.mxu0 %v1764
    %2704 = vmatprep.subr.bf16.mxu0 %v1773
    %2705 = vmatpush1.bf16.msra.mxu0 %v1772
    %2706 = vmatprep.subr.bf16.mxu0 %v1781
    %2707 = vmatpush1.bf16.msra.mxu0 %v1780
    %2708 = vmatprep.subr.bf16.mxu0 %v1789
    %2709 = vmatpush1.bf16.msra.mxu0 %v1788
    %2710 = vmatprep.subr.bf16.mxu0 %v1797
    %2711 = vmatpush1.bf16.msra.mxu0 %v1796
    %2712 = vmatprep.subr.bf16.mxu0 %v1805
    %2713 = vmatpush1.bf16.msra.mxu0 %v1804
    %2714 = vmatprep.subr.bf16.mxu0 %v1813
    %2715 = vmatpush1.bf16.msra.mxu0 %v1812
    %2716 = vmatprep.subr.bf16.mxu0 %v1821
    %2717 = vmatpush1.bf16.msra.mxu0 %v1820
    %2718 = vmatprep.subr.bf16.mxu0 %v1829
    %2719 = vmatpush1.bf16.msra.mxu0 %v1828
    %2720 = vmatprep.subr.bf16.mxu0 %v1837
    %2721 = vmatpush1.bf16.msra.mxu0 %v1836
    %2722 = vmatprep.subr.bf16.mxu0 %v1845
    %2723 = vmatpush1.bf16.msra.mxu0 %v1844
    %2724 = vmatprep.subr.bf16.mxu0 %v1853
    %2725 = vmatpush1.bf16.msra.mxu0 %v1852
    %2726 = vmatprep.subr.bf16.mxu0 %v1861
    %2727 = vmatpush1.bf16.msra.mxu0 %v1860
    %2728 = vmatprep.subr.bf16.mxu0 %v1869
    %2729 = vmatpush1.bf16.msra.mxu0 %v1868
    %2730 = vmatprep.mubr.bf16.mxu0 %v130
    %2731 = vmatmul.mubr.bf16.gmra.mrb[0].mxu0 %v129
    %v2732 = vpop.f32.mrb[0].mxu0
    %v2733 = vadd.f32 %v541, %v2732
    %v2734 = vpop.f32.mrb[0].mxu0
    %v2735 = vadd.f32 %v545, %v2734
    %v2736 = vpop.f32.mrb[0].mxu0
    %v2737 = vpop.f32.mrb[0].mxu0
    %2738 = vdwg.mxu0
    %2739 = vmatprep.subr.bf16.mxu0 %v1877
    %2740 = vmatpush1.bf16.msra.mxu0 %v1876
    %2741 = vmatprep.subr.bf16.mxu0 %v1885
    %2742 = vmatpush1.bf16.msra.mxu0 %v1884
    %2743 = vmatprep.subr.bf16.mxu0 %v1893
    %2744 = vmatpush1.bf16.msra.mxu0 %v1892
    %2745 = vmatprep.subr.bf16.mxu0 %v1901
    %2746 = vmatpush1.bf16.msra.mxu0 %v1900
    %2747 = vmatprep.subr.bf16.mxu0 %v1909
    %2748 = vmatpush1.bf16.msra.mxu0 %v1908
    %2749 = vmatprep.subr.bf16.mxu0 %v1917
    %2750 = vmatpush1.bf16.msra.mxu0 %v1916
    %2751 = vmatprep.subr.bf16.mxu0 %v1925
    %2752 = vmatpush1.bf16.msra.mxu0 %v1924
    %2753 = vmatprep.subr.bf16.mxu0 %v1933
    %2754 = vmatpush1.bf16.msra.mxu0 %v1932
    %2755 = vmatprep.subr.bf16.mxu0 %v1941
    %2756 = vmatpush1.bf16.msra.mxu0 %v1940
    %2757 = vmatprep.subr.bf16.mxu0 %v1949
    %2758 = vmatpush1.bf16.msra.mxu0 %v1948
    %2759 = vmatprep.subr.bf16.mxu0 %v1957
    %2760 = vmatpush1.bf16.msra.mxu0 %v1956
    %2761 = vmatprep.subr.bf16.mxu0 %v1965
    %2762 = vmatpush1.bf16.msra.mxu0 %v1964
    %2763 = vmatprep.subr.bf16.mxu0 %v1973
    %2764 = vmatpush1.bf16.msra.mxu0 %v1972
    %2765 = vmatprep.subr.bf16.mxu0 %v1981
    %2766 = vmatpush1.bf16.msra.mxu0 %v1980
    %2767 = vmatprep.subr.bf16.mxu0 %v1989
    %2768 = vmatpush1.bf16.msra.mxu0 %v1988
    %2769 = vmatprep.subr.bf16.mxu0 %v1997
    %2770 = vmatpush1.bf16.msra.mxu0 %v1996
    %2771 = vmatprep.mubr.bf16.mxu0 %v132
    %2772 = vmatmul.mubr.bf16.gmra.mrb[0].mxu0 %v131
    %v2773 = vpop.f32.mrb[0].mxu0
    %v2774 = vadd.f32 %v2733, %v2773
    %v2775 = vpop.f32.mrb[0].mxu0
    %v2776 = vadd.f32 %v2735, %v2775
    %v2777 = vpop.f32.mrb[0].mxu0
    %v2778 = vpop.f32.mrb[0].mxu0
    %2779 = vdwg.mxu0
    %2780 = vmatprep.subr.bf16.mxu0 %v2005
    %2781 = vmatpush1.bf16.msra.mxu0 %v2004
    %2782 = vmatprep.subr.bf16.mxu0 %v2013
    %2783 = vmatpush1.bf16.msra.mxu0 %v2012
    %2784 = vmatprep.subr.bf16.mxu0 %v2021
    %2785 = vmatpush1.bf16.msra.mxu0 %v2020
    %2786 = vmatprep.subr.bf16.mxu0 %v2029
    %2787 = vmatpush1.bf16.msra.mxu0 %v2028
    %2788 = vmatprep.subr.bf16.mxu0 %v2037
    %2789 = vmatpush1.bf16.msra.mxu0 %v2036
    %2790 = vmatprep.subr.bf16.mxu0 %v2045
    %2791 = vmatpush1.bf16.msra.mxu0 %v2044
    %2792 = vmatprep.subr.bf16.mxu0 %v2053
    %2793 = vmatpush1.bf16.msra.mxu0 %v2052
    %2794 = vmatprep.subr.bf16.mxu0 %v2061
    %2795 = vmatpush1.bf16.msra.mxu0 %v2060
    %2796 = vmatprep.subr.bf16.mxu0 %v2069
    %2797 = vmatpush1.bf16.msra.mxu0 %v2068
    %2798 = vmatprep.subr.bf16.mxu0 %v2077
    %2799 = vmatpush1.bf16.msra.mxu0 %v2076
    %2800 = vmatprep.subr.bf16.mxu0 %v2085
    %2801 = vmatpush1.bf16.msra.mxu0 %v2084
    %2802 = vmatprep.subr.bf16.mxu0 %v2093
    %2803 = vmatpush1.bf16.msra.mxu0 %v2092
    %2804 = vmatprep.subr.bf16.mxu0 %v2101
    %2805 = vmatpush1.bf16.msra.mxu0 %v2100
    %2806 = vmatprep.subr.bf16.mxu0 %v2109
    %2807 = vmatpush1.bf16.msra.mxu0 %v2108
    %2808 = vmatprep.subr.bf16.mxu0 %v2117
    %2809 = vmatpush1.bf16.msra.mxu0 %v2116
    %2810 = vmatprep.subr.bf16.mxu0 %v2125
    %2811 = vmatpush1.bf16.msra.mxu0 %v2124
    %2812 = vmatprep.mubr.bf16.mxu0 %v134
    %2813 = vmatmul.mubr.bf16.gmra.mrb[0].mxu0 %v133
    %v2814 = vpop.f32.mrb[0].mxu0
    %v2815 = vadd.f32 %v2774, %v2814
    %v2816 = vpop.f32.mrb[0].mxu0
    %v2817 = vadd.f32 %v2776, %v2816
    %v2818 = vpop.f32.mrb[0].mxu0
    %v2819 = vpop.f32.mrb[0].mxu0
    %2820 = vdwg.mxu0
    %2821 = vmatprep.subr.bf16.mxu0 %v2133
    %2822 = vmatpush1.bf16.msra.mxu0 %v2132
    %2823 = vmatprep.subr.bf16.mxu0 0
    %2824 = vmatpush1.bf16.msra.mxu0 0
    %2825 = vmatprep.subr.bf16.mxu0 0
    %2826 = vmatpush1.bf16.msra.mxu0 0
    %2827 = vmatprep.subr.bf16.mxu0 0
    %2828 = vmatpush1.bf16.msra.mxu0 0
    %2829 = vmatprep.subr.bf16.mxu0 0
    %2830 = vmatpush1.bf16.msra.mxu0 0
    %2831 = vmatprep.subr.bf16.mxu0 0
    %2832 = vmatpush1.bf16.msra.mxu0 0
    %2833 = vmatprep.subr.bf16.mxu0 0
    %2834 = vmatpush1.bf16.msra.mxu0 0
    %2835 = vmatprep.subr.bf16.mxu0 0
    %2836 = vmatpush1.bf16.msra.mxu0 0
    %2837 = vmatprep.subr.bf16.mxu0 0
    %2838 = vmatpush1.bf16.msra.mxu0 0
    %2839 = vmatprep.subr.bf16.mxu0 0
    %2840 = vmatpush1.bf16.msra.mxu0 0
    %2841 = vmatprep.subr.bf16.mxu0 0
    %2842 = vmatpush1.bf16.msra.mxu0 0
    %2843 = vmatprep.subr.bf16.mxu0 0
    %2844 = vmatpush1.bf16.msra.mxu0 0
    %2845 = vmatprep.subr.bf16.mxu0 0
    %2846 = vmatpush1.bf16.msra.mxu0 0
    %2847 = vmatprep.subr.bf16.mxu0 0
    %2848 = vmatpush1.bf16.msra.mxu0 0
    %2849 = vmatprep.subr.bf16.mxu0 0
    %2850 = vmatpush1.bf16.msra.mxu0 0
    %2851 = vmatprep.subr.bf16.mxu0 0
    %2852 = vmatpush1.bf16.msra.mxu0 0
    %2853 = vmatprep.mubr.bf16.mxu0 0
    %2854 = vmatmul.mubr.bf16.gmra.mrb[0].mxu0 %v2532
    %v2855 = vpop.f32.mrb[0].mxu0
    %v2856 = vadd.f32 %v2815, %v2855
    %v2857 = vpop.f32.mrb[0].mxu0
    %v2858 = vadd.f32 %v2817, %v2857
    %v2859 = vpop.f32.mrb[0].mxu0
    %v2860 = vpop.f32.mrb[0].mxu0
    %2861 = vdwg.mxu0
    %2862 = vmatprep.subr.bf16.mxu0 %v1751
    %2863 = vmatpush1.bf16.msra.mxu0 %v1750
    %2864 = vmatprep.subr.bf16.mxu0 %v1759
    %2865 = vmatpush1.bf16.msra.mxu0 %v1758
    %2866 = vmatprep.subr.bf16.mxu0 %v1767
    %2867 = vmatpush1.bf16.msra.mxu0 %v1766
    %2868 = vmatprep.subr.bf16.mxu0 %v1775
    %2869 = vmatpush1.bf16.msra.mxu0 %v1774
    %2870 = vmatprep.subr.bf16.mxu0 %v1783
    %2871 = vmatpush1.bf16.msra.mxu0 %v1782
    %2872 = vmatprep.subr.bf16.mxu0 %v1791
    %2873 = vmatpush1.bf16.msra.mxu0 %v1790
    %2874 = vmatprep.subr.bf16.mxu0 %v1799
    %2875 = vmatpush1.bf16.msra.mxu0 %v1798
    %2876 = vmatprep.subr.bf16.mxu0 %v1807
    %2877 = vmatpush1.bf16.msra.mxu0 %v1806
    %2878 = vmatprep.subr.bf16.mxu0 %v1815
    %2879 = vmatpush1.bf16.msra.mxu0 %v1814
    %2880 = vmatprep.subr.bf16.mxu0 %v1823
    %2881 = vmatpush1.bf16.msra.mxu0 %v1822
    %2882 = vmatprep.subr.bf16.mxu0 %v1831
    %2883 = vmatpush1.bf16.msra.mxu0 %v1830
    %2884 = vmatprep.subr.bf16.mxu0 %v1839
    %2885 = vmatpush1.bf16.msra.mxu0 %v1838
    %2886 = vmatprep.subr.bf16.mxu0 %v1847
    %2887 = vmatpush1.bf16.msra.mxu0 %v1846
    %2888 = vmatprep.subr.bf16.mxu0 %v1855
    %2889 = vmatpush1.bf16.msra.mxu0 %v1854
    %2890 = vmatprep.subr.bf16.mxu0 %v1863
    %2891 = vmatpush1.bf16.msra.mxu0 %v1862
    %2892 = vmatprep.subr.bf16.mxu0 %v1871
    %2893 = vmatpush1.bf16.msra.mxu0 %v1870
    %2894 = vmatprep.mubr.bf16.mxu0 %v130
    %2895 = vmatmul.mubr.bf16.gmra.mrb[0].mxu0 %v129
    %v2896 = vpop.f32.mrb[0].mxu0
    %v2897 = vadd.f32 %v549, %v2896
    %v2898 = vpop.f32.mrb[0].mxu0
    %v2899 = vadd.f32 %v553, %v2898
    %v2900 = vpop.f32.mrb[0].mxu0
    %v2901 = vpop.f32.mrb[0].mxu0
    %2902 = vdwg.mxu0
    %2903 = vmatprep.subr.bf16.mxu0 %v1879
    %2904 = vmatpush1.bf16.msra.mxu0 %v1878
    %2905 = vmatprep.subr.bf16.mxu0 %v1887
    %2906 = vmatpush1.bf16.msra.mxu0 %v1886
    %2907 = vmatprep.subr.bf16.mxu0 %v1895
    %2908 = vmatpush1.bf16.msra.mxu0 %v1894
    %2909 = vmatprep.subr.bf16.mxu0 %v1903
    %2910 = vmatpush1.bf16.msra.mxu0 %v1902
    %2911 = vmatprep.subr.bf16.mxu0 %v1911
    %2912 = vmatpush1.bf16.msra.mxu0 %v1910
    %2913 = vmatprep.subr.bf16.mxu0 %v1919
    %2914 = vmatpush1.bf16.msra.mxu0 %v1918
    %2915 = vmatprep.subr.bf16.mxu0 %v1927
    %2916 = vmatpush1.bf16.msra.mxu0 %v1926
    %2917 = vmatprep.subr.bf16.mxu0 %v1935
    %2918 = vmatpush1.bf16.msra.mxu0 %v1934
    %2919 = vmatprep.subr.bf16.mxu0 %v1943
    %2920 = vmatpush1.bf16.msra.mxu0 %v1942
    %2921 = vmatprep.subr.bf16.mxu0 %v1951
    %2922 = vmatpush1.bf16.msra.mxu0 %v1950
    %2923 = vmatprep.subr.bf16.mxu0 %v1959
    %2924 = vmatpush1.bf16.msra.mxu0 %v1958
    %2925 = vmatprep.subr.bf16.mxu0 %v1967
    %2926 = vmatpush1.bf16.msra.mxu0 %v1966
    %2927 = vmatprep.subr.bf16.mxu0 %v1975
    %2928 = vmatpush1.bf16.msra.mxu0 %v1974
    %2929 = vmatprep.subr.bf16.mxu0 %v1983
    %2930 = vmatpush1.bf16.msra.mxu0 %v1982
    %2931 = vmatprep.subr.bf16.mxu0 %v1991
    %2932 = vmatpush1.bf16.msra.mxu0 %v1990
    %2933 = vmatprep.subr.bf16.mxu0 %v1999
    %2934 = vmatpush1.bf16.msra.mxu0 %v1998
    %2935 = vmatprep.mubr.bf16.mxu0 %v132
    %2936 = vmatmul.mubr.bf16.gmra.mrb[0].mxu0 %v131
    %v2937 = vpop.f32.mrb[0].mxu0
    %v2938 = vadd.f32 %v2897, %v2937
    %v2939 = vpop.f32.mrb[0].mxu0
    %v2940 = vadd.f32 %v2899, %v2939
    %v2941 = vpop.f32.mrb[0].mxu0
    %v2942 = vpop.f32.mrb[0].mxu0
    %2943 = vdwg.mxu0
    %2944 = vmatprep.subr.bf16.mxu0 %v2007
    %2945 = vmatpush1.bf16.msra.mxu0 %v2006
    %2946 = vmatprep.subr.bf16.mxu0 %v2015
    %2947 = vmatpush1.bf16.msra.mxu0 %v2014
    %2948 = vmatprep.subr.bf16.mxu0 %v2023
    %2949 = vmatpush1.bf16.msra.mxu0 %v2022
    %2950 = vmatprep.subr.bf16.mxu0 %v2031
    %2951 = vmatpush1.bf16.msra.mxu0 %v2030
    %2952 = vmatprep.subr.bf16.mxu0 %v2039
    %2953 = vmatpush1.bf16.msra.mxu0 %v2038
    %2954 = vmatprep.subr.bf16.mxu0 %v2047
    %2955 = vmatpush1.bf16.msra.mxu0 %v2046
    %2956 = vmatprep.subr.bf16.mxu0 %v2055
    %2957 = vmatpush1.bf16.msra.mxu0 %v2054
    %2958 = vmatprep.subr.bf16.mxu0 %v2063
    %2959 = vmatpush1.bf16.msra.mxu0 %v2062
    %2960 = vmatprep.subr.bf16.mxu0 %v2071
    %2961 = vmatpush1.bf16.msra.mxu0 %v2070
    %2962 = vmatprep.subr.bf16.mxu0 %v2079
    %2963 = vmatpush1.bf16.msra.mxu0 %v2078
    %2964 = vmatprep.subr.bf16.mxu0 %v2087
    %2965 = vmatpush1.bf16.msra.mxu0 %v2086
    %2966 = vmatprep.subr.bf16.mxu0 %v2095
    %2967 = vmatpush1.bf16.msra.mxu0 %v2094
    %2968 = vmatprep.subr.bf16.mxu0 %v2103
    %2969 = vmatpush1.bf16.msra.mxu0 %v2102
    %2970 = vmatprep.subr.bf16.mxu0 %v2111
    %2971 = vmatpush1.bf16.msra.mxu0 %v2110
    %2972 = vmatprep.subr.bf16.mxu0 %v2119
    %2973 = vmatpush1.bf16.msra.mxu0 %v2118
    %2974 = vmatprep.subr.bf16.mxu0 %v2127
    %2975 = vmatpush1.bf16.msra.mxu0 %v2126
    %2976 = vmatprep.mubr.bf16.mxu0 %v134
    %2977 = vmatmul.mubr.bf16.gmra.mrb[0].mxu0 %v133
    %v2978 = vpop.f32.mrb[0].mxu0
    %v2979 = vadd.f32 %v2938, %v2978
    %v2980 = vpop.f32.mrb[0].mxu0
    %v2981 = vadd.f32 %v2940, %v2980
    %v2982 = vpop.f32.mrb[0].mxu0
    %v2983 = vpop.f32.mrb[0].mxu0
    %2984 = vdwg.mxu0
    %2985 = vmatprep.subr.bf16.mxu0 %v2135
    %2986 = vmatpush1.bf16.msra.mxu0 %v2134
    %2987 = vmatprep.subr.bf16.mxu0 0
    %2988 = vmatpush1.bf16.msra.mxu0 0
    %2989 = vmatprep.subr.bf16.mxu0 0
    %2990 = vmatpush1.bf16.msra.mxu0 0
    %2991 = vmatprep.subr.bf16.mxu0 0
    %2992 = vmatpush1.bf16.msra.mxu0 0
    %2993 = vmatprep.subr.bf16.mxu0 0
    %2994 = vmatpush1.bf16.msra.mxu0 0
    %2995 = vmatprep.subr.bf16.mxu0 0
    %2996 = vmatpush1.bf16.msra.mxu0 0
    %2997 = vmatprep.subr.bf16.mxu0 0
    %2998 = vmatpush1.bf16.msra.mxu0 0
    %2999 = vmatprep.subr.bf16.mxu0 0
    %3000 = vmatpush1.bf16.msra.mxu0 0
    %3001 = vmatprep.subr.bf16.mxu0 0
    %3002 = vmatpush1.bf16.msra.mxu0 0
    %3003 = vmatprep.subr.bf16.mxu0 0
    %3004 = vmatpush1.bf16.msra.mxu0 0
    %3005 = vmatprep.subr.bf16.mxu0 0
    %3006 = vmatpush1.bf16.msra.mxu0 0
    %3007 = vmatprep.subr.bf16.mxu0 0
    %3008 = vmatpush1.bf16.msra.mxu0 0
    %3009 = vmatprep.subr.bf16.mxu0 0
    %3010 = vmatpush1.bf16.msra.mxu0 0
    %3011 = vmatprep.subr.bf16.mxu0 0
    %3012 = vmatpush1.bf16.msra.mxu0 0
    %3013 = vmatprep.subr.bf16.mxu0 0
    %3014 = vmatpush1.bf16.msra.mxu0 0
    %3015 = vmatprep.subr.bf16.mxu0 0
    %3016 = vmatpush1.bf16.msra.mxu0 0
    %3017 = vmatprep.mubr.bf16.mxu0 0
    %3018 = vmatmul.mubr.bf16.gmra.mrb[0].mxu0 %v2532
    %v3019 = vpop.f32.mrb[0].mxu0
    %v3020 = vadd.f32 %v2979, %v3019
    %v3021 = vpop.f32.mrb[0].mxu0
    %v3022 = vadd.f32 %v2981, %v3021
    %v3023 = vpop.f32.mrb[0].mxu0
    %v3024 = vpop.f32.mrb[0].mxu0
    %3025 = vdwg.mxu0
    %3026 = vmatprep.subr.bf16.mxu0 %v1753
    %3027 = vmatpush1.bf16.msra.mxu0 %v1752
    %3028 = vmatprep.subr.bf16.mxu0 %v1761
    %3029 = vmatpush1.bf16.msra.mxu0 %v1760
    %3030 = vmatprep.subr.bf16.mxu0 %v1769
    %3031 = vmatpush1.bf16.msra.mxu0 %v1768
    %3032 = vmatprep.subr.bf16.mxu0 %v1777
    %3033 = vmatpush1.bf16.msra.mxu0 %v1776
    %3034 = vmatprep.subr.bf16.mxu0 %v1785
    %3035 = vmatpush1.bf16.msra.mxu0 %v1784
    %3036 = vmatprep.subr.bf16.mxu0 %v1793
    %3037 = vmatpush1.bf16.msra.mxu0 %v1792
    %3038 = vmatprep.subr.bf16.mxu0 %v1801
    %3039 = vmatpush1.bf16.msra.mxu0 %v1800
    %3040 = vmatprep.subr.bf16.mxu0 %v1809
    %3041 = vmatpush1.bf16.msra.mxu0 %v1808
    %3042 = vmatprep.subr.bf16.mxu0 %v1817
    %3043 = vmatpush1.bf16.msra.mxu0 %v1816
    %3044 = vmatprep.subr.bf16.mxu0 %v1825
    %3045 = vmatpush1.bf16.msra.mxu0 %v1824
    %3046 = vmatprep.subr.bf16.mxu0 %v1833
    %3047 = vmatpush1.bf16.msra.mxu0 %v1832
    %3048 = vmatprep.subr.bf16.mxu0 %v1841
    %3049 = vmatpush1.bf16.msra.mxu0 %v1840
    %3050 = vmatprep.subr.bf16.mxu0 %v1849
    %3051 = vmatpush1.bf16.msra.mxu0 %v1848
    %3052 = vmatprep.subr.bf16.mxu0 %v1857
    %3053 = vmatpush1.bf16.msra.mxu0 %v1856
    %3054 = vmatprep.subr.bf16.mxu0 %v1865
    %3055 = vmatpush1.bf16.msra.mxu0 %v1864
    %3056 = vmatprep.subr.bf16.mxu0 %v1873
    %3057 = vmatpush1.bf16.msra.mxu0 %v1872
    %3058 = vmatprep.mubr.bf16.mxu0 %v130
    %3059 = vmatmul.mubr.bf16.gmra.mrb[0].mxu0 %v129
    %v3060 = vpop.f32.mrb[0].mxu0
    %v3061 = vadd.f32 %v557, %v3060
    %v3062 = vpop.f32.mrb[0].mxu0
    %v3063 = vadd.f32 %v561, %v3062
    %v3064 = vpop.f32.mrb[0].mxu0
    %v3065 = vpop.f32.mrb[0].mxu0
    %3066 = vdwg.mxu0
    %3067 = vmatprep.subr.bf16.mxu0 %v1881
    %3068 = vmatpush1.bf16.msra.mxu0 %v1880
    %3069 = vmatprep.subr.bf16.mxu0 %v1889
    %3070 = vmatpush1.bf16.msra.mxu0 %v1888
    %3071 = vmatprep.subr.bf16.mxu0 %v1897
    %3072 = vmatpush1.bf16.msra.mxu0 %v1896
    %3073 = vmatprep.subr.bf16.mxu0 %v1905
    %3074 = vmatpush1.bf16.msra.mxu0 %v1904
    %3075 = vmatprep.subr.bf16.mxu0 %v1913
    %3076 = vmatpush1.bf16.msra.mxu0 %v1912
    %3077 = vmatprep.subr.bf16.mxu0 %v1921
    %3078 = vmatpush1.bf16.msra.mxu0 %v1920
    %3079 = vmatprep.subr.bf16.mxu0 %v1929
    %3080 = vmatpush1.bf16.msra.mxu0 %v1928
    %3081 = vmatprep.subr.bf16.mxu0 %v1937
    %3082 = vmatpush1.bf16.msra.mxu0 %v1936
    %3083 = vmatprep.subr.bf16.mxu0 %v1945
    %3084 = vmatpush1.bf16.msra.mxu0 %v1944
    %3085 = vmatprep.subr.bf16.mxu0 %v1953
    %3086 = vmatpush1.bf16.msra.mxu0 %v1952
    %3087 = vmatprep.subr.bf16.mxu0 %v1961
    %3088 = vmatpush1.bf16.msra.mxu0 %v1960
    %3089 = vmatprep.subr.bf16.mxu0 %v1969
    %3090 = vmatpush1.bf16.msra.mxu0 %v1968
    %3091 = vmatprep.subr.bf16.mxu0 %v1977
    %3092 = vmatpush1.bf16.msra.mxu0 %v1976
    %3093 = vmatprep.subr.bf16.mxu0 %v1985
    %3094 = vmatpush1.bf16.msra.mxu0 %v1984
    %3095 = vmatprep.subr.bf16.mxu0 %v1993
    %3096 = vmatpush1.bf16.msra.mxu0 %v1992
    %3097 = vmatprep.subr.bf16.mxu0 %v2001
    %3098 = vmatpush1.bf16.msra.mxu0 %v2000
    %3099 = vmatprep.mubr.bf16.mxu0 %v132
    %3100 = vmatmul.mubr.bf16.gmra.mrb[0].mxu0 %v131
    %v3101 = vpop.f32.mrb[0].mxu0
    %v3102 = vadd.f32 %v3061, %v3101
    %v3103 = vpop.f32.mrb[0].mxu0
    %v3104 = vadd.f32 %v3063, %v3103
    %v3105 = vpop.f32.mrb[0].mxu0
    %v3106 = vpop.f32.mrb[0].mxu0
    %3107 = vdwg.mxu0
    %3108 = vmatprep.subr.bf16.mxu0 %v2009
    %3109 = vmatpush1.bf16.msra.mxu0 %v2008
    %3110 = vmatprep.subr.bf16.mxu0 %v2017
    %3111 = vmatpush1.bf16.msra.mxu0 %v2016
    %3112 = vmatprep.subr.bf16.mxu0 %v2025
    %3113 = vmatpush1.bf16.msra.mxu0 %v2024
    %3114 = vmatprep.subr.bf16.mxu0 %v2033
    %3115 = vmatpush1.bf16.msra.mxu0 %v2032
    %3116 = vmatprep.subr.bf16.mxu0 %v2041
    %3117 = vmatpush1.bf16.msra.mxu0 %v2040
    %3118 = vmatprep.subr.bf16.mxu0 %v2049
    %3119 = vmatpush1.bf16.msra.mxu0 %v2048
    %3120 = vmatprep.subr.bf16.mxu0 %v2057
    %3121 = vmatpush1.bf16.msra.mxu0 %v2056
    %3122 = vmatprep.subr.bf16.mxu0 %v2065
    %3123 = vmatpush1.bf16.msra.mxu0 %v2064
    %3124 = vmatprep.subr.bf16.mxu0 %v2073
    %3125 = vmatpush1.bf16.msra.mxu0 %v2072
    %3126 = vmatprep.subr.bf16.mxu0 %v2081
    %3127 = vmatpush1.bf16.msra.mxu0 %v2080
    %3128 = vmatprep.subr.bf16.mxu0 %v2089
    %3129 = vmatpush1.bf16.msra.mxu0 %v2088
    %3130 = vmatprep.subr.bf16.mxu0 %v2097
    %3131 = vmatpush1.bf16.msra.mxu0 %v2096
    %3132 = vmatprep.subr.bf16.mxu0 %v2105
    %3133 = vmatpush1.bf16.msra.mxu0 %v2104
    %3134 = vmatprep.subr.bf16.mxu0 %v2113
    %3135 = vmatpush1.bf16.msra.mxu0 %v2112
    %3136 = vmatprep.subr.bf16.mxu0 %v2121
    %3137 = vmatpush1.bf16.msra.mxu0 %v2120
    %3138 = vmatprep.subr.bf16.mxu0 %v2129
    %3139 = vmatpush1.bf16.msra.mxu0 %v2128
    %3140 = vmatprep.mubr.bf16.mxu0 %v134
    %3141 = vmatmul.mubr.bf16.gmra.mrb[0].mxu0 %v133
    %v3142 = vpop.f32.mrb[0].mxu0
    %v3143 = vadd.f32 %v3102, %v3142
    %v3144 = vpop.f32.mrb[0].mxu0
    %v3145 = vadd.f32 %v3104, %v3144
    %v3146 = vpop.f32.mrb[0].mxu0
    %v3147 = vpop.f32.mrb[0].mxu0
    %3148 = vdwg.mxu0
    %3149 = vmatprep.subr.bf16.mxu0 %v2137
    %3150 = vmatpush1.bf16.msra.mxu0 %v2136
    %3151 = vmatprep.subr.bf16.mxu0 0
    %3152 = vmatpush1.bf16.msra.mxu0 0
    %3153 = vmatprep.subr.bf16.mxu0 0
    %3154 = vmatpush1.bf16.msra.mxu0 0
    %3155 = vmatprep.subr.bf16.mxu0 0
    %3156 = vmatpush1.bf16.msra.mxu0 0
    %3157 = vmatprep.subr.bf16.mxu0 0
    %3158 = vmatpush1.bf16.msra.mxu0 0
    %3159 = vmatprep.subr.bf16.mxu0 0
    %3160 = vmatpush1.bf16.msra.mxu0 0
    %3161 = vmatprep.subr.bf16.mxu0 0
    %3162 = vmatpush1.bf16.msra.mxu0 0
    %3163 = vmatprep.subr.bf16.mxu0 0
    %3164 = vmatpush1.bf16.msra.mxu0 0
    %3165 = vmatprep.subr.bf16.mxu0 0
    %3166 = vmatpush1.bf16.msra.mxu0 0
    %3167 = vmatprep.subr.bf16.mxu0 0
    %3168 = vmatpush1.bf16.msra.mxu0 0
    %3169 = vmatprep.subr.bf16.mxu0 0
    %3170 = vmatpush1.bf16.msra.mxu0 0
    %3171 = vmatprep.subr.bf16.mxu0 0
    %3172 = vmatpush1.bf16.msra.mxu0 0
    %3173 = vmatprep.subr.bf16.mxu0 0
    %3174 = vmatpush1.bf16.msra.mxu0 0
    %3175 = vmatprep.subr.bf16.mxu0 0
    %3176 = vmatpush1.bf16.msra.mxu0 0
    %3177 = vmatprep.subr.bf16.mxu0 0
    %3178 = vmatpush1.bf16.msra.mxu0 0
    %3179 = vmatprep.subr.bf16.mxu0 0
    %3180 = vmatpush1.bf16.msra.mxu0 0
    %3181 = vmatprep.mubr.bf16.mxu0 0
    %3182 = vmatmul.mubr.bf16.gmra.mrb[0].mxu0 %v2532
    %v3183 = vpop.f32.mrb[0].mxu0
    %v3184 = vadd.f32 %v3143, %v3183
    %v3185 = vpop.f32.mrb[0].mxu0
    %v3186 = vadd.f32 %v3145, %v3185
    %v3187 = vpop.f32.mrb[0].mxu0
    %v3188 = vpop.f32.mrb[0].mxu0
    %3189 = vdwg.mxu0
    %vm3190 = vcmp.gt.f32.partialorder %v2692, 0.0
    %vm3191 = vcmp.gt.f32.partialorder %v2694, 0.0
    %vm3192 = vcmp.gt.f32.partialorder %v2856, 0.0
    %vm3193 = vcmp.gt.f32.partialorder %v2858, 0.0
    %vm3194 = vcmp.gt.f32.partialorder %v3020, 0.0
    %vm3195 = vcmp.gt.f32.partialorder %v3022, 0.0
    %vm3196 = vcmp.gt.f32.partialorder %v3184, 0.0
    %vm3197 = vcmp.gt.f32.partialorder %v3186, 0.0
    %v3198 = vmul.f32 %v2692, 0.2
    %v3199 = vmul.f32 %v2694, 0.2
    %v3200 = vmul.f32 %v2856, 0.2
    %v3201 = vmul.f32 %v2858, 0.2
    %v3202 = vmul.f32 %v3020, 0.2
    %v3203 = vmul.f32 %v3022, 0.2
    %v3204 = vmul.f32 %v3184, 0.2
    %v3205 = vmul.f32 %v3186, 0.2
    %v3206 = vsel %vm3190, %v2692, %v3198
    %v3207 = vsel %vm3191, %v2694, %v3199
    %v3208 = vsel %vm3192, %v2856, %v3200
    %v3209 = vsel %vm3193, %v2858, %v3201
    %v3210 = vsel %vm3194, %v3020, %v3202
    %v3211 = vsel %vm3195, %v3022, %v3203
    %v3212 = vsel %vm3196, %v3184, %v3204
    %v3213 = vsel %vm3197, %v3186, %v3205
    %v3214 = vpack.c.bf16 %v3206, %v3206
    %v3215 = vpack.c.bf16 %v3207, %v3207
    %v3216 = vpack.c.bf16 %v3208, %v3208
    %v3217 = vpack.c.bf16 %v3209, %v3209
    %v3218 = vpack.c.bf16 %v3210, %v3210
    %v3219 = vpack.c.bf16 %v3211, %v3211
    %v3220 = vpack.c.bf16 %v3212, %v3212
    %v3221 = vpack.c.bf16 %v3213, %v3213
    %v3222 = vld [vmem:[#allocation8] sm:$0xff]
    %v3223 = vld [vmem:[#allocation8 + $0x8] sm:$0xff]
    %v3224 = vld [vmem:[#allocation8 + $0x10] sm:$0xff]
    %v3225 = vld [vmem:[#allocation8 + $0x18] sm:$0xff]
    %v3226 = vld [vmem:[#allocation8 + $0x20] sm:$0xff]
    %v3227 = vld [vmem:[#allocation8 + $0x28] sm:$0xff]
    %v3228 = vld [vmem:[#allocation8 + $0x30] sm:$0xff]
    %v3229 = vld [vmem:[#allocation8 + $0x38] sm:$0xff]
    %v3230 = vld [vmem:[#allocation8 + $0x40] sm:$0xff]
    %v3231 = vld [vmem:[#allocation8 + $0x48] sm:$0xff]
    %v3232 = vld [vmem:[#allocation8 + $0x50] sm:$0xff]
    %v3233 = vld [vmem:[#allocation8 + $0x58] sm:$0xff]
    %v3234 = vld [vmem:[#allocation8 + $0x60] sm:$0xff]
    %v3235 = vld [vmem:[#allocation8 + $0x68] sm:$0xff]
    %v3236 = vld [vmem:[#allocation8 + $0x70] sm:$0xff]
    %v3237 = vld [vmem:[#allocation8 + $0x78] sm:$0xff]
    %v3238 = vld [vmem:[#allocation8 + $0x80] sm:$0xff]
    %v3239 = vld [vmem:[#allocation8 + $0x88] sm:$0xff]
    %v3240 = vld [vmem:[#allocation8 + $0x90] sm:$0xff]
    %v3241 = vld [vmem:[#allocation8 + $0x98] sm:$0xff]
    %v3242 = vld [vmem:[#allocation8 + $0xa0] sm:$0xff]
    %v3243 = vld [vmem:[#allocation8 + $0xa8] sm:$0xff]
    %v3244 = vld [vmem:[#allocation8 + $0xb0] sm:$0xff]
    %v3245 = vld [vmem:[#allocation8 + $0xb8] sm:$0xff]
    %v3246 = vld [vmem:[#allocation8 + $0xc0] sm:$0xff]
    %v3247 = vld [vmem:[#allocation8 + $0xc8] sm:$0xff]
    %v3248 = vld [vmem:[#allocation8 + $0xd0] sm:$0xff]
    %v3249 = vld [vmem:[#allocation8 + $0xd8] sm:$0xff]
    %v3250 = vld [vmem:[#allocation8 + $0xe0] sm:$0xff]
    %v3251 = vld [vmem:[#allocation8 + $0xe8] sm:$0xff]
    %v3252 = vld [vmem:[#allocation8 + $0xf0] sm:$0xff]
    %v3253 = vld [vmem:[#allocation8 + $0xf8] sm:$0xff]
    %v3254 = vld [vmem:[#allocation8 + $0x100] sm:$0xff]
    %v3255 = vld [vmem:[#allocation8 + $0x108] sm:$0xff]
    %v3256 = vld [vmem:[#allocation8 + $0x110] sm:$0xff]
    %v3257 = vld [vmem:[#allocation8 + $0x118] sm:$0xff]
    %v3258 = vld [vmem:[#allocation8 + $0x120] sm:$0xff]
    %v3259 = vld [vmem:[#allocation8 + $0x128] sm:$0xff]
    %v3260 = vld [vmem:[#allocation8 + $0x130] sm:$0xff]
    %v3261 = vld [vmem:[#allocation8 + $0x138] sm:$0xff]
    %v3262 = vld [vmem:[#allocation8 + $0x140] sm:$0xff]
    %v3263 = vld [vmem:[#allocation8 + $0x148] sm:$0xff]
    %v3264 = vld [vmem:[#allocation8 + $0x150] sm:$0xff]
    %v3265 = vld [vmem:[#allocation8 + $0x158] sm:$0xff]
    %v3266 = vld [vmem:[#allocation8 + $0x160] sm:$0xff]
    %v3267 = vld [vmem:[#allocation8 + $0x168] sm:$0xff]
    %v3268 = vld [vmem:[#allocation8 + $0x170] sm:$0xff]
    %v3269 = vld [vmem:[#allocation8 + $0x178] sm:$0xff]
    %v3270 = vld [vmem:[#allocation8 + $0x180] sm:$0xff]
    %v3271 = vld [vmem:[#allocation8 + $0x188] sm:$0xff]
    %v3272 = vld [vmem:[#allocation8 + $0x190] sm:$0xff]
    %v3273 = vld [vmem:[#allocation8 + $0x198] sm:$0xff]
    %v3274 = vld [vmem:[#allocation8 + $0x1a0] sm:$0xff]
    %v3275 = vld [vmem:[#allocation8 + $0x1a8] sm:$0xff]
    %v3276 = vld [vmem:[#allocation8 + $0x1b0] sm:$0xff]
    %v3277 = vld [vmem:[#allocation8 + $0x1b8] sm:$0xff]
    %v3278 = vld [vmem:[#allocation8 + $0x1c0] sm:$0xff]
    %v3279 = vld [vmem:[#allocation8 + $0x1c8] sm:$0xff]
    %v3280 = vld [vmem:[#allocation8 + $0x1d0] sm:$0xff]
    %v3281 = vld [vmem:[#allocation8 + $0x1d8] sm:$0xff]
    %v3282 = vld [vmem:[#allocation8 + $0x1e0] sm:$0xff]
    %v3283 = vld [vmem:[#allocation8 + $0x1e8] sm:$0xff]
    %v3284 = vld [vmem:[#allocation8 + $0x1f0] sm:$0xff]
    %v3285 = vld [vmem:[#allocation8 + $0x1f8] sm:$0xff]
    %v3286 = vld [vmem:[#allocation8 + $0x200] sm:$0xff]
    %v3287 = vld [vmem:[#allocation8 + $0x208] sm:$0xff]
    %v3288 = vld [vmem:[#allocation8 + $0x210] sm:$0xff]
    %v3289 = vld [vmem:[#allocation8 + $0x218] sm:$0xff]
    %v3290 = vld [vmem:[#allocation8 + $0x220] sm:$0xff]
    %v3291 = vld [vmem:[#allocation8 + $0x228] sm:$0xff]
    %v3292 = vld [vmem:[#allocation8 + $0x230] sm:$0xff]
    %v3293 = vld [vmem:[#allocation8 + $0x238] sm:$0xff]
    %v3294 = vld [vmem:[#allocation8 + $0x240] sm:$0xff]
    %v3295 = vld [vmem:[#allocation8 + $0x248] sm:$0xff]
    %v3296 = vld [vmem:[#allocation8 + $0x250] sm:$0xff]
    %v3297 = vld [vmem:[#allocation8 + $0x258] sm:$0xff]
    %v3298 = vld [vmem:[#allocation8 + $0x260] sm:$0xff]
    %v3299 = vld [vmem:[#allocation8 + $0x268] sm:$0xff]
    %v3300 = vld [vmem:[#allocation8 + $0x270] sm:$0xff]
    %v3301 = vld [vmem:[#allocation8 + $0x278] sm:$0xff]
    %v3302 = vld [vmem:[#allocation8 + $0x280] sm:$0xff]
    %v3303 = vld [vmem:[#allocation8 + $0x288] sm:$0xff]
    %v3304 = vld [vmem:[#allocation8 + $0x290] sm:$0xff]
    %v3305 = vld [vmem:[#allocation8 + $0x298] sm:$0xff]
    %v3306 = vld [vmem:[#allocation8 + $0x2a0] sm:$0xff]
    %v3307 = vld [vmem:[#allocation8 + $0x2a8] sm:$0xff]
    %v3308 = vld [vmem:[#allocation8 + $0x2b0] sm:$0xff]
    %v3309 = vld [vmem:[#allocation8 + $0x2b8] sm:$0xff]
    %v3310 = vld [vmem:[#allocation8 + $0x2c0] sm:$0xff]
    %v3311 = vld [vmem:[#allocation8 + $0x2c8] sm:$0xff]
    %v3312 = vld [vmem:[#allocation8 + $0x2d0] sm:$0xff]
    %v3313 = vld [vmem:[#allocation8 + $0x2d8] sm:$0xff]
    %v3314 = vld [vmem:[#allocation8 + $0x2e0] sm:$0xff]
    %v3315 = vld [vmem:[#allocation8 + $0x2e8] sm:$0xff]
    %v3316 = vld [vmem:[#allocation8 + $0x2f0] sm:$0xff]
    %v3317 = vld [vmem:[#allocation8 + $0x2f8] sm:$0xff]
    %v3318 = vld [vmem:[#allocation8 + $0x300] sm:$0xff]
    %v3319 = vld [vmem:[#allocation8 + $0x308] sm:$0xff]
    %v3320 = vld [vmem:[#allocation8 + $0x310] sm:$0xff]
    %v3321 = vld [vmem:[#allocation8 + $0x318] sm:$0xff]
    %v3322 = vld [vmem:[#allocation8 + $0x320] sm:$0xff]
    %v3323 = vld [vmem:[#allocation8 + $0x328] sm:$0xff]
    %v3324 = vld [vmem:[#allocation8 + $0x330] sm:$0xff]
    %v3325 = vld [vmem:[#allocation8 + $0x338] sm:$0xff]
    %v3326 = vld [vmem:[#allocation8 + $0x340] sm:$0xff]
    %v3327 = vld [vmem:[#allocation8 + $0x348] sm:$0xff]
    %v3328 = vld [vmem:[#allocation8 + $0x350] sm:$0xff]
    %v3329 = vld [vmem:[#allocation8 + $0x358] sm:$0xff]
    %v3330 = vld [vmem:[#allocation8 + $0x360] sm:$0xff]
    %v3331 = vld [vmem:[#allocation8 + $0x368] sm:$0xff]
    %v3332 = vld [vmem:[#allocation8 + $0x370] sm:$0xff]
    %v3333 = vld [vmem:[#allocation8 + $0x378] sm:$0xff]
    %v3334 = vld [vmem:[#allocation8 + $0x380] sm:$0xff]
    %v3335 = vld [vmem:[#allocation8 + $0x388] sm:$0xff]
    %v3336 = vld [vmem:[#allocation8 + $0x390] sm:$0xff]
    %v3337 = vld [vmem:[#allocation8 + $0x398] sm:$0xff]
    %v3338 = vld [vmem:[#allocation8 + $0x3a0] sm:$0xff]
    %v3339 = vld [vmem:[#allocation8 + $0x3a8] sm:$0xff]
    %v3340 = vld [vmem:[#allocation8 + $0x3b0] sm:$0xff]
    %v3341 = vld [vmem:[#allocation8 + $0x3b8] sm:$0xff]
    %v3342 = vld [vmem:[#allocation8 + $0x3c0] sm:$0xff]
    %v3343 = vld [vmem:[#allocation8 + $0x3c8] sm:$0xff]
    %v3344 = vld [vmem:[#allocation8 + $0x3d0] sm:$0xff]
    %v3345 = vld [vmem:[#allocation8 + $0x3d8] sm:$0xff]
    %v3346 = vld [vmem:[#allocation8 + $0x3e0] sm:$0xff]
    %v3347 = vld [vmem:[#allocation8 + $0x3e8] sm:$0xff]
    %v3348 = vld [vmem:[#allocation8 + $0x3f0] sm:$0xff]
    %v3349 = vld [vmem:[#allocation8 + $0x3f8] sm:$0xff]
    %v3350 = vld [vmem:[#allocation8 + $0x400] sm:$0xff]
    %v3351 = vld [vmem:[#allocation8 + $0x408] sm:$0xff]
    %v3352 = vld [vmem:[#allocation8 + $0x410] sm:$0xff]
    %v3353 = vld [vmem:[#allocation8 + $0x418] sm:$0xff]
    %v3354 = vld [vmem:[#allocation8 + $0x420] sm:$0xff]
    %v3355 = vld [vmem:[#allocation8 + $0x428] sm:$0xff]
    %v3356 = vld [vmem:[#allocation8 + $0x430] sm:$0xff]
    %v3357 = vld [vmem:[#allocation8 + $0x438] sm:$0xff]
    %v3358 = vld [vmem:[#allocation8 + $0x440] sm:$0xff]
    %v3359 = vld [vmem:[#allocation8 + $0x448] sm:$0xff]
    %v3360 = vld [vmem:[#allocation8 + $0x450] sm:$0xff]
    %v3361 = vld [vmem:[#allocation8 + $0x458] sm:$0xff]
    %v3362 = vld [vmem:[#allocation8 + $0x460] sm:$0xff]
    %v3363 = vld [vmem:[#allocation8 + $0x468] sm:$0xff]
    %v3364 = vld [vmem:[#allocation8 + $0x470] sm:$0xff]
    %v3365 = vld [vmem:[#allocation8 + $0x478] sm:$0xff]
    %v3366 = vld [vmem:[#allocation8 + $0x480] sm:$0xff]
    %v3367 = vld [vmem:[#allocation8 + $0x488] sm:$0xff]
    %v3368 = vld [vmem:[#allocation8 + $0x490] sm:$0xff]
    %v3369 = vld [vmem:[#allocation8 + $0x498] sm:$0xff]
    %v3370 = vld [vmem:[#allocation8 + $0x4a0] sm:$0xff]
    %v3371 = vld [vmem:[#allocation8 + $0x4a8] sm:$0xff]
    %v3372 = vld [vmem:[#allocation8 + $0x4b0] sm:$0xff]
    %v3373 = vld [vmem:[#allocation8 + $0x4b8] sm:$0xff]
    %v3374 = vld [vmem:[#allocation8 + $0x4c0] sm:$0xff]
    %v3375 = vld [vmem:[#allocation8 + $0x4c8] sm:$0xff]
    %v3376 = vld [vmem:[#allocation8 + $0x4d0] sm:$0xff]
    %v3377 = vld [vmem:[#allocation8 + $0x4d8] sm:$0xff]
    %v3378 = vld [vmem:[#allocation8 + $0x4e0] sm:$0xff]
    %v3379 = vld [vmem:[#allocation8 + $0x4e8] sm:$0xff]
    %v3380 = vld [vmem:[#allocation8 + $0x4f0] sm:$0xff]
    %v3381 = vld [vmem:[#allocation8 + $0x4f8] sm:$0xff]
    %v3382 = vld [vmem:[#allocation8 + $0x500] sm:$0xff]
    %v3383 = vld [vmem:[#allocation8 + $0x508] sm:$0xff]
    %v3384 = vld [vmem:[#allocation8 + $0x510] sm:$0xff]
    %v3385 = vld [vmem:[#allocation8 + $0x518] sm:$0xff]
    %v3386 = vld [vmem:[#allocation8 + $0x520] sm:$0xff]
    %v3387 = vld [vmem:[#allocation8 + $0x528] sm:$0xff]
    %v3388 = vld [vmem:[#allocation8 + $0x530] sm:$0xff]
    %v3389 = vld [vmem:[#allocation8 + $0x538] sm:$0xff]
    %v3390 = vld [vmem:[#allocation8 + $0x540] sm:$0xff]
    %v3391 = vld [vmem:[#allocation8 + $0x548] sm:$0xff]
    %v3392 = vld [vmem:[#allocation8 + $0x550] sm:$0xff]
    %v3393 = vld [vmem:[#allocation8 + $0x558] sm:$0xff]
    %v3394 = vld [vmem:[#allocation8 + $0x560] sm:$0xff]
    %v3395 = vld [vmem:[#allocation8 + $0x568] sm:$0xff]
    %v3396 = vld [vmem:[#allocation8 + $0x570] sm:$0xff]
    %v3397 = vld [vmem:[#allocation8 + $0x578] sm:$0xff]
    %v3398 = vld [vmem:[#allocation8 + $0x580] sm:$0xff]
    %v3399 = vld [vmem:[#allocation8 + $0x588] sm:$0xff]
    %v3400 = vld [vmem:[#allocation8 + $0x590] sm:$0xff]
    %v3401 = vld [vmem:[#allocation8 + $0x598] sm:$0xff]
    %v3402 = vld [vmem:[#allocation8 + $0x5a0] sm:$0xff]
    %v3403 = vld [vmem:[#allocation8 + $0x5a8] sm:$0xff]
    %v3404 = vld [vmem:[#allocation8 + $0x5b0] sm:$0xff]
    %v3405 = vld [vmem:[#allocation8 + $0x5b8] sm:$0xff]
    %v3406 = vld [vmem:[#allocation8 + $0x5c0] sm:$0xff]
    %v3407 = vld [vmem:[#allocation8 + $0x5c8] sm:$0xff]
    %v3408 = vld [vmem:[#allocation8 + $0x5d0] sm:$0xff]
    %v3409 = vld [vmem:[#allocation8 + $0x5d8] sm:$0xff]
    %v3410 = vld [vmem:[#allocation8 + $0x5e0] sm:$0xff]
    %v3411 = vld [vmem:[#allocation8 + $0x5e8] sm:$0xff]
    %v3412 = vld [vmem:[#allocation8 + $0x5f0] sm:$0xff]
    %v3413 = vld [vmem:[#allocation8 + $0x5f8] sm:$0xff]
    %v3414 = vld [vmem:[#allocation8 + $0x600] sm:$0xff]
    %v3415 = vld [vmem:[#allocation8 + $0x608] sm:$0xff]
    %v3416 = vld [vmem:[#allocation8 + $0x610] sm:$0xff]
    %v3417 = vld [vmem:[#allocation8 + $0x618] sm:$0xff]
    %v3418 = vld [vmem:[#allocation8 + $0x620] sm:$0xff]
    %v3419 = vld [vmem:[#allocation8 + $0x628] sm:$0xff]
    %v3420 = vld [vmem:[#allocation8 + $0x630] sm:$0xff]
    %v3421 = vld [vmem:[#allocation8 + $0x638] sm:$0xff]
    %v3422 = vld [vmem:[#allocation8 + $0x640] sm:$0xff]
    %v3423 = vld [vmem:[#allocation8 + $0x648] sm:$0xff]
    %v3424 = vld [vmem:[#allocation8 + $0x650] sm:$0xff]
    %v3425 = vld [vmem:[#allocation8 + $0x658] sm:$0xff]
    %v3426 = vld [vmem:[#allocation8 + $0x660] sm:$0xff]
    %v3427 = vld [vmem:[#allocation8 + $0x668] sm:$0xff]
    %v3428 = vld [vmem:[#allocation8 + $0x670] sm:$0xff]
    %v3429 = vld [vmem:[#allocation8 + $0x678] sm:$0xff]
    %v3430 = vld [vmem:[#allocation8 + $0x680] sm:$0xff]
    %v3431 = vld [vmem:[#allocation8 + $0x688] sm:$0xff]
    %v3432 = vld [vmem:[#allocation8 + $0x690] sm:$0xff]
    %v3433 = vld [vmem:[#allocation8 + $0x698] sm:$0xff]
    %v3434 = vld [vmem:[#allocation8 + $0x6a0] sm:$0xff]
    %v3435 = vld [vmem:[#allocation8 + $0x6a8] sm:$0xff]
    %v3436 = vld [vmem:[#allocation8 + $0x6b0] sm:$0xff]
    %v3437 = vld [vmem:[#allocation8 + $0x6b8] sm:$0xff]
    %v3438 = vld [vmem:[#allocation8 + $0x6c0] sm:$0xff]
    %v3439 = vld [vmem:[#allocation8 + $0x6c8] sm:$0xff]
    %v3440 = vld [vmem:[#allocation8 + $0x6d0] sm:$0xff]
    %v3441 = vld [vmem:[#allocation8 + $0x6d8] sm:$0xff]
    %v3442 = vld [vmem:[#allocation8 + $0x6e0] sm:$0xff]
    %v3443 = vld [vmem:[#allocation8 + $0x6e8] sm:$0xff]
    %v3444 = vld [vmem:[#allocation8 + $0x6f0] sm:$0xff]
    %v3445 = vld [vmem:[#allocation8 + $0x6f8] sm:$0xff]
    %v3446 = vld [vmem:[#allocation8 + $0x700] sm:$0xff]
    %v3447 = vld [vmem:[#allocation8 + $0x708] sm:$0xff]
    %v3448 = vld [vmem:[#allocation8 + $0x710] sm:$0xff]
    %v3449 = vld [vmem:[#allocation8 + $0x718] sm:$0xff]
    %v3450 = vld [vmem:[#allocation8 + $0x720] sm:$0xff]
    %v3451 = vld [vmem:[#allocation8 + $0x728] sm:$0xff]
    %v3452 = vld [vmem:[#allocation8 + $0x730] sm:$0xff]
    %v3453 = vld [vmem:[#allocation8 + $0x738] sm:$0xff]
    %v3454 = vld [vmem:[#allocation8 + $0x740] sm:$0xff]
    %v3455 = vld [vmem:[#allocation8 + $0x748] sm:$0xff]
    %v3456 = vld [vmem:[#allocation8 + $0x750] sm:$0xff]
    %v3457 = vld [vmem:[#allocation8 + $0x758] sm:$0xff]
    %v3458 = vld [vmem:[#allocation8 + $0x760] sm:$0xff]
    %v3459 = vld [vmem:[#allocation8 + $0x768] sm:$0xff]
    %v3460 = vld [vmem:[#allocation8 + $0x770] sm:$0xff]
    %v3461 = vld [vmem:[#allocation8 + $0x778] sm:$0xff]
    %v3462 = vld [vmem:[#allocation8 + $0x780] sm:$0xff]
    %v3463 = vld [vmem:[#allocation8 + $0x788] sm:$0xff]
    %v3464 = vld [vmem:[#allocation8 + $0x790] sm:$0xff]
    %v3465 = vld [vmem:[#allocation8 + $0x798] sm:$0xff]
    %v3466 = vld [vmem:[#allocation8 + $0x7a0] sm:$0xff]
    %v3467 = vld [vmem:[#allocation8 + $0x7a8] sm:$0xff]
    %v3468 = vld [vmem:[#allocation8 + $0x7b0] sm:$0xff]
    %v3469 = vld [vmem:[#allocation8 + $0x7b8] sm:$0xff]
    %v3470 = vld [vmem:[#allocation8 + $0x7c0] sm:$0xff]
    %v3471 = vld [vmem:[#allocation8 + $0x7c8] sm:$0xff]
    %v3472 = vld [vmem:[#allocation8 + $0x7d0] sm:$0xff]
    %v3473 = vld [vmem:[#allocation8 + $0x7d8] sm:$0xff]
    %v3474 = vld [vmem:[#allocation8 + $0x7e0] sm:$0xff]
    %v3475 = vld [vmem:[#allocation8 + $0x7e8] sm:$0xff]
    %v3476 = vld [vmem:[#allocation8 + $0x7f0] sm:$0xff]
    %v3477 = vld [vmem:[#allocation8 + $0x7f8] sm:$0xff]
    %v3478 = vld [vmem:[#allocation10] sm:$0xf]
    %v3480 = vlaneseq
    %v3481 = vshrl.u32 %v3480, 7
    %v3482 = vsub.s32 0, %v3481
    %v3483 = vrot.slane %v3478, %v3482
    %v3484 = vlaneseq
    %v3485 = vshrl.u32 %v3484, 7
    %v3486 = vsub.s32 1, %v3485
    %v3487 = vrot.slane %v3478, %v3486
    %v3488 = vlaneseq
    %v3489 = vshrl.u32 %v3488, 7
    %v3490 = vsub.s32 2, %v3489
    %v3491 = vrot.slane %v3478, %v3490
    %v3492 = vlaneseq
    %v3493 = vshrl.u32 %v3492, 7
    %v3494 = vsub.s32 3, %v3493
    %v3495 = vrot.slane %v3478, %v3494
    %v3756 = vunpack.c.l.b16 %v3222
    %v3757 = vunpack.c.h.b16 %v3222
    %v3758 = vunpack.c.l.b16 %v3223
    %v3759 = vunpack.c.h.b16 %v3223
    %v3760 = vunpack.c.l.b16 %v3224
    %v3761 = vunpack.c.h.b16 %v3224
    %v3762 = vunpack.c.l.b16 %v3225
    %v3763 = vunpack.c.h.b16 %v3225
    %v3764 = vunpack.c.l.b16 %v3226
    %v3765 = vunpack.c.h.b16 %v3226
    %v3766 = vunpack.c.l.b16 %v3227
    %v3767 = vunpack.c.h.b16 %v3227
    %v3768 = vunpack.c.l.b16 %v3228
    %v3769 = vunpack.c.h.b16 %v3228
    %v3770 = vunpack.c.l.b16 %v3229
    %v3771 = vunpack.c.h.b16 %v3229
    %v3772 = vunpack.c.l.b16 %v3230
    %v3773 = vunpack.c.h.b16 %v3230
    %v3774 = vunpack.c.l.b16 %v3231
    %v3775 = vunpack.c.h.b16 %v3231
    %v3776 = vunpack.c.l.b16 %v3232
    %v3777 = vunpack.c.h.b16 %v3232
    %v3778 = vunpack.c.l.b16 %v3233
    %v3779 = vunpack.c.h.b16 %v3233
    %v3780 = vunpack.c.l.b16 %v3234
    %v3781 = vunpack.c.h.b16 %v3234
    %v3782 = vunpack.c.l.b16 %v3235
    %v3783 = vunpack.c.h.b16 %v3235
    %v3784 = vunpack.c.l.b16 %v3236
    %v3785 = vunpack.c.h.b16 %v3236
    %v3786 = vunpack.c.l.b16 %v3237
    %v3787 = vunpack.c.h.b16 %v3237
    %v3788 = vunpack.c.l.b16 %v3238
    %v3789 = vunpack.c.h.b16 %v3238
    %v3790 = vunpack.c.l.b16 %v3239
    %v3791 = vunpack.c.h.b16 %v3239
    %v3792 = vunpack.c.l.b16 %v3240
    %v3793 = vunpack.c.h.b16 %v3240
    %v3794 = vunpack.c.l.b16 %v3241
    %v3795 = vunpack.c.h.b16 %v3241
    %v3796 = vunpack.c.l.b16 %v3242
    %v3797 = vunpack.c.h.b16 %v3242
    %v3798 = vunpack.c.l.b16 %v3243
    %v3799 = vunpack.c.h.b16 %v3243
    %v3800 = vunpack.c.l.b16 %v3244
    %v3801 = vunpack.c.h.b16 %v3244
    %v3802 = vunpack.c.l.b16 %v3245
    %v3803 = vunpack.c.h.b16 %v3245
    %v3804 = vunpack.c.l.b16 %v3246
    %v3805 = vunpack.c.h.b16 %v3246
    %v3806 = vunpack.c.l.b16 %v3247
    %v3807 = vunpack.c.h.b16 %v3247
    %v3808 = vunpack.c.l.b16 %v3248
    %v3809 = vunpack.c.h.b16 %v3248
    %v3810 = vunpack.c.l.b16 %v3249
    %v3811 = vunpack.c.h.b16 %v3249
    %v3812 = vunpack.c.l.b16 %v3250
    %v3813 = vunpack.c.h.b16 %v3250
    %v3814 = vunpack.c.l.b16 %v3251
    %v3815 = vunpack.c.h.b16 %v3251
    %v3816 = vunpack.c.l.b16 %v3252
    %v3817 = vunpack.c.h.b16 %v3252
    %v3818 = vunpack.c.l.b16 %v3253
    %v3819 = vunpack.c.h.b16 %v3253
    %v3820 = vunpack.c.l.b16 %v3254
    %v3821 = vunpack.c.h.b16 %v3254
    %v3822 = vunpack.c.l.b16 %v3255
    %v3823 = vunpack.c.h.b16 %v3255
    %v3824 = vunpack.c.l.b16 %v3256
    %v3825 = vunpack.c.h.b16 %v3256
    %v3826 = vunpack.c.l.b16 %v3257
    %v3827 = vunpack.c.h.b16 %v3257
    %v3828 = vunpack.c.l.b16 %v3258
    %v3829 = vunpack.c.h.b16 %v3258
    %v3830 = vunpack.c.l.b16 %v3259
    %v3831 = vunpack.c.h.b16 %v3259
    %v3832 = vunpack.c.l.b16 %v3260
    %v3833 = vunpack.c.h.b16 %v3260
    %v3834 = vunpack.c.l.b16 %v3261
    %v3835 = vunpack.c.h.b16 %v3261
    %v3836 = vunpack.c.l.b16 %v3262
    %v3837 = vunpack.c.h.b16 %v3262
    %v3838 = vunpack.c.l.b16 %v3263
    %v3839 = vunpack.c.h.b16 %v3263
    %v3840 = vunpack.c.l.b16 %v3264
    %v3841 = vunpack.c.h.b16 %v3264
    %v3842 = vunpack.c.l.b16 %v3265
    %v3843 = vunpack.c.h.b16 %v3265
    %v3844 = vunpack.c.l.b16 %v3266
    %v3845 = vunpack.c.h.b16 %v3266
    %v3846 = vunpack.c.l.b16 %v3267
    %v3847 = vunpack.c.h.b16 %v3267
    %v3848 = vunpack.c.l.b16 %v3268
    %v3849 = vunpack.c.h.b16 %v3268
    %v3850 = vunpack.c.l.b16 %v3269
    %v3851 = vunpack.c.h.b16 %v3269
    %v3852 = vunpack.c.l.b16 %v3270
    %v3853 = vunpack.c.h.b16 %v3270
    %v3854 = vunpack.c.l.b16 %v3271
    %v3855 = vunpack.c.h.b16 %v3271
    %v3856 = vunpack.c.l.b16 %v3272
    %v3857 = vunpack.c.h.b16 %v3272
    %v3858 = vunpack.c.l.b16 %v3273
    %v3859 = vunpack.c.h.b16 %v3273
    %v3860 = vunpack.c.l.b16 %v3274
    %v3861 = vunpack.c.h.b16 %v3274
    %v3862 = vunpack.c.l.b16 %v3275
    %v3863 = vunpack.c.h.b16 %v3275
    %v3864 = vunpack.c.l.b16 %v3276
    %v3865 = vunpack.c.h.b16 %v3276
    %v3866 = vunpack.c.l.b16 %v3277
    %v3867 = vunpack.c.h.b16 %v3277
    %v3868 = vunpack.c.l.b16 %v3278
    %v3869 = vunpack.c.h.b16 %v3278
    %v3870 = vunpack.c.l.b16 %v3279
    %v3871 = vunpack.c.h.b16 %v3279
    %v3872 = vunpack.c.l.b16 %v3280
    %v3873 = vunpack.c.h.b16 %v3280
    %v3874 = vunpack.c.l.b16 %v3281
    %v3875 = vunpack.c.h.b16 %v3281
    %v3876 = vunpack.c.l.b16 %v3282
    %v3877 = vunpack.c.h.b16 %v3282
    %v3878 = vunpack.c.l.b16 %v3283
    %v3879 = vunpack.c.h.b16 %v3283
    %v3880 = vunpack.c.l.b16 %v3284
    %v3881 = vunpack.c.h.b16 %v3284
    %v3882 = vunpack.c.l.b16 %v3285
    %v3883 = vunpack.c.h.b16 %v3285
    %v3884 = vunpack.c.l.b16 %v3286
    %v3885 = vunpack.c.h.b16 %v3286
    %v3886 = vunpack.c.l.b16 %v3287
    %v3887 = vunpack.c.h.b16 %v3287
    %v3888 = vunpack.c.l.b16 %v3288
    %v3889 = vunpack.c.h.b16 %v3288
    %v3890 = vunpack.c.l.b16 %v3289
    %v3891 = vunpack.c.h.b16 %v3289
    %v3892 = vunpack.c.l.b16 %v3290
    %v3893 = vunpack.c.h.b16 %v3290
    %v3894 = vunpack.c.l.b16 %v3291
    %v3895 = vunpack.c.h.b16 %v3291
    %v3896 = vunpack.c.l.b16 %v3292
    %v3897 = vunpack.c.h.b16 %v3292
    %v3898 = vunpack.c.l.b16 %v3293
    %v3899 = vunpack.c.h.b16 %v3293
    %v3900 = vunpack.c.l.b16 %v3294
    %v3901 = vunpack.c.h.b16 %v3294
    %v3902 = vunpack.c.l.b16 %v3295
    %v3903 = vunpack.c.h.b16 %v3295
    %v3904 = vunpack.c.l.b16 %v3296
    %v3905 = vunpack.c.h.b16 %v3296
    %v3906 = vunpack.c.l.b16 %v3297
    %v3907 = vunpack.c.h.b16 %v3297
    %v3908 = vunpack.c.l.b16 %v3298
    %v3909 = vunpack.c.h.b16 %v3298
    %v3910 = vunpack.c.l.b16 %v3299
    %v3911 = vunpack.c.h.b16 %v3299
    %v3912 = vunpack.c.l.b16 %v3300
    %v3913 = vunpack.c.h.b16 %v3300
    %v3914 = vunpack.c.l.b16 %v3301
    %v3915 = vunpack.c.h.b16 %v3301
    %v3916 = vunpack.c.l.b16 %v3302
    %v3917 = vunpack.c.h.b16 %v3302
    %v3918 = vunpack.c.l.b16 %v3303
    %v3919 = vunpack.c.h.b16 %v3303
    %v3920 = vunpack.c.l.b16 %v3304
    %v3921 = vunpack.c.h.b16 %v3304
    %v3922 = vunpack.c.l.b16 %v3305
    %v3923 = vunpack.c.h.b16 %v3305
    %v3924 = vunpack.c.l.b16 %v3306
    %v3925 = vunpack.c.h.b16 %v3306
    %v3926 = vunpack.c.l.b16 %v3307
    %v3927 = vunpack.c.h.b16 %v3307
    %v3928 = vunpack.c.l.b16 %v3308
    %v3929 = vunpack.c.h.b16 %v3308
    %v3930 = vunpack.c.l.b16 %v3309
    %v3931 = vunpack.c.h.b16 %v3309
    %v3932 = vunpack.c.l.b16 %v3310
    %v3933 = vunpack.c.h.b16 %v3310
    %v3934 = vunpack.c.l.b16 %v3311
    %v3935 = vunpack.c.h.b16 %v3311
    %v3936 = vunpack.c.l.b16 %v3312
    %v3937 = vunpack.c.h.b16 %v3312
    %v3938 = vunpack.c.l.b16 %v3313
    %v3939 = vunpack.c.h.b16 %v3313
    %v3940 = vunpack.c.l.b16 %v3314
    %v3941 = vunpack.c.h.b16 %v3314
    %v3942 = vunpack.c.l.b16 %v3315
    %v3943 = vunpack.c.h.b16 %v3315
    %v3944 = vunpack.c.l.b16 %v3316
    %v3945 = vunpack.c.h.b16 %v3316
    %v3946 = vunpack.c.l.b16 %v3317
    %v3947 = vunpack.c.h.b16 %v3317
    %v3948 = vunpack.c.l.b16 %v3318
    %v3949 = vunpack.c.h.b16 %v3318
    %v3950 = vunpack.c.l.b16 %v3319
    %v3951 = vunpack.c.h.b16 %v3319
    %v3952 = vunpack.c.l.b16 %v3320
    %v3953 = vunpack.c.h.b16 %v3320
    %v3954 = vunpack.c.l.b16 %v3321
    %v3955 = vunpack.c.h.b16 %v3321
    %v3956 = vunpack.c.l.b16 %v3322
    %v3957 = vunpack.c.h.b16 %v3322
    %v3958 = vunpack.c.l.b16 %v3323
    %v3959 = vunpack.c.h.b16 %v3323
    %v3960 = vunpack.c.l.b16 %v3324
    %v3961 = vunpack.c.h.b16 %v3324
    %v3962 = vunpack.c.l.b16 %v3325
    %v3963 = vunpack.c.h.b16 %v3325
    %v3964 = vunpack.c.l.b16 %v3326
    %v3965 = vunpack.c.h.b16 %v3326
    %v3966 = vunpack.c.l.b16 %v3327
    %v3967 = vunpack.c.h.b16 %v3327
    %v3968 = vunpack.c.l.b16 %v3328
    %v3969 = vunpack.c.h.b16 %v3328
    %v3970 = vunpack.c.l.b16 %v3329
    %v3971 = vunpack.c.h.b16 %v3329
    %v3972 = vunpack.c.l.b16 %v3330
    %v3973 = vunpack.c.h.b16 %v3330
    %v3974 = vunpack.c.l.b16 %v3331
    %v3975 = vunpack.c.h.b16 %v3331
    %v3976 = vunpack.c.l.b16 %v3332
    %v3977 = vunpack.c.h.b16 %v3332
    %v3978 = vunpack.c.l.b16 %v3333
    %v3979 = vunpack.c.h.b16 %v3333
    %v3980 = vunpack.c.l.b16 %v3334
    %v3981 = vunpack.c.h.b16 %v3334
    %v3982 = vunpack.c.l.b16 %v3335
    %v3983 = vunpack.c.h.b16 %v3335
    %v3984 = vunpack.c.l.b16 %v3336
    %v3985 = vunpack.c.h.b16 %v3336
    %v3986 = vunpack.c.l.b16 %v3337
    %v3987 = vunpack.c.h.b16 %v3337
    %v3988 = vunpack.c.l.b16 %v3338
    %v3989 = vunpack.c.h.b16 %v3338
    %v3990 = vunpack.c.l.b16 %v3339
    %v3991 = vunpack.c.h.b16 %v3339
    %v3992 = vunpack.c.l.b16 %v3340
    %v3993 = vunpack.c.h.b16 %v3340
    %v3994 = vunpack.c.l.b16 %v3341
    %v3995 = vunpack.c.h.b16 %v3341
    %v3996 = vunpack.c.l.b16 %v3342
    %v3997 = vunpack.c.h.b16 %v3342
    %v3998 = vunpack.c.l.b16 %v3343
    %v3999 = vunpack.c.h.b16 %v3343
    %v4000 = vunpack.c.l.b16 %v3344
    %v4001 = vunpack.c.h.b16 %v3344
    %v4002 = vunpack.c.l.b16 %v3345
    %v4003 = vunpack.c.h.b16 %v3345
    %v4004 = vunpack.c.l.b16 %v3346
    %v4005 = vunpack.c.h.b16 %v3346
    %v4006 = vunpack.c.l.b16 %v3347
    %v4007 = vunpack.c.h.b16 %v3347
    %v4008 = vunpack.c.l.b16 %v3348
    %v4009 = vunpack.c.h.b16 %v3348
    %v4010 = vunpack.c.l.b16 %v3349
    %v4011 = vunpack.c.h.b16 %v3349
    %v4012 = vunpack.c.l.b16 %v3350
    %v4013 = vunpack.c.h.b16 %v3350
    %v4014 = vunpack.c.l.b16 %v3351
    %v4015 = vunpack.c.h.b16 %v3351
    %v4016 = vunpack.c.l.b16 %v3352
    %v4017 = vunpack.c.h.b16 %v3352
    %v4018 = vunpack.c.l.b16 %v3353
    %v4019 = vunpack.c.h.b16 %v3353
    %v4020 = vunpack.c.l.b16 %v3354
    %v4021 = vunpack.c.h.b16 %v3354
    %v4022 = vunpack.c.l.b16 %v3355
    %v4023 = vunpack.c.h.b16 %v3355
    %v4024 = vunpack.c.l.b16 %v3356
    %v4025 = vunpack.c.h.b16 %v3356
    %v4026 = vunpack.c.l.b16 %v3357
    %v4027 = vunpack.c.h.b16 %v3357
    %v4028 = vunpack.c.l.b16 %v3358
    %v4029 = vunpack.c.h.b16 %v3358
    %v4030 = vunpack.c.l.b16 %v3359
    %v4031 = vunpack.c.h.b16 %v3359
    %v4032 = vunpack.c.l.b16 %v3360
    %v4033 = vunpack.c.h.b16 %v3360
    %v4034 = vunpack.c.l.b16 %v3361
    %v4035 = vunpack.c.h.b16 %v3361
    %v4036 = vunpack.c.l.b16 %v3362
    %v4037 = vunpack.c.h.b16 %v3362
    %v4038 = vunpack.c.l.b16 %v3363
    %v4039 = vunpack.c.h.b16 %v3363
    %v4040 = vunpack.c.l.b16 %v3364
    %v4041 = vunpack.c.h.b16 %v3364
    %v4042 = vunpack.c.l.b16 %v3365
    %v4043 = vunpack.c.h.b16 %v3365
    %v4044 = vunpack.c.l.b16 %v3366
    %v4045 = vunpack.c.h.b16 %v3366
    %v4046 = vunpack.c.l.b16 %v3367
    %v4047 = vunpack.c.h.b16 %v3367
    %v4048 = vunpack.c.l.b16 %v3368
    %v4049 = vunpack.c.h.b16 %v3368
    %v4050 = vunpack.c.l.b16 %v3369
    %v4051 = vunpack.c.h.b16 %v3369
    %v4052 = vunpack.c.l.b16 %v3370
    %v4053 = vunpack.c.h.b16 %v3370
    %v4054 = vunpack.c.l.b16 %v3371
    %v4055 = vunpack.c.h.b16 %v3371
    %v4056 = vunpack.c.l.b16 %v3372
    %v4057 = vunpack.c.h.b16 %v3372
    %v4058 = vunpack.c.l.b16 %v3373
    %v4059 = vunpack.c.h.b16 %v3373
    %v4060 = vunpack.c.l.b16 %v3374
    %v4061 = vunpack.c.h.b16 %v3374
    %v4062 = vunpack.c.l.b16 %v3375
    %v4063 = vunpack.c.h.b16 %v3375
    %v4064 = vunpack.c.l.b16 %v3376
    %v4065 = vunpack.c.h.b16 %v3376
    %v4066 = vunpack.c.l.b16 %v3377
    %v4067 = vunpack.c.h.b16 %v3377
    %v4068 = vunpack.c.l.b16 %v3378
    %v4069 = vunpack.c.h.b16 %v3378
    %v4070 = vunpack.c.l.b16 %v3379
    %v4071 = vunpack.c.h.b16 %v3379
    %v4072 = vunpack.c.l.b16 %v3380
    %v4073 = vunpack.c.h.b16 %v3380
    %v4074 = vunpack.c.l.b16 %v3381
    %v4075 = vunpack.c.h.b16 %v3381
    %v4076 = vunpack.c.l.b16 %v3382
    %v4077 = vunpack.c.h.b16 %v3382
    %v4078 = vunpack.c.l.b16 %v3383
    %v4079 = vunpack.c.h.b16 %v3383
    %v4080 = vunpack.c.l.b16 %v3384
    %v4081 = vunpack.c.h.b16 %v3384
    %v4082 = vunpack.c.l.b16 %v3385
    %v4083 = vunpack.c.h.b16 %v3385
    %v4084 = vunpack.c.l.b16 %v3386
    %v4085 = vunpack.c.h.b16 %v3386
    %v4086 = vunpack.c.l.b16 %v3387
    %v4087 = vunpack.c.h.b16 %v3387
    %v4088 = vunpack.c.l.b16 %v3388
    %v4089 = vunpack.c.h.b16 %v3388
    %v4090 = vunpack.c.l.b16 %v3389
    %v4091 = vunpack.c.h.b16 %v3389
    %v4092 = vunpack.c.l.b16 %v3390
    %v4093 = vunpack.c.h.b16 %v3390
    %v4094 = vunpack.c.l.b16 %v3391
    %v4095 = vunpack.c.h.b16 %v3391
    %v4096 = vunpack.c.l.b16 %v3392
    %v4097 = vunpack.c.h.b16 %v3392
    %v4098 = vunpack.c.l.b16 %v3393
    %v4099 = vunpack.c.h.b16 %v3393
    %v4100 = vunpack.c.l.b16 %v3394
    %v4101 = vunpack.c.h.b16 %v3394
    %v4102 = vunpack.c.l.b16 %v3395
    %v4103 = vunpack.c.h.b16 %v3395
    %v4104 = vunpack.c.l.b16 %v3396
    %v4105 = vunpack.c.h.b16 %v3396
    %v4106 = vunpack.c.l.b16 %v3397
    %v4107 = vunpack.c.h.b16 %v3397
    %v4108 = vunpack.c.l.b16 %v3398
    %v4109 = vunpack.c.h.b16 %v3398
    %v4110 = vunpack.c.l.b16 %v3399
    %v4111 = vunpack.c.h.b16 %v3399
    %v4112 = vunpack.c.l.b16 %v3400
    %v4113 = vunpack.c.h.b16 %v3400
    %v4114 = vunpack.c.l.b16 %v3401
    %v4115 = vunpack.c.h.b16 %v3401
    %v4116 = vunpack.c.l.b16 %v3402
    %v4117 = vunpack.c.h.b16 %v3402
    %v4118 = vunpack.c.l.b16 %v3403
    %v4119 = vunpack.c.h.b16 %v3403
    %v4120 = vunpack.c.l.b16 %v3404
    %v4121 = vunpack.c.h.b16 %v3404
    %v4122 = vunpack.c.l.b16 %v3405
    %v4123 = vunpack.c.h.b16 %v3405
    %v4124 = vunpack.c.l.b16 %v3406
    %v4125 = vunpack.c.h.b16 %v3406
    %v4126 = vunpack.c.l.b16 %v3407
    %v4127 = vunpack.c.h.b16 %v3407
    %v4128 = vunpack.c.l.b16 %v3408
    %v4129 = vunpack.c.h.b16 %v3408
    %v4130 = vunpack.c.l.b16 %v3409
    %v4131 = vunpack.c.h.b16 %v3409
    %v4132 = vunpack.c.l.b16 %v3410
    %v4133 = vunpack.c.h.b16 %v3410
    %v4134 = vunpack.c.l.b16 %v3411
    %v4135 = vunpack.c.h.b16 %v3411
    %v4136 = vunpack.c.l.b16 %v3412
    %v4137 = vunpack.c.h.b16 %v3412
    %v4138 = vunpack.c.l.b16 %v3413
    %v4139 = vunpack.c.h.b16 %v3413
    %v4140 = vunpack.c.l.b16 %v3414
    %v4141 = vunpack.c.h.b16 %v3414
    %v4142 = vunpack.c.l.b16 %v3415
    %v4143 = vunpack.c.h.b16 %v3415
    %v4144 = vunpack.c.l.b16 %v3416
    %v4145 = vunpack.c.h.b16 %v3416
    %v4146 = vunpack.c.l.b16 %v3417
    %v4147 = vunpack.c.h.b16 %v3417
    %v4148 = vunpack.c.l.b16 %v3418
    %v4149 = vunpack.c.h.b16 %v3418
    %v4150 = vunpack.c.l.b16 %v3419
    %v4151 = vunpack.c.h.b16 %v3419
    %v4152 = vunpack.c.l.b16 %v3420
    %v4153 = vunpack.c.h.b16 %v3420
    %v4154 = vunpack.c.l.b16 %v3421
    %v4155 = vunpack.c.h.b16 %v3421
    %v4156 = vunpack.c.l.b16 %v3422
    %v4157 = vunpack.c.h.b16 %v3422
    %v4158 = vunpack.c.l.b16 %v3423
    %v4159 = vunpack.c.h.b16 %v3423
    %v4160 = vunpack.c.l.b16 %v3424
    %v4161 = vunpack.c.h.b16 %v3424
    %v4162 = vunpack.c.l.b16 %v3425
    %v4163 = vunpack.c.h.b16 %v3425
    %v4164 = vunpack.c.l.b16 %v3426
    %v4165 = vunpack.c.h.b16 %v3426
    %v4166 = vunpack.c.l.b16 %v3427
    %v4167 = vunpack.c.h.b16 %v3427
    %v4168 = vunpack.c.l.b16 %v3428
    %v4169 = vunpack.c.h.b16 %v3428
    %v4170 = vunpack.c.l.b16 %v3429
    %v4171 = vunpack.c.h.b16 %v3429
    %v4172 = vunpack.c.l.b16 %v3430
    %v4173 = vunpack.c.h.b16 %v3430
    %v4174 = vunpack.c.l.b16 %v3431
    %v4175 = vunpack.c.h.b16 %v3431
    %v4176 = vunpack.c.l.b16 %v3432
    %v4177 = vunpack.c.h.b16 %v3432
    %v4178 = vunpack.c.l.b16 %v3433
    %v4179 = vunpack.c.h.b16 %v3433
    %v4180 = vunpack.c.l.b16 %v3434
    %v4181 = vunpack.c.h.b16 %v3434
    %v4182 = vunpack.c.l.b16 %v3435
    %v4183 = vunpack.c.h.b16 %v3435
    %v4184 = vunpack.c.l.b16 %v3436
    %v4185 = vunpack.c.h.b16 %v3436
    %v4186 = vunpack.c.l.b16 %v3437
    %v4187 = vunpack.c.h.b16 %v3437
    %v4188 = vunpack.c.l.b16 %v3438
    %v4189 = vunpack.c.h.b16 %v3438
    %v4190 = vunpack.c.l.b16 %v3439
    %v4191 = vunpack.c.h.b16 %v3439
    %v4192 = vunpack.c.l.b16 %v3440
    %v4193 = vunpack.c.h.b16 %v3440
    %v4194 = vunpack.c.l.b16 %v3441
    %v4195 = vunpack.c.h.b16 %v3441
    %v4196 = vunpack.c.l.b16 %v3442
    %v4197 = vunpack.c.h.b16 %v3442
    %v4198 = vunpack.c.l.b16 %v3443
    %v4199 = vunpack.c.h.b16 %v3443
    %v4200 = vunpack.c.l.b16 %v3444
    %v4201 = vunpack.c.h.b16 %v3444
    %v4202 = vunpack.c.l.b16 %v3445
    %v4203 = vunpack.c.h.b16 %v3445
    %v4204 = vunpack.c.l.b16 %v3446
    %v4205 = vunpack.c.h.b16 %v3446
    %v4206 = vunpack.c.l.b16 %v3447
    %v4207 = vunpack.c.h.b16 %v3447
    %v4208 = vunpack.c.l.b16 %v3448
    %v4209 = vunpack.c.h.b16 %v3448
    %v4210 = vunpack.c.l.b16 %v3449
    %v4211 = vunpack.c.h.b16 %v3449
    %v4212 = vunpack.c.l.b16 %v3450
    %v4213 = vunpack.c.h.b16 %v3450
    %v4214 = vunpack.c.l.b16 %v3451
    %v4215 = vunpack.c.h.b16 %v3451
    %v4216 = vunpack.c.l.b16 %v3452
    %v4217 = vunpack.c.h.b16 %v3452
    %v4218 = vunpack.c.l.b16 %v3453
    %v4219 = vunpack.c.h.b16 %v3453
    %v4220 = vunpack.c.l.b16 %v3454
    %v4221 = vunpack.c.h.b16 %v3454
    %v4222 = vunpack.c.l.b16 %v3455
    %v4223 = vunpack.c.h.b16 %v3455
    %v4224 = vunpack.c.l.b16 %v3456
    %v4225 = vunpack.c.h.b16 %v3456
    %v4226 = vunpack.c.l.b16 %v3457
    %v4227 = vunpack.c.h.b16 %v3457
    %v4228 = vunpack.c.l.b16 %v3458
    %v4229 = vunpack.c.h.b16 %v3458
    %v4230 = vunpack.c.l.b16 %v3459
    %v4231 = vunpack.c.h.b16 %v3459
    %v4232 = vunpack.c.l.b16 %v3460
    %v4233 = vunpack.c.h.b16 %v3460
    %v4234 = vunpack.c.l.b16 %v3461
    %v4235 = vunpack.c.h.b16 %v3461
    %v4236 = vunpack.c.l.b16 %v3462
    %v4237 = vunpack.c.h.b16 %v3462
    %v4238 = vunpack.c.l.b16 %v3463
    %v4239 = vunpack.c.h.b16 %v3463
    %v4240 = vunpack.c.l.b16 %v3464
    %v4241 = vunpack.c.h.b16 %v3464
    %v4242 = vunpack.c.l.b16 %v3465
    %v4243 = vunpack.c.h.b16 %v3465
    %v4244 = vunpack.c.l.b16 %v3466
    %v4245 = vunpack.c.h.b16 %v3466
    %v4246 = vunpack.c.l.b16 %v3467
    %v4247 = vunpack.c.h.b16 %v3467
    %v4248 = vunpack.c.l.b16 %v3468
    %v4249 = vunpack.c.h.b16 %v3468
    %v4250 = vunpack.c.l.b16 %v3469
    %v4251 = vunpack.c.h.b16 %v3469
    %v4252 = vunpack.c.l.b16 %v3470
    %v4253 = vunpack.c.h.b16 %v3470
    %v4254 = vunpack.c.l.b16 %v3471
    %v4255 = vunpack.c.h.b16 %v3471
    %v4256 = vunpack.c.l.b16 %v3472
    %v4257 = vunpack.c.h.b16 %v3472
    %v4258 = vunpack.c.l.b16 %v3473
    %v4259 = vunpack.c.h.b16 %v3473
    %v4260 = vunpack.c.l.b16 %v3474
    %v4261 = vunpack.c.h.b16 %v3474
    %v4262 = vunpack.c.l.b16 %v3475
    %v4263 = vunpack.c.h.b16 %v3475
    %v4264 = vunpack.c.l.b16 %v3476
    %v4265 = vunpack.c.h.b16 %v3476
    %v4266 = vunpack.c.l.b16 %v3477
    %v4267 = vunpack.c.h.b16 %v3477
    %v4268 = vpack.c.b16 %v3760, %v3756
    %v4269 = vpack.c.b16 %v3761, %v3757
    %v4270 = vpack.c.b16 %v3762, %v3758
    %v4271 = vpack.c.b16 %v3763, %v3759
    %v4272 = vpack.c.b16 %v3768, %v3764
    %v4273 = vpack.c.b16 %v3769, %v3765
    %v4274 = vpack.c.b16 %v3770, %v3766
    %v4275 = vpack.c.b16 %v3771, %v3767
    %v4276 = vpack.c.b16 %v3776, %v3772
    %v4277 = vpack.c.b16 %v3777, %v3773
    %v4278 = vpack.c.b16 %v3778, %v3774
    %v4279 = vpack.c.b16 %v3779, %v3775
    %v4280 = vpack.c.b16 %v3784, %v3780
    %v4281 = vpack.c.b16 %v3785, %v3781
    %v4282 = vpack.c.b16 %v3786, %v3782
    %v4283 = vpack.c.b16 %v3787, %v3783
    %v4284 = vpack.c.b16 %v3792, %v3788
    %v4285 = vpack.c.b16 %v3793, %v3789
    %v4286 = vpack.c.b16 %v3794, %v3790
    %v4287 = vpack.c.b16 %v3795, %v3791
    %v4288 = vpack.c.b16 %v3800, %v3796
    %v4289 = vpack.c.b16 %v3801, %v3797
    %v4290 = vpack.c.b16 %v3802, %v3798
    %v4291 = vpack.c.b16 %v3803, %v3799
    %v4292 = vpack.c.b16 %v3808, %v3804
    %v4293 = vpack.c.b16 %v3809, %v3805
    %v4294 = vpack.c.b16 %v3810, %v3806
    %v4295 = vpack.c.b16 %v3811, %v3807
    %v4296 = vpack.c.b16 %v3816, %v3812
    %v4297 = vpack.c.b16 %v3817, %v3813
    %v4298 = vpack.c.b16 %v3818, %v3814
    %v4299 = vpack.c.b16 %v3819, %v3815
    %v4300 = vpack.c.b16 %v3824, %v3820
    %v4301 = vpack.c.b16 %v3825, %v3821
    %v4302 = vpack.c.b16 %v3826, %v3822
    %v4303 = vpack.c.b16 %v3827, %v3823
    %v4304 = vpack.c.b16 %v3832, %v3828
    %v4305 = vpack.c.b16 %v3833, %v3829
    %v4306 = vpack.c.b16 %v3834, %v3830
    %v4307 = vpack.c.b16 %v3835, %v3831
    %v4308 = vpack.c.b16 %v3840, %v3836
    %v4309 = vpack.c.b16 %v3841, %v3837
    %v4310 = vpack.c.b16 %v3842, %v3838
    %v4311 = vpack.c.b16 %v3843, %v3839
    %v4312 = vpack.c.b16 %v3848, %v3844
    %v4313 = vpack.c.b16 %v3849, %v3845
    %v4314 = vpack.c.b16 %v3850, %v3846
    %v4315 = vpack.c.b16 %v3851, %v3847
    %v4316 = vpack.c.b16 %v3856, %v3852
    %v4317 = vpack.c.b16 %v3857, %v3853
    %v4318 = vpack.c.b16 %v3858, %v3854
    %v4319 = vpack.c.b16 %v3859, %v3855
    %v4320 = vpack.c.b16 %v3864, %v3860
    %v4321 = vpack.c.b16 %v3865, %v3861
    %v4322 = vpack.c.b16 %v3866, %v3862
    %v4323 = vpack.c.b16 %v3867, %v3863
    %v4324 = vpack.c.b16 %v3872, %v3868
    %v4325 = vpack.c.b16 %v3873, %v3869
    %v4326 = vpack.c.b16 %v3874, %v3870
    %v4327 = vpack.c.b16 %v3875, %v3871
    %v4328 = vpack.c.b16 %v3880, %v3876
    %v4329 = vpack.c.b16 %v3881, %v3877
    %v4330 = vpack.c.b16 %v3882, %v3878
    %v4331 = vpack.c.b16 %v3883, %v3879
    %v4332 = vpack.c.b16 %v3888, %v3884
    %v4333 = vpack.c.b16 %v3889, %v3885
    %v4334 = vpack.c.b16 %v3890, %v3886
    %v4335 = vpack.c.b16 %v3891, %v3887
    %v4336 = vpack.c.b16 %v3896, %v3892
    %v4337 = vpack.c.b16 %v3897, %v3893
    %v4338 = vpack.c.b16 %v3898, %v3894
    %v4339 = vpack.c.b16 %v3899, %v3895
    %v4340 = vpack.c.b16 %v3904, %v3900
    %v4341 = vpack.c.b16 %v3905, %v3901
    %v4342 = vpack.c.b16 %v3906, %v3902
    %v4343 = vpack.c.b16 %v3907, %v3903
    %v4344 = vpack.c.b16 %v3912, %v3908
    %v4345 = vpack.c.b16 %v3913, %v3909
    %v4346 = vpack.c.b16 %v3914, %v3910
    %v4347 = vpack.c.b16 %v3915, %v3911
    %v4348 = vpack.c.b16 %v3920, %v3916
    %v4349 = vpack.c.b16 %v3921, %v3917
    %v4350 = vpack.c.b16 %v3922, %v3918
    %v4351 = vpack.c.b16 %v3923, %v3919
    %v4352 = vpack.c.b16 %v3928, %v3924
    %v4353 = vpack.c.b16 %v3929, %v3925
    %v4354 = vpack.c.b16 %v3930, %v3926
    %v4355 = vpack.c.b16 %v3931, %v3927
    %v4356 = vpack.c.b16 %v3936, %v3932
    %v4357 = vpack.c.b16 %v3937, %v3933
    %v4358 = vpack.c.b16 %v3938, %v3934
    %v4359 = vpack.c.b16 %v3939, %v3935
    %v4360 = vpack.c.b16 %v3944, %v3940
    %v4361 = vpack.c.b16 %v3945, %v3941
    %v4362 = vpack.c.b16 %v3946, %v3942
    %v4363 = vpack.c.b16 %v3947, %v3943
    %v4364 = vpack.c.b16 %v3952, %v3948
    %v4365 = vpack.c.b16 %v3953, %v3949
    %v4366 = vpack.c.b16 %v3954, %v3950
    %v4367 = vpack.c.b16 %v3955, %v3951
    %v4368 = vpack.c.b16 %v3960, %v3956
    %v4369 = vpack.c.b16 %v3961, %v3957
    %v4370 = vpack.c.b16 %v3962, %v3958
    %v4371 = vpack.c.b16 %v3963, %v3959
    %v4372 = vpack.c.b16 %v3968, %v3964
    %v4373 = vpack.c.b16 %v3969, %v3965
    %v4374 = vpack.c.b16 %v3970, %v3966
    %v4375 = vpack.c.b16 %v3971, %v3967
    %v4376 = vpack.c.b16 %v3976, %v3972
    %v4377 = vpack.c.b16 %v3977, %v3973
    %v4378 = vpack.c.b16 %v3978, %v3974
    %v4379 = vpack.c.b16 %v3979, %v3975
    %v4380 = vpack.c.b16 %v3984, %v3980
    %v4381 = vpack.c.b16 %v3985, %v3981
    %v4382 = vpack.c.b16 %v3986, %v3982
    %v4383 = vpack.c.b16 %v3987, %v3983
    %v4384 = vpack.c.b16 %v3992, %v3988
    %v4385 = vpack.c.b16 %v3993, %v3989
    %v4386 = vpack.c.b16 %v3994, %v3990
    %v4387 = vpack.c.b16 %v3995, %v3991
    %v4388 = vpack.c.b16 %v4000, %v3996
    %v4389 = vpack.c.b16 %v4001, %v3997
    %v4390 = vpack.c.b16 %v4002, %v3998
    %v4391 = vpack.c.b16 %v4003, %v3999
    %v4392 = vpack.c.b16 %v4008, %v4004
    %v4393 = vpack.c.b16 %v4009, %v4005
    %v4394 = vpack.c.b16 %v4010, %v4006
    %v4395 = vpack.c.b16 %v4011, %v4007
    %v4396 = vpack.c.b16 %v4016, %v4012
    %v4397 = vpack.c.b16 %v4017, %v4013
    %v4398 = vpack.c.b16 %v4018, %v4014
    %v4399 = vpack.c.b16 %v4019, %v4015
    %v4400 = vpack.c.b16 %v4024, %v4020
    %v4401 = vpack.c.b16 %v4025, %v4021
    %v4402 = vpack.c.b16 %v4026, %v4022
    %v4403 = vpack.c.b16 %v4027, %v4023
    %v4404 = vpack.c.b16 %v4032, %v4028
    %v4405 = vpack.c.b16 %v4033, %v4029
    %v4406 = vpack.c.b16 %v4034, %v4030
    %v4407 = vpack.c.b16 %v4035, %v4031
    %v4408 = vpack.c.b16 %v4040, %v4036
    %v4409 = vpack.c.b16 %v4041, %v4037
    %v4410 = vpack.c.b16 %v4042, %v4038
    %v4411 = vpack.c.b16 %v4043, %v4039
    %v4412 = vpack.c.b16 %v4048, %v4044
    %v4413 = vpack.c.b16 %v4049, %v4045
    %v4414 = vpack.c.b16 %v4050, %v4046
    %v4415 = vpack.c.b16 %v4051, %v4047
    %v4416 = vpack.c.b16 %v4056, %v4052
    %v4417 = vpack.c.b16 %v4057, %v4053
    %v4418 = vpack.c.b16 %v4058, %v4054
    %v4419 = vpack.c.b16 %v4059, %v4055
    %v4420 = vpack.c.b16 %v4064, %v4060
    %v4421 = vpack.c.b16 %v4065, %v4061
    %v4422 = vpack.c.b16 %v4066, %v4062
    %v4423 = vpack.c.b16 %v4067, %v4063
    %v4424 = vpack.c.b16 %v4072, %v4068
    %v4425 = vpack.c.b16 %v4073, %v4069
    %v4426 = vpack.c.b16 %v4074, %v4070
    %v4427 = vpack.c.b16 %v4075, %v4071
    %v4428 = vpack.c.b16 %v4080, %v4076
    %v4429 = vpack.c.b16 %v4081, %v4077
    %v4430 = vpack.c.b16 %v4082, %v4078
    %v4431 = vpack.c.b16 %v4083, %v4079
    %v4432 = vpack.c.b16 %v4088, %v4084
    %v4433 = vpack.c.b16 %v4089, %v4085
    %v4434 = vpack.c.b16 %v4090, %v4086
    %v4435 = vpack.c.b16 %v4091, %v4087
    %v4436 = vpack.c.b16 %v4096, %v4092
    %v4437 = vpack.c.b16 %v4097, %v4093
    %v4438 = vpack.c.b16 %v4098, %v4094
    %v4439 = vpack.c.b16 %v4099, %v4095
    %v4440 = vpack.c.b16 %v4104, %v4100
    %v4441 = vpack.c.b16 %v4105, %v4101
    %v4442 = vpack.c.b16 %v4106, %v4102
    %v4443 = vpack.c.b16 %v4107, %v4103
    %v4444 = vpack.c.b16 %v4112, %v4108
    %v4445 = vpack.c.b16 %v4113, %v4109
    %v4446 = vpack.c.b16 %v4114, %v4110
    %v4447 = vpack.c.b16 %v4115, %v4111
    %v4448 = vpack.c.b16 %v4120, %v4116
    %v4449 = vpack.c.b16 %v4121, %v4117
    %v4450 = vpack.c.b16 %v4122, %v4118
    %v4451 = vpack.c.b16 %v4123, %v4119
    %v4452 = vpack.c.b16 %v4128, %v4124
    %v4453 = vpack.c.b16 %v4129, %v4125
    %v4454 = vpack.c.b16 %v4130, %v4126
    %v4455 = vpack.c.b16 %v4131, %v4127
    %v4456 = vpack.c.b16 %v4136, %v4132
    %v4457 = vpack.c.b16 %v4137, %v4133
    %v4458 = vpack.c.b16 %v4138, %v4134
    %v4459 = vpack.c.b16 %v4139, %v4135
    %v4460 = vpack.c.b16 %v4144, %v4140
    %v4461 = vpack.c.b16 %v4145, %v4141
    %v4462 = vpack.c.b16 %v4146, %v4142
    %v4463 = vpack.c.b16 %v4147, %v4143
    %v4464 = vpack.c.b16 %v4152, %v4148
    %v4465 = vpack.c.b16 %v4153, %v4149
    %v4466 = vpack.c.b16 %v4154, %v4150
    %v4467 = vpack.c.b16 %v4155, %v4151
    %v4468 = vpack.c.b16 %v4160, %v4156
    %v4469 = vpack.c.b16 %v4161, %v4157
    %v4470 = vpack.c.b16 %v4162, %v4158
    %v4471 = vpack.c.b16 %v4163, %v4159
    %v4472 = vpack.c.b16 %v4168, %v4164
    %v4473 = vpack.c.b16 %v4169, %v4165
    %v4474 = vpack.c.b16 %v4170, %v4166
    %v4475 = vpack.c.b16 %v4171, %v4167
    %v4476 = vpack.c.b16 %v4176, %v4172
    %v4477 = vpack.c.b16 %v4177, %v4173
    %v4478 = vpack.c.b16 %v4178, %v4174
    %v4479 = vpack.c.b16 %v4179, %v4175
    %v4480 = vpack.c.b16 %v4184, %v4180
    %v4481 = vpack.c.b16 %v4185, %v4181
    %v4482 = vpack.c.b16 %v4186, %v4182
    %v4483 = vpack.c.b16 %v4187, %v4183
    %v4484 = vpack.c.b16 %v4192, %v4188
    %v4485 = vpack.c.b16 %v4193, %v4189
    %v4486 = vpack.c.b16 %v4194, %v4190
    %v4487 = vpack.c.b16 %v4195, %v4191
    %v4488 = vpack.c.b16 %v4200, %v4196
    %v4489 = vpack.c.b16 %v4201, %v4197
    %v4490 = vpack.c.b16 %v4202, %v4198
    %v4491 = vpack.c.b16 %v4203, %v4199
    %v4492 = vpack.c.b16 %v4208, %v4204
    %v4493 = vpack.c.b16 %v4209, %v4205
    %v4494 = vpack.c.b16 %v4210, %v4206
    %v4495 = vpack.c.b16 %v4211, %v4207
    %v4496 = vpack.c.b16 %v4216, %v4212
    %v4497 = vpack.c.b16 %v4217, %v4213
    %v4498 = vpack.c.b16 %v4218, %v4214
    %v4499 = vpack.c.b16 %v4219, %v4215
    %v4500 = vpack.c.b16 %v4224, %v4220
    %v4501 = vpack.c.b16 %v4225, %v4221
    %v4502 = vpack.c.b16 %v4226, %v4222
    %v4503 = vpack.c.b16 %v4227, %v4223
    %v4504 = vpack.c.b16 %v4232, %v4228
    %v4505 = vpack.c.b16 %v4233, %v4229
    %v4506 = vpack.c.b16 %v4234, %v4230
    %v4507 = vpack.c.b16 %v4235, %v4231
    %v4508 = vpack.c.b16 %v4240, %v4236
    %v4509 = vpack.c.b16 %v4241, %v4237
    %v4510 = vpack.c.b16 %v4242, %v4238
    %v4511 = vpack.c.b16 %v4243, %v4239
    %v4512 = vpack.c.b16 %v4248, %v4244
    %v4513 = vpack.c.b16 %v4249, %v4245
    %v4514 = vpack.c.b16 %v4250, %v4246
    %v4515 = vpack.c.b16 %v4251, %v4247
    %v4516 = vpack.c.b16 %v4256, %v4252
    %v4517 = vpack.c.b16 %v4257, %v4253
    %v4518 = vpack.c.b16 %v4258, %v4254
    %v4519 = vpack.c.b16 %v4259, %v4255
    %v4520 = vpack.c.b16 %v4264, %v4260
    %v4521 = vpack.c.b16 %v4265, %v4261
    %v4522 = vpack.c.b16 %v4266, %v4262
    %v4523 = vpack.c.b16 %v4267, %v4263
    %4780 = vmatprep.subr.bf16.mxu0 %v4269
    %4781 = vmatpush1.bf16.msra.mxu0 %v4268
    %4782 = vmatprep.subr.bf16.mxu0 %v4273
    %4783 = vmatpush1.bf16.msra.mxu0 %v4272
    %4784 = vmatprep.subr.bf16.mxu0 %v4277
    %4785 = vmatpush1.bf16.msra.mxu0 %v4276
    %4786 = vmatprep.subr.bf16.mxu0 %v4281
    %4787 = vmatpush1.bf16.msra.mxu0 %v4280
    %4788 = vmatprep.subr.bf16.mxu0 %v4285
    %4789 = vmatpush1.bf16.msra.mxu0 %v4284
    %4790 = vmatprep.subr.bf16.mxu0 %v4289
    %4791 = vmatpush1.bf16.msra.mxu0 %v4288
    %4792 = vmatprep.subr.bf16.mxu0 %v4293
    %4793 = vmatpush1.bf16.msra.mxu0 %v4292
    %4794 = vmatprep.subr.bf16.mxu0 %v4297
    %4795 = vmatpush1.bf16.msra.mxu0 %v4296
    %4796 = vmatprep.subr.bf16.mxu0 %v4301
    %4797 = vmatpush1.bf16.msra.mxu0 %v4300
    %4798 = vmatprep.subr.bf16.mxu0 %v4305
    %4799 = vmatpush1.bf16.msra.mxu0 %v4304
    %4800 = vmatprep.subr.bf16.mxu0 %v4309
    %4801 = vmatpush1.bf16.msra.mxu0 %v4308
    %4802 = vmatprep.subr.bf16.mxu0 %v4313
    %4803 = vmatpush1.bf16.msra.mxu0 %v4312
    %4804 = vmatprep.subr.bf16.mxu0 %v4317
    %4805 = vmatpush1.bf16.msra.mxu0 %v4316
    %4806 = vmatprep.subr.bf16.mxu0 %v4321
    %4807 = vmatpush1.bf16.msra.mxu0 %v4320
    %4808 = vmatprep.subr.bf16.mxu0 %v4325
    %4809 = vmatpush1.bf16.msra.mxu0 %v4324
    %4810 = vmatprep.subr.bf16.mxu0 %v4329
    %4811 = vmatpush1.bf16.msra.mxu0 %v4328
    %4812 = vmatprep.mubr.bf16.mxu0 %v3215
    %4813 = vmatmul.mubr.bf16.gmra.mrb[0].mxu0 %v3214
    %v4814 = vpop.f32.mrb[0].mxu0
    %v4815 = vadd.f32 %v3483, %v4814
    %v4816 = vpop.f32.mrb[0].mxu0
    %v4817 = vadd.f32 %v3487, %v4816
    %v4818 = vpop.f32.mrb[0].mxu0
    %v4819 = vpop.f32.mrb[0].mxu0
    %4820 = vdwg.mxu0
    %4821 = vmatprep.subr.bf16.mxu0 %v4333
    %4822 = vmatpush1.bf16.msra.mxu0 %v4332
    %4823 = vmatprep.subr.bf16.mxu0 %v4337
    %4824 = vmatpush1.bf16.msra.mxu0 %v4336
    %4825 = vmatprep.subr.bf16.mxu0 %v4341
    %4826 = vmatpush1.bf16.msra.mxu0 %v4340
    %4827 = vmatprep.subr.bf16.mxu0 %v4345
    %4828 = vmatpush1.bf16.msra.mxu0 %v4344
    %4829 = vmatprep.subr.bf16.mxu0 %v4349
    %4830 = vmatpush1.bf16.msra.mxu0 %v4348
    %4831 = vmatprep.subr.bf16.mxu0 %v4353
    %4832 = vmatpush1.bf16.msra.mxu0 %v4352
    %4833 = vmatprep.subr.bf16.mxu0 %v4357
    %4834 = vmatpush1.bf16.msra.mxu0 %v4356
    %4835 = vmatprep.subr.bf16.mxu0 %v4361
    %4836 = vmatpush1.bf16.msra.mxu0 %v4360
    %4837 = vmatprep.subr.bf16.mxu0 %v4365
    %4838 = vmatpush1.bf16.msra.mxu0 %v4364
    %4839 = vmatprep.subr.bf16.mxu0 %v4369
    %4840 = vmatpush1.bf16.msra.mxu0 %v4368
    %4841 = vmatprep.subr.bf16.mxu0 %v4373
    %4842 = vmatpush1.bf16.msra.mxu0 %v4372
    %4843 = vmatprep.subr.bf16.mxu0 %v4377
    %4844 = vmatpush1.bf16.msra.mxu0 %v4376
    %4845 = vmatprep.subr.bf16.mxu0 %v4381
    %4846 = vmatpush1.bf16.msra.mxu0 %v4380
    %4847 = vmatprep.subr.bf16.mxu0 %v4385
    %4848 = vmatpush1.bf16.msra.mxu0 %v4384
    %4849 = vmatprep.subr.bf16.mxu0 %v4389
    %4850 = vmatpush1.bf16.msra.mxu0 %v4388
    %4851 = vmatprep.subr.bf16.mxu0 %v4393
    %4852 = vmatpush1.bf16.msra.mxu0 %v4392
    %4853 = vmatprep.mubr.bf16.mxu0 %v3217
    %4854 = vmatmul.mubr.bf16.gmra.mrb[0].mxu0 %v3216
    %v4855 = vpop.f32.mrb[0].mxu0
    %v4856 = vadd.f32 %v4815, %v4855
    %v4857 = vpop.f32.mrb[0].mxu0
    %v4858 = vadd.f32 %v4817, %v4857
    %v4859 = vpop.f32.mrb[0].mxu0
    %v4860 = vpop.f32.mrb[0].mxu0
    %4861 = vdwg.mxu0
    %4862 = vmatprep.subr.bf16.mxu0 %v4397
    %4863 = vmatpush1.bf16.msra.mxu0 %v4396
    %4864 = vmatprep.subr.bf16.mxu0 %v4401
    %4865 = vmatpush1.bf16.msra.mxu0 %v4400
    %4866 = vmatprep.subr.bf16.mxu0 %v4405
    %4867 = vmatpush1.bf16.msra.mxu0 %v4404
    %4868 = vmatprep.subr.bf16.mxu0 %v4409
    %4869 = vmatpush1.bf16.msra.mxu0 %v4408
    %4870 = vmatprep.subr.bf16.mxu0 %v4413
    %4871 = vmatpush1.bf16.msra.mxu0 %v4412
    %4872 = vmatprep.subr.bf16.mxu0 %v4417
    %4873 = vmatpush1.bf16.msra.mxu0 %v4416
    %4874 = vmatprep.subr.bf16.mxu0 %v4421
    %4875 = vmatpush1.bf16.msra.mxu0 %v4420
    %4876 = vmatprep.subr.bf16.mxu0 %v4425
    %4877 = vmatpush1.bf16.msra.mxu0 %v4424
    %4878 = vmatprep.subr.bf16.mxu0 %v4429
    %4879 = vmatpush1.bf16.msra.mxu0 %v4428
    %4880 = vmatprep.subr.bf16.mxu0 %v4433
    %4881 = vmatpush1.bf16.msra.mxu0 %v4432
    %4882 = vmatprep.subr.bf16.mxu0 %v4437
    %4883 = vmatpush1.bf16.msra.mxu0 %v4436
    %4884 = vmatprep.subr.bf16.mxu0 %v4441
    %4885 = vmatpush1.bf16.msra.mxu0 %v4440
    %4886 = vmatprep.subr.bf16.mxu0 %v4445
    %4887 = vmatpush1.bf16.msra.mxu0 %v4444
    %4888 = vmatprep.subr.bf16.mxu0 %v4449
    %4889 = vmatpush1.bf16.msra.mxu0 %v4448
    %4890 = vmatprep.subr.bf16.mxu0 %v4453
    %4891 = vmatpush1.bf16.msra.mxu0 %v4452
    %4892 = vmatprep.subr.bf16.mxu0 %v4457
    %4893 = vmatpush1.bf16.msra.mxu0 %v4456
    %4894 = vmatprep.mubr.bf16.mxu0 %v3219
    %4895 = vmatmul.mubr.bf16.gmra.mrb[0].mxu0 %v3218
    %v4896 = vpop.f32.mrb[0].mxu0
    %v4897 = vadd.f32 %v4856, %v4896
    %v4898 = vpop.f32.mrb[0].mxu0
    %v4899 = vadd.f32 %v4858, %v4898
    %v4900 = vpop.f32.mrb[0].mxu0
    %v4901 = vpop.f32.mrb[0].mxu0
    %4902 = vdwg.mxu0
    %4903 = vmatprep.subr.bf16.mxu0 %v4461
    %4904 = vmatpush1.bf16.msra.mxu0 %v4460
    %4905 = vmatprep.subr.bf16.mxu0 %v4465
    %4906 = vmatpush1.bf16.msra.mxu0 %v4464
    %4907 = vmatprep.subr.bf16.mxu0 %v4469
    %4908 = vmatpush1.bf16.msra.mxu0 %v4468
    %4909 = vmatprep.subr.bf16.mxu0 %v4473
    %4910 = vmatpush1.bf16.msra.mxu0 %v4472
    %4911 = vmatprep.subr.bf16.mxu0 %v4477
    %4912 = vmatpush1.bf16.msra.mxu0 %v4476
    %4913 = vmatprep.subr.bf16.mxu0 %v4481
    %4914 = vmatpush1.bf16.msra.mxu0 %v4480
    %4915 = vmatprep.subr.bf16.mxu0 %v4485
    %4916 = vmatpush1.bf16.msra.mxu0 %v4484
    %4917 = vmatprep.subr.bf16.mxu0 %v4489
    %4918 = vmatpush1.bf16.msra.mxu0 %v4488
    %4919 = vmatprep.subr.bf16.mxu0 %v4493
    %4920 = vmatpush1.bf16.msra.mxu0 %v4492
    %4921 = vmatprep.subr.bf16.mxu0 %v4497
    %4922 = vmatpush1.bf16.msra.mxu0 %v4496
    %4923 = vmatprep.subr.bf16.mxu0 %v4501
    %4924 = vmatpush1.bf16.msra.mxu0 %v4500
    %4925 = vmatprep.subr.bf16.mxu0 %v4505
    %4926 = vmatpush1.bf16.msra.mxu0 %v4504
    %4927 = vmatprep.subr.bf16.mxu0 %v4509
    %4928 = vmatpush1.bf16.msra.mxu0 %v4508
    %4929 = vmatprep.subr.bf16.mxu0 %v4513
    %4930 = vmatpush1.bf16.msra.mxu0 %v4512
    %4931 = vmatprep.subr.bf16.mxu0 %v4517
    %4932 = vmatpush1.bf16.msra.mxu0 %v4516
    %4933 = vmatprep.subr.bf16.mxu0 %v4521
    %4934 = vmatpush1.bf16.msra.mxu0 %v4520
    %4935 = vmatprep.mubr.bf16.mxu0 %v3221
    %4936 = vmatmul.mubr.bf16.gmra.mrb[0].mxu0 %v3220
    %v4937 = vpop.f32.mrb[0].mxu0
    %v4938 = vadd.f32 %v4897, %v4937
    %v4939 = vpop.f32.mrb[0].mxu0
    %v4940 = vadd.f32 %v4899, %v4939
    %v4941 = vpop.f32.mrb[0].mxu0
    %v4942 = vpop.f32.mrb[0].mxu0
    %4943 = vdwg.mxu0
    %4944 = vmatprep.subr.bf16.mxu0 %v4271
    %4945 = vmatpush1.bf16.msra.mxu0 %v4270
    %4946 = vmatprep.subr.bf16.mxu0 %v4275
    %4947 = vmatpush1.bf16.msra.mxu0 %v4274
    %4948 = vmatprep.subr.bf16.mxu0 %v4279
    %4949 = vmatpush1.bf16.msra.mxu0 %v4278
    %4950 = vmatprep.subr.bf16.mxu0 %v4283
    %4951 = vmatpush1.bf16.msra.mxu0 %v4282
    %4952 = vmatprep.subr.bf16.mxu0 %v4287
    %4953 = vmatpush1.bf16.msra.mxu0 %v4286
    %4954 = vmatprep.subr.bf16.mxu0 %v4291
    %4955 = vmatpush1.bf16.msra.mxu0 %v4290
    %4956 = vmatprep.subr.bf16.mxu0 %v4295
    %4957 = vmatpush1.bf16.msra.mxu0 %v4294
    %4958 = vmatprep.subr.bf16.mxu0 %v4299
    %4959 = vmatpush1.bf16.msra.mxu0 %v4298
    %4960 = vmatprep.subr.bf16.mxu0 %v4303
    %4961 = vmatpush1.bf16.msra.mxu0 %v4302
    %4962 = vmatprep.subr.bf16.mxu0 %v4307
    %4963 = vmatpush1.bf16.msra.mxu0 %v4306
    %4964 = vmatprep.subr.bf16.mxu0 %v4311
    %4965 = vmatpush1.bf16.msra.mxu0 %v4310
    %4966 = vmatprep.subr.bf16.mxu0 %v4315
    %4967 = vmatpush1.bf16.msra.mxu0 %v4314
    %4968 = vmatprep.subr.bf16.mxu0 %v4319
    %4969 = vmatpush1.bf16.msra.mxu0 %v4318
    %4970 = vmatprep.subr.bf16.mxu0 %v4323
    %4971 = vmatpush1.bf16.msra.mxu0 %v4322
    %4972 = vmatprep.subr.bf16.mxu0 %v4327
    %4973 = vmatpush1.bf16.msra.mxu0 %v4326
    %4974 = vmatprep.subr.bf16.mxu0 %v4331
    %4975 = vmatpush1.bf16.msra.mxu0 %v4330
    %4976 = vmatprep.mubr.bf16.mxu0 %v3215
    %4977 = vmatmul.mubr.bf16.gmra.mrb[0].mxu0 %v3214
    %v4978 = vpop.f32.mrb[0].mxu0
    %v4979 = vadd.f32 %v3491, %v4978
    %v4980 = vpop.f32.mrb[0].mxu0
    %v4981 = vadd.f32 %v3495, %v4980
    %v4982 = vpop.f32.mrb[0].mxu0
    %v4983 = vpop.f32.mrb[0].mxu0
    %4984 = vdwg.mxu0
    %4985 = vmatprep.subr.bf16.mxu0 %v4335
    %4986 = vmatpush1.bf16.msra.mxu0 %v4334
    %4987 = vmatprep.subr.bf16.mxu0 %v4339
    %4988 = vmatpush1.bf16.msra.mxu0 %v4338
    %4989 = vmatprep.subr.bf16.mxu0 %v4343
    %4990 = vmatpush1.bf16.msra.mxu0 %v4342
    %4991 = vmatprep.subr.bf16.mxu0 %v4347
    %4992 = vmatpush1.bf16.msra.mxu0 %v4346
    %4993 = vmatprep.subr.bf16.mxu0 %v4351
    %4994 = vmatpush1.bf16.msra.mxu0 %v4350
    %4995 = vmatprep.subr.bf16.mxu0 %v4355
    %4996 = vmatpush1.bf16.msra.mxu0 %v4354
    %4997 = vmatprep.subr.bf16.mxu0 %v4359
    %4998 = vmatpush1.bf16.msra.mxu0 %v4358
    %4999 = vmatprep.subr.bf16.mxu0 %v4363
    %5000 = vmatpush1.bf16.msra.mxu0 %v4362
    %5001 = vmatprep.subr.bf16.mxu0 %v4367
    %5002 = vmatpush1.bf16.msra.mxu0 %v4366
    %5003 = vmatprep.subr.bf16.mxu0 %v4371
    %5004 = vmatpush1.bf16.msra.mxu0 %v4370
    %5005 = vmatprep.subr.bf16.mxu0 %v4375
    %5006 = vmatpush1.bf16.msra.mxu0 %v4374
    %5007 = vmatprep.subr.bf16.mxu0 %v4379
    %5008 = vmatpush1.bf16.msra.mxu0 %v4378
    %5009 = vmatprep.subr.bf16.mxu0 %v4383
    %5010 = vmatpush1.bf16.msra.mxu0 %v4382
    %5011 = vmatprep.subr.bf16.mxu0 %v4387
    %5012 = vmatpush1.bf16.msra.mxu0 %v4386
    %5013 = vmatprep.subr.bf16.mxu0 %v4391
    %5014 = vmatpush1.bf16.msra.mxu0 %v4390
    %5015 = vmatprep.subr.bf16.mxu0 %v4395
    %5016 = vmatpush1.bf16.msra.mxu0 %v4394
    %5017 = vmatprep.mubr.bf16.mxu0 %v3217
    %5018 = vmatmul.mubr.bf16.gmra.mrb[0].mxu0 %v3216
    %v5019 = vpop.f32.mrb[0].mxu0
    %v5020 = vadd.f32 %v4979, %v5019
    %v5021 = vpop.f32.mrb[0].mxu0
    %v5022 = vadd.f32 %v4981, %v5021
    %v5023 = vpop.f32.mrb[0].mxu0
    %v5024 = vpop.f32.mrb[0].mxu0
    %5025 = vdwg.mxu0
    %5026 = vmatprep.subr.bf16.mxu0 %v4399
    %5027 = vmatpush1.bf16.msra.mxu0 %v4398
    %5028 = vmatprep.subr.bf16.mxu0 %v4403
    %5029 = vmatpush1.bf16.msra.mxu0 %v4402
    %5030 = vmatprep.subr.bf16.mxu0 %v4407
    %5031 = vmatpush1.bf16.msra.mxu0 %v4406
    %5032 = vmatprep.subr.bf16.mxu0 %v4411
    %5033 = vmatpush1.bf16.msra.mxu0 %v4410
    %5034 = vmatprep.subr.bf16.mxu0 %v4415
    %5035 = vmatpush1.bf16.msra.mxu0 %v4414
    %5036 = vmatprep.subr.bf16.mxu0 %v4419
    %5037 = vmatpush1.bf16.msra.mxu0 %v4418
    %5038 = vmatprep.subr.bf16.mxu0 %v4423
    %5039 = vmatpush1.bf16.msra.mxu0 %v4422
    %5040 = vmatprep.subr.bf16.mxu0 %v4427
    %5041 = vmatpush1.bf16.msra.mxu0 %v4426
    %5042 = vmatprep.subr.bf16.mxu0 %v4431
    %5043 = vmatpush1.bf16.msra.mxu0 %v4430
    %5044 = vmatprep.subr.bf16.mxu0 %v4435
    %5045 = vmatpush1.bf16.msra.mxu0 %v4434
    %5046 = vmatprep.subr.bf16.mxu0 %v4439
    %5047 = vmatpush1.bf16.msra.mxu0 %v4438
    %5048 = vmatprep.subr.bf16.mxu0 %v4443
    %5049 = vmatpush1.bf16.msra.mxu0 %v4442
    %5050 = vmatprep.subr.bf16.mxu0 %v4447
    %5051 = vmatpush1.bf16.msra.mxu0 %v4446
    %5052 = vmatprep.subr.bf16.mxu0 %v4451
    %5053 = vmatpush1.bf16.msra.mxu0 %v4450
    %5054 = vmatprep.subr.bf16.mxu0 %v4455
    %5055 = vmatpush1.bf16.msra.mxu0 %v4454
    %5056 = vmatprep.subr.bf16.mxu0 %v4459
    %5057 = vmatpush1.bf16.msra.mxu0 %v4458
    %5058 = vmatprep.mubr.bf16.mxu0 %v3219
    %5059 = vmatmul.mubr.bf16.gmra.mrb[0].mxu0 %v3218
    %v5060 = vpop.f32.mrb[0].mxu0
    %v5061 = vadd.f32 %v5020, %v5060
    %v5062 = vpop.f32.mrb[0].mxu0
    %v5063 = vadd.f32 %v5022, %v5062
    %v5064 = vpop.f32.mrb[0].mxu0
    %v5065 = vpop.f32.mrb[0].mxu0
    %5066 = vdwg.mxu0
    %5067 = vmatprep.subr.bf16.mxu0 %v4463
    %5068 = vmatpush1.bf16.msra.mxu0 %v4462
    %5069 = vmatprep.subr.bf16.mxu0 %v4467
    %5070 = vmatpush1.bf16.msra.mxu0 %v4466
    %5071 = vmatprep.subr.bf16.mxu0 %v4471
    %5072 = vmatpush1.bf16.msra.mxu0 %v4470
    %5073 = vmatprep.subr.bf16.mxu0 %v4475
    %5074 = vmatpush1.bf16.msra.mxu0 %v4474
    %5075 = vmatprep.subr.bf16.mxu0 %v4479
    %5076 = vmatpush1.bf16.msra.mxu0 %v4478
    %5077 = vmatprep.subr.bf16.mxu0 %v4483
    %5078 = vmatpush1.bf16.msra.mxu0 %v4482
    %5079 = vmatprep.subr.bf16.mxu0 %v4487
    %5080 = vmatpush1.bf16.msra.mxu0 %v4486
    %5081 = vmatprep.subr.bf16.mxu0 %v4491
    %5082 = vmatpush1.bf16.msra.mxu0 %v4490
    %5083 = vmatprep.subr.bf16.mxu0 %v4495
    %5084 = vmatpush1.bf16.msra.mxu0 %v4494
    %5085 = vmatprep.subr.bf16.mxu0 %v4499
    %5086 = vmatpush1.bf16.msra.mxu0 %v4498
    %5087 = vmatprep.subr.bf16.mxu0 %v4503
    %5088 = vmatpush1.bf16.msra.mxu0 %v4502
    %5089 = vmatprep.subr.bf16.mxu0 %v4507
    %5090 = vmatpush1.bf16.msra.mxu0 %v4506
    %5091 = vmatprep.subr.bf16.mxu0 %v4511
    %5092 = vmatpush1.bf16.msra.mxu0 %v4510
    %5093 = vmatprep.subr.bf16.mxu0 %v4515
    %5094 = vmatpush1.bf16.msra.mxu0 %v4514
    %5095 = vmatprep.subr.bf16.mxu0 %v4519
    %5096 = vmatpush1.bf16.msra.mxu0 %v4518
    %5097 = vmatprep.subr.bf16.mxu0 %v4523
    %5098 = vmatpush1.bf16.msra.mxu0 %v4522
    %5099 = vmatprep.mubr.bf16.mxu0 %v3221
    %5100 = vmatmul.mubr.bf16.gmra.mrb[0].mxu0 %v3220
    %v5101 = vpop.f32.mrb[0].mxu0
    %v5102 = vadd.f32 %v5061, %v5101
    %v5103 = vpop.f32.mrb[0].mxu0
    %v5104 = vadd.f32 %v5063, %v5103
    %v5105 = vpop.f32.mrb[0].mxu0
    %v5106 = vpop.f32.mrb[0].mxu0
    %5107 = vdwg.mxu0
    %vm5108 = vcmp.gt.f32.partialorder %v4938, 0.0
    %vm5109 = vcmp.gt.f32.partialorder %v4940, 0.0
    %vm5110 = vcmp.gt.f32.partialorder %v5102, 0.0
    %vm5111 = vcmp.gt.f32.partialorder %v5104, 0.0
    %v5112 = vmul.f32 %v4938, 0.2
    %v5113 = vmul.f32 %v4940, 0.2
    %v5114 = vmul.f32 %v5102, 0.2
    %v5115 = vmul.f32 %v5104, 0.2
    %v5116 = vsel %vm5108, %v4938, %v5112
    %v5117 = vsel %vm5109, %v4940, %v5113
    %v5118 = vsel %vm5110, %v5102, %v5114
    %v5119 = vsel %vm5111, %v5104, %v5115
    %v5120 = vpack.c.bf16 %v5116, %v5116
    %v5121 = vpack.c.bf16 %v5117, %v5117
    %v5122 = vpack.c.bf16 %v5118, %v5118
    %v5123 = vpack.c.bf16 %v5119, %v5119
    %v5124 = vld [vmem:[#allocation11] sm:$0xff]
    %v5125 = vld [vmem:[#allocation11 + $0x8] sm:$0xff]
    %v5126 = vld [vmem:[#allocation11 + $0x10] sm:$0xff]
    %v5127 = vld [vmem:[#allocation11 + $0x18] sm:$0xff]
    %v5128 = vld [vmem:[#allocation11 + $0x20] sm:$0xff]
    %v5129 = vld [vmem:[#allocation11 + $0x28] sm:$0xff]
    %v5130 = vld [vmem:[#allocation11 + $0x30] sm:$0xff]
    %v5131 = vld [vmem:[#allocation11 + $0x38] sm:$0xff]
    %v5132 = vld [vmem:[#allocation11 + $0x40] sm:$0xff]
    %v5133 = vld [vmem:[#allocation11 + $0x48] sm:$0xff]
    %v5134 = vld [vmem:[#allocation11 + $0x50] sm:$0xff]
    %v5135 = vld [vmem:[#allocation11 + $0x58] sm:$0xff]
    %v5136 = vld [vmem:[#allocation11 + $0x60] sm:$0xff]
    %v5137 = vld [vmem:[#allocation11 + $0x68] sm:$0xff]
    %v5138 = vld [vmem:[#allocation11 + $0x70] sm:$0xff]
    %v5139 = vld [vmem:[#allocation11 + $0x78] sm:$0xff]
    %v5140 = vld [vmem:[#allocation11 + $0x80] sm:$0xff]
    %v5141 = vld [vmem:[#allocation11 + $0x88] sm:$0xff]
    %v5142 = vld [vmem:[#allocation11 + $0x90] sm:$0xff]
    %v5143 = vld [vmem:[#allocation11 + $0x98] sm:$0xff]
    %v5144 = vld [vmem:[#allocation11 + $0xa0] sm:$0xff]
    %v5145 = vld [vmem:[#allocation11 + $0xa8] sm:$0xff]
    %v5146 = vld [vmem:[#allocation11 + $0xb0] sm:$0xff]
    %v5147 = vld [vmem:[#allocation11 + $0xb8] sm:$0xff]
    %v5148 = vld [vmem:[#allocation11 + $0xc0] sm:$0xff]
    %v5149 = vld [vmem:[#allocation11 + $0xc8] sm:$0xff]
    %v5150 = vld [vmem:[#allocation11 + $0xd0] sm:$0xff]
    %v5151 = vld [vmem:[#allocation11 + $0xd8] sm:$0xff]
    %v5152 = vld [vmem:[#allocation11 + $0xe0] sm:$0xff]
    %v5153 = vld [vmem:[#allocation11 + $0xe8] sm:$0xff]
    %v5154 = vld [vmem:[#allocation11 + $0xf0] sm:$0xff]
    %v5155 = vld [vmem:[#allocation11 + $0xf8] sm:$0xff]
    %v5156 = vld [vmem:[#allocation11 + $0x100] sm:$0xff]
    %v5157 = vld [vmem:[#allocation11 + $0x108] sm:$0xff]
    %v5158 = vld [vmem:[#allocation11 + $0x110] sm:$0xff]
    %v5159 = vld [vmem:[#allocation11 + $0x118] sm:$0xff]
    %v5160 = vld [vmem:[#allocation11 + $0x120] sm:$0xff]
    %v5161 = vld [vmem:[#allocation11 + $0x128] sm:$0xff]
    %v5162 = vld [vmem:[#allocation11 + $0x130] sm:$0xff]
    %v5163 = vld [vmem:[#allocation11 + $0x138] sm:$0xff]
    %v5164 = vld [vmem:[#allocation11 + $0x140] sm:$0xff]
    %v5165 = vld [vmem:[#allocation11 + $0x148] sm:$0xff]
    %v5166 = vld [vmem:[#allocation11 + $0x150] sm:$0xff]
    %v5167 = vld [vmem:[#allocation11 + $0x158] sm:$0xff]
    %v5168 = vld [vmem:[#allocation11 + $0x160] sm:$0xff]
    %v5169 = vld [vmem:[#allocation11 + $0x168] sm:$0xff]
    %v5170 = vld [vmem:[#allocation11 + $0x170] sm:$0xff]
    %v5171 = vld [vmem:[#allocation11 + $0x178] sm:$0xff]
    %v5172 = vld [vmem:[#allocation11 + $0x180] sm:$0xff]
    %v5173 = vld [vmem:[#allocation11 + $0x188] sm:$0xff]
    %v5174 = vld [vmem:[#allocation11 + $0x190] sm:$0xff]
    %v5175 = vld [vmem:[#allocation11 + $0x198] sm:$0xff]
    %v5176 = vld [vmem:[#allocation11 + $0x1a0] sm:$0xff]
    %v5177 = vld [vmem:[#allocation11 + $0x1a8] sm:$0xff]
    %v5178 = vld [vmem:[#allocation11 + $0x1b0] sm:$0xff]
    %v5179 = vld [vmem:[#allocation11 + $0x1b8] sm:$0xff]
    %v5180 = vld [vmem:[#allocation11 + $0x1c0] sm:$0xff]
    %v5181 = vld [vmem:[#allocation11 + $0x1c8] sm:$0xff]
    %v5182 = vld [vmem:[#allocation11 + $0x1d0] sm:$0xff]
    %v5183 = vld [vmem:[#allocation11 + $0x1d8] sm:$0xff]
    %v5184 = vld [vmem:[#allocation11 + $0x1e0] sm:$0xff]
    %v5185 = vld [vmem:[#allocation11 + $0x1e8] sm:$0xff]
    %v5186 = vld [vmem:[#allocation11 + $0x1f0] sm:$0xff]
    %v5187 = vld [vmem:[#allocation11 + $0x1f8] sm:$0xff]
    %v5188 = vld [vmem:[#allocation13] sm:$0x3]
    %v5190 = vlaneseq
    %v5191 = vshrl.u32 %v5190, 7
    %v5192 = vsub.s32 0, %v5191
    %v5193 = vrot.slane %v5188, %v5192
    %v5194 = vlaneseq
    %v5195 = vshrl.u32 %v5194, 7
    %v5196 = vsub.s32 1, %v5195
    %v5197 = vrot.slane %v5188, %v5196
    %v5264 = vunpack.c.l.b16 %v5124
    %v5265 = vunpack.c.h.b16 %v5124
    %v5266 = vunpack.c.l.b16 %v5125
    %v5267 = vunpack.c.h.b16 %v5125
    %v5268 = vunpack.c.l.b16 %v5126
    %v5269 = vunpack.c.h.b16 %v5126
    %v5270 = vunpack.c.l.b16 %v5127
    %v5271 = vunpack.c.h.b16 %v5127
    %v5272 = vunpack.c.l.b16 %v5128
    %v5273 = vunpack.c.h.b16 %v5128
    %v5274 = vunpack.c.l.b16 %v5129
    %v5275 = vunpack.c.h.b16 %v5129
    %v5276 = vunpack.c.l.b16 %v5130
    %v5277 = vunpack.c.h.b16 %v5130
    %v5278 = vunpack.c.l.b16 %v5131
    %v5279 = vunpack.c.h.b16 %v5131
    %v5280 = vunpack.c.l.b16 %v5132
    %v5281 = vunpack.c.h.b16 %v5132
    %v5282 = vunpack.c.l.b16 %v5133
    %v5283 = vunpack.c.h.b16 %v5133
    %v5284 = vunpack.c.l.b16 %v5134
    %v5285 = vunpack.c.h.b16 %v5134
    %v5286 = vunpack.c.l.b16 %v5135
    %v5287 = vunpack.c.h.b16 %v5135
    %v5288 = vunpack.c.l.b16 %v5136
    %v5289 = vunpack.c.h.b16 %v5136
    %v5290 = vunpack.c.l.b16 %v5137
    %v5291 = vunpack.c.h.b16 %v5137
    %v5292 = vunpack.c.l.b16 %v5138
    %v5293 = vunpack.c.h.b16 %v5138
    %v5294 = vunpack.c.l.b16 %v5139
    %v5295 = vunpack.c.h.b16 %v5139
    %v5296 = vunpack.c.l.b16 %v5140
    %v5297 = vunpack.c.h.b16 %v5140
    %v5298 = vunpack.c.l.b16 %v5141
    %v5299 = vunpack.c.h.b16 %v5141
    %v5300 = vunpack.c.l.b16 %v5142
    %v5301 = vunpack.c.h.b16 %v5142
    %v5302 = vunpack.c.l.b16 %v5143
    %v5303 = vunpack.c.h.b16 %v5143
    %v5304 = vunpack.c.l.b16 %v5144
    %v5305 = vunpack.c.h.b16 %v5144
    %v5306 = vunpack.c.l.b16 %v5145
    %v5307 = vunpack.c.h.b16 %v5145
    %v5308 = vunpack.c.l.b16 %v5146
    %v5309 = vunpack.c.h.b16 %v5146
    %v5310 = vunpack.c.l.b16 %v5147
    %v5311 = vunpack.c.h.b16 %v5147
    %v5312 = vunpack.c.l.b16 %v5148
    %v5313 = vunpack.c.h.b16 %v5148
    %v5314 = vunpack.c.l.b16 %v5149
    %v5315 = vunpack.c.h.b16 %v5149
    %v5316 = vunpack.c.l.b16 %v5150
    %v5317 = vunpack.c.h.b16 %v5150
    %v5318 = vunpack.c.l.b16 %v5151
    %v5319 = vunpack.c.h.b16 %v5151
    %v5320 = vunpack.c.l.b16 %v5152
    %v5321 = vunpack.c.h.b16 %v5152
    %v5322 = vunpack.c.l.b16 %v5153
    %v5323 = vunpack.c.h.b16 %v5153
    %v5324 = vunpack.c.l.b16 %v5154
    %v5325 = vunpack.c.h.b16 %v5154
    %v5326 = vunpack.c.l.b16 %v5155
    %v5327 = vunpack.c.h.b16 %v5155
    %v5328 = vunpack.c.l.b16 %v5156
    %v5329 = vunpack.c.h.b16 %v5156
    %v5330 = vunpack.c.l.b16 %v5157
    %v5331 = vunpack.c.h.b16 %v5157
    %v5332 = vunpack.c.l.b16 %v5158
    %v5333 = vunpack.c.h.b16 %v5158
    %v5334 = vunpack.c.l.b16 %v5159
    %v5335 = vunpack.c.h.b16 %v5159
    %v5336 = vunpack.c.l.b16 %v5160
    %v5337 = vunpack.c.h.b16 %v5160
    %v5338 = vunpack.c.l.b16 %v5161
    %v5339 = vunpack.c.h.b16 %v5161
    %v5340 = vunpack.c.l.b16 %v5162
    %v5341 = vunpack.c.h.b16 %v5162
    %v5342 = vunpack.c.l.b16 %v5163
    %v5343 = vunpack.c.h.b16 %v5163
    %v5344 = vunpack.c.l.b16 %v5164
    %v5345 = vunpack.c.h.b16 %v5164
    %v5346 = vunpack.c.l.b16 %v5165
    %v5347 = vunpack.c.h.b16 %v5165
    %v5348 = vunpack.c.l.b16 %v5166
    %v5349 = vunpack.c.h.b16 %v5166
    %v5350 = vunpack.c.l.b16 %v5167
    %v5351 = vunpack.c.h.b16 %v5167
    %v5352 = vunpack.c.l.b16 %v5168
    %v5353 = vunpack.c.h.b16 %v5168
    %v5354 = vunpack.c.l.b16 %v5169
    %v5355 = vunpack.c.h.b16 %v5169
    %v5356 = vunpack.c.l.b16 %v5170
    %v5357 = vunpack.c.h.b16 %v5170
    %v5358 = vunpack.c.l.b16 %v5171
    %v5359 = vunpack.c.h.b16 %v5171
    %v5360 = vunpack.c.l.b16 %v5172
    %v5361 = vunpack.c.h.b16 %v5172
    %v5362 = vunpack.c.l.b16 %v5173
    %v5363 = vunpack.c.h.b16 %v5173
    %v5364 = vunpack.c.l.b16 %v5174
    %v5365 = vunpack.c.h.b16 %v5174
    %v5366 = vunpack.c.l.b16 %v5175
    %v5367 = vunpack.c.h.b16 %v5175
    %v5368 = vunpack.c.l.b16 %v5176
    %v5369 = vunpack.c.h.b16 %v5176
    %v5370 = vunpack.c.l.b16 %v5177
    %v5371 = vunpack.c.h.b16 %v5177
    %v5372 = vunpack.c.l.b16 %v5178
    %v5373 = vunpack.c.h.b16 %v5178
    %v5374 = vunpack.c.l.b16 %v5179
    %v5375 = vunpack.c.h.b16 %v5179
    %v5376 = vunpack.c.l.b16 %v5180
    %v5377 = vunpack.c.h.b16 %v5180
    %v5378 = vunpack.c.l.b16 %v5181
    %v5379 = vunpack.c.h.b16 %v5181
    %v5380 = vunpack.c.l.b16 %v5182
    %v5381 = vunpack.c.h.b16 %v5182
    %v5382 = vunpack.c.l.b16 %v5183
    %v5383 = vunpack.c.h.b16 %v5183
    %v5384 = vunpack.c.l.b16 %v5184
    %v5385 = vunpack.c.h.b16 %v5184
    %v5386 = vunpack.c.l.b16 %v5185
    %v5387 = vunpack.c.h.b16 %v5185
    %v5388 = vunpack.c.l.b16 %v5186
    %v5389 = vunpack.c.h.b16 %v5186
    %v5390 = vunpack.c.l.b16 %v5187
    %v5391 = vunpack.c.h.b16 %v5187
    %v5392 = vpack.c.b16 %v5266, %v5264
    %v5393 = vpack.c.b16 %v5267, %v5265
    %v5394 = vpack.c.b16 %v5270, %v5268
    %v5395 = vpack.c.b16 %v5271, %v5269
    %v5396 = vpack.c.b16 %v5274, %v5272
    %v5397 = vpack.c.b16 %v5275, %v5273
    %v5398 = vpack.c.b16 %v5278, %v5276
    %v5399 = vpack.c.b16 %v5279, %v5277
    %v5400 = vpack.c.b16 %v5282, %v5280
    %v5401 = vpack.c.b16 %v5283, %v5281
    %v5402 = vpack.c.b16 %v5286, %v5284
    %v5403 = vpack.c.b16 %v5287, %v5285
    %v5404 = vpack.c.b16 %v5290, %v5288
    %v5405 = vpack.c.b16 %v5291, %v5289
    %v5406 = vpack.c.b16 %v5294, %v5292
    %v5407 = vpack.c.b16 %v5295, %v5293
    %v5408 = vpack.c.b16 %v5298, %v5296
    %v5409 = vpack.c.b16 %v5299, %v5297
    %v5410 = vpack.c.b16 %v5302, %v5300
    %v5411 = vpack.c.b16 %v5303, %v5301
    %v5412 = vpack.c.b16 %v5306, %v5304
    %v5413 = vpack.c.b16 %v5307, %v5305
    %v5414 = vpack.c.b16 %v5310, %v5308
    %v5415 = vpack.c.b16 %v5311, %v5309
    %v5416 = vpack.c.b16 %v5314, %v5312
    %v5417 = vpack.c.b16 %v5315, %v5313
    %v5418 = vpack.c.b16 %v5318, %v5316
    %v5419 = vpack.c.b16 %v5319, %v5317
    %v5420 = vpack.c.b16 %v5322, %v5320
    %v5421 = vpack.c.b16 %v5323, %v5321
    %v5422 = vpack.c.b16 %v5326, %v5324
    %v5423 = vpack.c.b16 %v5327, %v5325
    %v5424 = vpack.c.b16 %v5330, %v5328
    %v5425 = vpack.c.b16 %v5331, %v5329
    %v5426 = vpack.c.b16 %v5334, %v5332
    %v5427 = vpack.c.b16 %v5335, %v5333
    %v5428 = vpack.c.b16 %v5338, %v5336
    %v5429 = vpack.c.b16 %v5339, %v5337
    %v5430 = vpack.c.b16 %v5342, %v5340
    %v5431 = vpack.c.b16 %v5343, %v5341
    %v5432 = vpack.c.b16 %v5346, %v5344
    %v5433 = vpack.c.b16 %v5347, %v5345
    %v5434 = vpack.c.b16 %v5350, %v5348
    %v5435 = vpack.c.b16 %v5351, %v5349
    %v5436 = vpack.c.b16 %v5354, %v5352
    %v5437 = vpack.c.b16 %v5355, %v5353
    %v5438 = vpack.c.b16 %v5358, %v5356
    %v5439 = vpack.c.b16 %v5359, %v5357
    %v5440 = vpack.c.b16 %v5362, %v5360
    %v5441 = vpack.c.b16 %v5363, %v5361
    %v5442 = vpack.c.b16 %v5366, %v5364
    %v5443 = vpack.c.b16 %v5367, %v5365
    %v5444 = vpack.c.b16 %v5370, %v5368
    %v5445 = vpack.c.b16 %v5371, %v5369
    %v5446 = vpack.c.b16 %v5374, %v5372
    %v5447 = vpack.c.b16 %v5375, %v5373
    %v5448 = vpack.c.b16 %v5378, %v5376
    %v5449 = vpack.c.b16 %v5379, %v5377
    %v5450 = vpack.c.b16 %v5382, %v5380
    %v5451 = vpack.c.b16 %v5383, %v5381
    %v5452 = vpack.c.b16 %v5386, %v5384
    %v5453 = vpack.c.b16 %v5387, %v5385
    %v5454 = vpack.c.b16 %v5390, %v5388
    %v5455 = vpack.c.b16 %v5391, %v5389
    %5520 = vmatprep.subr.bf16.mxu0 %v5393
    %5521 = vmatpush1.bf16.msra.mxu0 %v5392
    %5522 = vmatprep.subr.bf16.mxu0 %v5395
    %5523 = vmatpush1.bf16.msra.mxu0 %v5394
    %5524 = vmatprep.subr.bf16.mxu0 %v5397
    %5525 = vmatpush1.bf16.msra.mxu0 %v5396
    %5526 = vmatprep.subr.bf16.mxu0 %v5399
    %5527 = vmatpush1.bf16.msra.mxu0 %v5398
    %5528 = vmatprep.subr.bf16.mxu0 %v5401
    %5529 = vmatpush1.bf16.msra.mxu0 %v5400
    %5530 = vmatprep.subr.bf16.mxu0 %v5403
    %5531 = vmatpush1.bf16.msra.mxu0 %v5402
    %5532 = vmatprep.subr.bf16.mxu0 %v5405
    %5533 = vmatpush1.bf16.msra.mxu0 %v5404
    %5534 = vmatprep.subr.bf16.mxu0 %v5407
    %5535 = vmatpush1.bf16.msra.mxu0 %v5406
    %5536 = vmatprep.subr.bf16.mxu0 %v5409
    %5537 = vmatpush1.bf16.msra.mxu0 %v5408
    %5538 = vmatprep.subr.bf16.mxu0 %v5411
    %5539 = vmatpush1.bf16.msra.mxu0 %v5410
    %5540 = vmatprep.subr.bf16.mxu0 %v5413
    %5541 = vmatpush1.bf16.msra.mxu0 %v5412
    %5542 = vmatprep.subr.bf16.mxu0 %v5415
    %5543 = vmatpush1.bf16.msra.mxu0 %v5414
    %5544 = vmatprep.subr.bf16.mxu0 %v5417
    %5545 = vmatpush1.bf16.msra.mxu0 %v5416
    %5546 = vmatprep.subr.bf16.mxu0 %v5419
    %5547 = vmatpush1.bf16.msra.mxu0 %v5418
    %5548 = vmatprep.subr.bf16.mxu0 %v5421
    %5549 = vmatpush1.bf16.msra.mxu0 %v5420
    %5550 = vmatprep.subr.bf16.mxu0 %v5423
    %5551 = vmatpush1.bf16.msra.mxu0 %v5422
    %5552 = vmatprep.mubr.bf16.mxu0 %v5121
    %5553 = vmatmul.mubr.bf16.gmra.mrb[0].mxu0 %v5120
    %v5554 = vpop.f32.mrb[0].mxu0
    %v5555 = vadd.f32 %v5193, %v5554
    %v5556 = vpop.f32.mrb[0].mxu0
    %v5557 = vadd.f32 %v5197, %v5556
    %v5558 = vpop.f32.mrb[0].mxu0
    %v5559 = vpop.f32.mrb[0].mxu0
    %5560 = vdwg.mxu0
    %5561 = vmatprep.subr.bf16.mxu0 %v5425
    %5562 = vmatpush1.bf16.msra.mxu0 %v5424
    %5563 = vmatprep.subr.bf16.mxu0 %v5427
    %5564 = vmatpush1.bf16.msra.mxu0 %v5426
    %5565 = vmatprep.subr.bf16.mxu0 %v5429
    %5566 = vmatpush1.bf16.msra.mxu0 %v5428
    %5567 = vmatprep.subr.bf16.mxu0 %v5431
    %5568 = vmatpush1.bf16.msra.mxu0 %v5430
    %5569 = vmatprep.subr.bf16.mxu0 %v5433
    %5570 = vmatpush1.bf16.msra.mxu0 %v5432
    %5571 = vmatprep.subr.bf16.mxu0 %v5435
    %5572 = vmatpush1.bf16.msra.mxu0 %v5434
    %5573 = vmatprep.subr.bf16.mxu0 %v5437
    %5574 = vmatpush1.bf16.msra.mxu0 %v5436
    %5575 = vmatprep.subr.bf16.mxu0 %v5439
    %5576 = vmatpush1.bf16.msra.mxu0 %v5438
    %5577 = vmatprep.subr.bf16.mxu0 %v5441
    %5578 = vmatpush1.bf16.msra.mxu0 %v5440
    %5579 = vmatprep.subr.bf16.mxu0 %v5443
    %5580 = vmatpush1.bf16.msra.mxu0 %v5442
    %5581 = vmatprep.subr.bf16.mxu0 %v5445
    %5582 = vmatpush1.bf16.msra.mxu0 %v5444
    %5583 = vmatprep.subr.bf16.mxu0 %v5447
    %5584 = vmatpush1.bf16.msra.mxu0 %v5446
    %5585 = vmatprep.subr.bf16.mxu0 %v5449
    %5586 = vmatpush1.bf16.msra.mxu0 %v5448
    %5587 = vmatprep.subr.bf16.mxu0 %v5451
    %5588 = vmatpush1.bf16.msra.mxu0 %v5450
    %5589 = vmatprep.subr.bf16.mxu0 %v5453
    %5590 = vmatpush1.bf16.msra.mxu0 %v5452
    %5591 = vmatprep.subr.bf16.mxu0 %v5455
    %5592 = vmatpush1.bf16.msra.mxu0 %v5454
    %5593 = vmatprep.mubr.bf16.mxu0 %v5123
    %5594 = vmatmul.mubr.bf16.gmra.mrb[0].mxu0 %v5122
    %v5595 = vpop.f32.mrb[0].mxu0
    %v5596 = vadd.f32 %v5555, %v5595
    %v5597 = vpop.f32.mrb[0].mxu0
    %v5598 = vadd.f32 %v5557, %v5597
    %v5599 = vpop.f32.mrb[0].mxu0
    %v5600 = vpop.f32.mrb[0].mxu0
    %5601 = vdwg.mxu0
    %vm5602 = vcmp.gt.f32.partialorder %v5596, 0.0
    %vm5603 = vcmp.gt.f32.partialorder %v5598, 0.0
    %v5604 = vmul.f32 %v5596, 0.2
    %v5605 = vmul.f32 %v5598, 0.2
    %v5606 = vsel %vm5602, %v5596, %v5604
    %v5607 = vsel %vm5603, %v5598, %v5605
    %v5608 = vpack.c.bf16 %v5606, %v5606
    %v5609 = vpack.c.bf16 %v5607, %v5607
    %v5610 = vld [vmem:[%s7] sm:$0xf]
    %v5611 = vld [vmem:[%s7 + $0x4] sm:$0xf]
    %v5612 = vld [vmem:[%s7 + $0x8] sm:$0xf]
    %v5613 = vld [vmem:[%s7 + $0xc] sm:$0xf]
    %v5614 = vld [vmem:[%s7 + $0x10] sm:$0xf]
    %v5615 = vld [vmem:[%s7 + $0x14] sm:$0xf]
    %v5616 = vld [vmem:[%s7 + $0x18] sm:$0xf]
    %v5617 = vld [vmem:[%s7 + $0x1c] sm:$0xf]
    %v5618 = vld [vmem:[%s7 + $0x20] sm:$0xf]
    %v5619 = vld [vmem:[%s7 + $0x24] sm:$0xf]
    %v5620 = vld [vmem:[%s7 + $0x28] sm:$0xf]
    %v5621 = vld [vmem:[%s7 + $0x2c] sm:$0xf]
    %v5622 = vld [vmem:[%s7 + $0x30] sm:$0xf]
    %v5623 = vld [vmem:[%s7 + $0x34] sm:$0xf]
    %v5624 = vld [vmem:[%s7 + $0x38] sm:$0xf]
    %v5625 = vld [vmem:[%s7 + $0x3c] sm:$0xf]
    %v5626 = vld [vmem:[%s7 + $0x40] sm:$0xf]
    %v5627 = vld [vmem:[%s7 + $0x44] sm:$0xf]
    %v5628 = vld [vmem:[%s7 + $0x48] sm:$0xf]
    %v5629 = vld [vmem:[%s7 + $0x4c] sm:$0xf]
    %v5630 = vld [vmem:[%s7 + $0x50] sm:$0xf]
    %v5631 = vld [vmem:[%s7 + $0x54] sm:$0xf]
    %v5632 = vld [vmem:[%s7 + $0x58] sm:$0xf]
    %v5633 = vld [vmem:[%s7 + $0x5c] sm:$0xf]
    %v5634 = vld [vmem:[%s7 + $0x60] sm:$0xf]
    %v5635 = vld [vmem:[%s7 + $0x64] sm:$0xf]
    %v5636 = vld [vmem:[%s7 + $0x68] sm:$0xf]
    %v5637 = vld [vmem:[%s7 + $0x6c] sm:$0xf]
    %v5638 = vld [vmem:[%s7 + $0x70] sm:$0xf]
    %v5639 = vld [vmem:[%s7 + $0x74] sm:$0xf]
    %v5640 = vld [vmem:[%s7 + $0x78] sm:$0xf]
    %v5641 = vld [vmem:[%s7 + $0x7c] sm:$0xf]
    %v5642 = vld [vmem:[#allocation2] sm:$0x1]
    %v5644 = vlaneseq
    %v5645 = vshrl.u32 %v5644, 7
    %v5646 = vsub.s32 0, %v5645
    %v5647 = vrot.slane %v5642, %v5646
    %v5681 = vunpack.c.l.b16 %v5610
    %v5682 = vunpack.c.l.b16 %v5611
    %v5683 = vunpack.c.l.b16 %v5612
    %v5684 = vunpack.c.l.b16 %v5613
    %v5685 = vunpack.c.l.b16 %v5614
    %v5686 = vunpack.c.l.b16 %v5615
    %v5687 = vunpack.c.l.b16 %v5616
    %v5688 = vunpack.c.l.b16 %v5617
    %v5689 = vunpack.c.l.b16 %v5618
    %v5690 = vunpack.c.l.b16 %v5619
    %v5691 = vunpack.c.l.b16 %v5620
    %v5692 = vunpack.c.l.b16 %v5621
    %v5693 = vunpack.c.l.b16 %v5622
    %v5694 = vunpack.c.l.b16 %v5623
    %v5695 = vunpack.c.l.b16 %v5624
    %v5696 = vunpack.c.l.b16 %v5625
    %v5697 = vunpack.c.l.b16 %v5626
    %v5698 = vunpack.c.l.b16 %v5627
    %v5699 = vunpack.c.l.b16 %v5628
    %v5700 = vunpack.c.l.b16 %v5629
    %v5701 = vunpack.c.l.b16 %v5630
    %v5702 = vunpack.c.l.b16 %v5631
    %v5703 = vunpack.c.l.b16 %v5632
    %v5704 = vunpack.c.l.b16 %v5633
    %v5705 = vunpack.c.l.b16 %v5634
    %v5706 = vunpack.c.l.b16 %v5635
    %v5707 = vunpack.c.l.b16 %v5636
    %v5708 = vunpack.c.l.b16 %v5637
    %v5709 = vunpack.c.l.b16 %v5638
    %v5710 = vunpack.c.l.b16 %v5639
    %v5711 = vunpack.c.l.b16 %v5640
    %v5712 = vunpack.c.l.b16 %v5641
    %v5713 = vpack.c.b16 %v5682, %v5681
    %v5714 = vpack.c.b16 %v5684, %v5683
    %v5715 = vpack.c.b16 %v5686, %v5685
    %v5716 = vpack.c.b16 %v5688, %v5687
    %v5717 = vpack.c.b16 %v5690, %v5689
    %v5718 = vpack.c.b16 %v5692, %v5691
    %v5719 = vpack.c.b16 %v5694, %v5693
    %v5720 = vpack.c.b16 %v5696, %v5695
    %v5721 = vpack.c.b16 %v5698, %v5697
    %v5722 = vpack.c.b16 %v5700, %v5699
    %v5723 = vpack.c.b16 %v5702, %v5701
    %v5724 = vpack.c.b16 %v5704, %v5703
    %v5725 = vpack.c.b16 %v5706, %v5705
    %v5726 = vpack.c.b16 %v5708, %v5707
    %v5727 = vpack.c.b16 %v5710, %v5709
    %v5728 = vpack.c.b16 %v5712, %v5711
    %5745 = vmatprep.subr.bf16.mxu0 0
    %5746 = vmatpush1.bf16.msra.mxu0 %v5713
    %5747 = vmatprep.subr.bf16.mxu0 0
    %5748 = vmatpush1.bf16.msra.mxu0 %v5714
    %5749 = vmatprep.subr.bf16.mxu0 0
    %5750 = vmatpush1.bf16.msra.mxu0 %v5715
    %5751 = vmatprep.subr.bf16.mxu0 0
    %5752 = vmatpush1.bf16.msra.mxu0 %v5716
    %5753 = vmatprep.subr.bf16.mxu0 0
    %5754 = vmatpush1.bf16.msra.mxu0 %v5717
    %5755 = vmatprep.subr.bf16.mxu0 0
    %5756 = vmatpush1.bf16.msra.mxu0 %v5718
    %5757 = vmatprep.subr.bf16.mxu0 0
    %5758 = vmatpush1.bf16.msra.mxu0 %v5719
    %5759 = vmatprep.subr.bf16.mxu0 0
    %5760 = vmatpush1.bf16.msra.mxu0 %v5720
    %5761 = vmatprep.subr.bf16.mxu0 0
    %5762 = vmatpush1.bf16.msra.mxu0 %v5721
    %5763 = vmatprep.subr.bf16.mxu0 0
    %5764 = vmatpush1.bf16.msra.mxu0 %v5722
    %5765 = vmatprep.subr.bf16.mxu0 0
    %5766 = vmatpush1.bf16.msra.mxu0 %v5723
    %5767 = vmatprep.subr.bf16.mxu0 0
    %5768 = vmatpush1.bf16.msra.mxu0 %v5724
    %5769 = vmatprep.subr.bf16.mxu0 0
    %5770 = vmatpush1.bf16.msra.mxu0 %v5725
    %5771 = vmatprep.subr.bf16.mxu0 0
    %5772 = vmatpush1.bf16.msra.mxu0 %v5726
    %5773 = vmatprep.subr.bf16.mxu0 0
    %5774 = vmatpush1.bf16.msra.mxu0 %v5727
    %5775 = vmatprep.subr.bf16.mxu0 0
    %5776 = vmatpush1.bf16.msra.mxu0 %v5728
    %5777 = vmatprep.mubr.bf16.mxu0 %v5609
    %5778 = vmatmul.mubr.bf16.gmra.mrb[0].mxu0 %v5608
    %v5779 = vpop.f32.mrb[0].mxu0
    %v5780 = vadd.f32 %v5647, %v5779
    %v5781 = vpop.f32.mrb[0].mxu0
    %v5782 = vpop.f32.mrb[0].mxu0
    %v5783 = vpop.f32.mrb[0].mxu0
    %5784 = vdwg.mxu0
    %v5785 = vsub.f32 0.0, %v5780
    %v5786 = vmul.f32 %v5785, 1.442695
    %v5787 = vpow.pop %v5786
    %v5788 = vadd.f32 %v5787, 1.0
    %v5789 = vrcp.pop %v5788
    %vm5790 = vcmask 7168
    %5791 = vst.msk [vmem:[%s9] sm:$0xff] %vm5790, %v5789
    // Predicated region
    $region66: #{tpu_custom_call.1} parent=1 // pred_check
      _
    $region67: #{tpu_custom_call.1} parent=1 // pred_check_branch
      %5793 = sbr.rel (0) target = $region69
    $region68: #{tpu_custom_call.1} parent=1 // pred_region
      _
    $region69: #{tpu_custom_call.1} parent=1 // pred_fallthru
      _
    // Predicated region
    $region70: #{tpu_custom_call.1} parent=1 // pred_check
      _
    $region71: #{tpu_custom_call.1} parent=1 // pred_check_branch
      %5795 = sbr.rel (0) target = $region73
    $region72: #{tpu_custom_call.1} parent=1 // pred_region
      _
    $region73: #{tpu_custom_call.1} parent=1 // pred_fallthru
      _
    %5796 = vsyncpa [#allocation4], 1
    %5797 = vsyncpa [#allocation6], 1
    %5798 = vsyncpa [#allocation9], 1
    %5799 = vsyncpa [#allocation12], 1

</llo_original>
